<compile_context>
chip_gen: v7x
topology: tpu7x:2x2x1
jax: 0.10.0
libtpu: 0.0.40
codegen_flags: <defaults>
</compile_context>

<pallas_src>
import numpy as np
import jax
import jax.numpy as jnp
from jax.experimental import pallas as pl
from jax.experimental.pallas import tpu as pltpu

NEG_SLOPE = 0.01   # nn.LeakyReLU default
L_IN = 64          # input length (fixed by Linear(64*K, 1))
L_H = 16           # hidden length after the stride-4 conv


def _round_up(n, m):
    return ((n + m - 1) // m) * m


def _choose_b_tile(n):
    """Batch rows per grid step: fill the 256-wide MXU and amortize the
    ~0.35us per-step pipeline overhead, but keep >=2 tiles for v7x's two
    TensorCores when the batch allows it."""
    bt = min(1024, _round_up(max(n, 1), 256))
    if n >= 512 and pl.cdiv(n, bt) < 2:
        bt = max(256, _round_up(pl.cdiv(n, 2), 256))
    return bt


def metacritic_kernel(x_ref, act_ref, w1s_ref, w1a_ref, bh_ref, w2_ref, w3_ref,
                      w4_ref, wt_ref, bt_ref, wl_ref, bl_ref, out_ref):
    # Activations are (B_TILE, features): batch on sublanes, features on lanes.
    bf16 = jnp.bfloat16

    def leaky_bf16(y_f32, bias_bf16):
        # Single f32->bf16 cast per layer, bias + LeakyReLU in bf16.
        y = y_f32.astype(bf16) + bias_bf16
        return jnp.maximum(y, NEG_SLOPE * y)

    def mm(lhs_bf16, w_ref):
        return jnp.dot(lhs_bf16, w_ref[...], preferred_element_type=jnp.float32)

    x = x_ref[...].astype(bf16)                         # (B, C*L) bf16
    y1 = mm(x, w1s_ref)                                 # (B, 16K) f32, K-depth = C*L

    # Action is constant along L: its folded contribution is a rank-A update
    # applied on the VPU so the MXU only runs the clean 256-deep state matmul.
    act = act_ref[...]                                  # (B, A) f32
    w1a = w1a_ref[...]                                  # (A, 16K) f32
    for c in range(act_ref.shape[1]):
        y1 = y1 + act[:, c:c + 1] * w1a[c:c + 1, :]

    bh = bh_ref[...]                                    # (4, 16K) bf16
    h = leaky_bf16(y1, bh[0:1, :])
    h = leaky_bf16(mm(h, w2_ref), bh[1:2, :])
    h = leaky_bf16(mm(h, w3_ref), bh[2:3, :])
    h = leaky_bf16(mm(h, w4_ref), bh[3:4, :])
    av = leaky_bf16(mm(h, wt_ref), bt_ref[...])         # (B, 64K) bf16

    # Final Linear(64K -> 1): VPU multiply + lane reduction (an MXU matmul
    # here would be >99% padding and sits on the per-tile critical path).
    prod = av.astype(jnp.float32) * wl_ref[...]         # (B, 64K) f32
    out_ref[...] = jnp.sum(prod, axis=1, keepdims=True) + bl_ref[...]


def init_params(key, channels, action_dim, K):
    """Deterministic parameter init matching the PyTorch module's shapes."""
    C_in = channels + action_dim
    ks = jax.random.split(key, 12)

    def xavier(k, shape, fan_in, fan_out):
        bound = float(np.sqrt(6.0 / (fan_in + fan_out)))
        return jax.random.uniform(k, shape, jnp.float32, -bound, bound)

    p = {}
    p["w1"] = xavier(ks[0], (K, C_in, 8), C_in * 8, K * 8)      # Conv1d (out,in,k)
    p["b1"] = jax.random.uniform(ks[1], (K,), jnp.float32, -0.1, 0.1)
    p["w2"] = xavier(ks[2], (K, K, 3), K * 3, K * 3)
    p["b2"] = jax.random.uniform(ks[3], (K,), jnp.float32, -0.1, 0.1)
    p["w3"] = xavier(ks[4], (K, K, 3), K * 3, K * 3)
    p["b3"] = jax.random.uniform(ks[5], (K,), jnp.float32, -0.1, 0.1)
    p["w4"] = xavier(ks[6], (K, K, 3), K * 3, K * 3)
    p["b4"] = jax.random.uniform(ks[7], (K,), jnp.float32, -0.1, 0.1)
    p["wt"] = xavier(ks[8], (K, K, 8), K * 8, K * 8)            # ConvT (in,out,k)
    p["bt"] = jax.random.uniform(ks[9], (K,), jnp.float32, -0.1, 0.1)
    p["wl"] = jax.random.uniform(ks[10], (1, 64 * K), jnp.float32, -0.3, 0.3)
    p["bl"] = jax.random.uniform(ks[11], (1,), jnp.float32, -0.1, 0.1)
    return p


def _pack_numpy(p, channels, action_dim, K):
    """Pack every layer into block-banded matrices acting on row-vector
    activations (h_row @ W).  State columns use the torch channel-major
    flatten order (c*L_IN + l) so state.reshape(N, C*L) is directly usable;
    hidden/out features use the position-major order (pos*K + ch)."""
    C, A = channels, action_dim
    Hf, Ff = L_H * K, L_IN * K
    w1 = np.asarray(p["w1"], np.float32)                 # (K, C+A, 8)

    # Conv1d(C+A, K, 8, stride 4, pad 2), split into state / action parts.
    w1s = np.zeros((C * L_IN, Hf), np.float32)
    w1a = np.zeros((A, Hf), np.float32)                  # action constant along L
    for t in range(L_H):
        for j in range(8):
            l = 4 * t + j - 2
            if 0 <= l < L_IN:
                for c in range(C):
                    w1s[c * L_IN + l, t * K:(t + 1) * K] = w1[:, c, j]
                for c in range(A):
                    w1a[c, t * K:(t + 1) * K] += w1[:, C + c, j]

    # Conv1d(K, K, 3, stride 1, pad 1): block-tridiagonal, transposed.
    def band3T(w):
        w = np.asarray(w, np.float32)                    # (K_out, K_in, 3)
        M = np.zeros((Hf, Hf), np.float32)
        for t in range(L_H):
            for j in range(3):
                s = t + j - 1
                if 0 <= s < L_H:
                    M[s * K:(s + 1) * K, t * K:(t + 1) * K] = w[:, :, j].T
        return M

    # ConvTranspose1d(K, K, 8, stride 4, pad 2): (16K,) -> (64K,), transposed.
    wt = np.asarray(p["wt"], np.float32)                 # (K_in, K_out, 8)
    wtT = np.zeros((Hf, Ff), np.float32)
    for l in range(L_IN):
        for t in range(L_H):
            j = l + 2 - 4 * t
            if 0 <= j < 8:
                wtT[t * K:(t + 1) * K, l * K:(l + 1) * K] = wt[:, :, j]

    bh = np.stack([np.tile(np.asarray(p[n], np.float32), L_H)
                   for n in ("b1", "b2", "b3", "b4")], axis=0)   # (4, 16K)
    bt = np.tile(np.asarray(p["bt"], np.float32), L_IN).reshape(1, Ff)

    # torch Flatten of (N, K, 64) is channel-major (ko*64 + l) -> reorder.
    wl = np.asarray(p["wl"], np.float32).reshape(K, L_IN)
    wl = np.ascontiguousarray(wl.T).reshape(1, Ff)                # index l*K + ko
    bl = np.asarray(p["bl"], np.float32).reshape(1, 1)

    return dict(w1s=w1s, w1a=w1a, w2=band3T(p["w2"]), w3=band3T(p["w3"]),
                w4=band3T(p["w4"]), wt=wtT, bh=bh, bt=bt, wl=wl, bl=bl)


def pack_params(p, channels, action_dim, K):
    npk = _pack_numpy(p, channels, action_dim, K)
    bf = lambda a: jnp.asarray(a, jnp.bfloat16)
    return {
        "w1s": bf(npk["w1s"]),
        "w1a": jnp.asarray(npk["w1a"], jnp.float32),   # VPU path stays f32
        "bh": bf(npk["bh"]),
        "w2": bf(npk["w2"]), "w3": bf(npk["w3"]), "w4": bf(npk["w4"]),
        "wt": bf(npk["wt"]), "bt": bf(npk["bt"]),
        "wl": jnp.asarray(npk["wl"], jnp.float32),     # final reduce in f32
        "bl": jnp.asarray(npk["bl"], jnp.float32),
    }


@jax.jit
def metacritic_forward(state, action, kp):
    # state: (N, channels, 64) NCW, action: (N, action_dim) -- the ndim==3 path.
    # TODO(synk): the state.ndim==2 branch (torch.cat along dim=0) is not implemented.
    N, C, L = state.shape
    assert L == L_IN
    A = action.shape[1]

    b_tile = _choose_b_tile(N)
    num_tiles = pl.cdiv(N, b_tile)
    n_pad = num_tiles * b_tile

    x = state.reshape(N, C * L)            # channel-major flatten: free reshape
    act = action
    if n_pad != N:
        x = jnp.pad(x, ((0, n_pad - N), (0, 0)))
        act = jnp.pad(act, ((0, n_pad - N), (0, 0)))

    Hf = kp["w2"].shape[0]                 # 16*K
    Ff = kp["wt"].shape[1]                 # 64*K

    const = lambda i: (0, 0)
    in_specs = [
        pl.BlockSpec((b_tile, C * L), lambda i: (i, 0)),   # state tile
        pl.BlockSpec((b_tile, A), lambda i: (i, 0)),       # action tile
        pl.BlockSpec(kp["w1s"].shape, const),
        pl.BlockSpec(kp["w1a"].shape, const),
        pl.BlockSpec(kp["bh"].shape, const),
        pl.BlockSpec(kp["w2"].shape, const),
        pl.BlockSpec(kp["w3"].shape, const),
        pl.BlockSpec(kp["w4"].shape, const),
        pl.BlockSpec(kp["wt"].shape, const),
        pl.BlockSpec(kp["bt"].shape, const),
        pl.BlockSpec(kp["wl"].shape, const),
        pl.BlockSpec(kp["bl"].shape, const),
    ]

    flops = 2 * n_pad * (C * L * Hf + A * Hf + 3 * Hf * Hf + Hf * Ff + Ff)
    w_bytes = sum(int(np.prod(v.shape)) * np.dtype(v.dtype).itemsize
                  for v in kp.values())
    bytes_accessed = int(x.size) * 4 + int(act.size) * 4 + n_pad * 4 + w_bytes
    cost = pl.CostEstimate(flops=int(flops), transcendentals=0,
                           bytes_accessed=int(bytes_accessed))

    out = pl.pallas_call(
        metacritic_kernel,
        out_shape=jax.ShapeDtypeStruct((n_pad, 1), jnp.float32),
        grid=(num_tiles,),
        in_specs=in_specs,
        out_specs=pl.BlockSpec((b_tile, 1), lambda i: (i, 0)),
        compiler_params=pltpu.CompilerParams(
            dimension_semantics=("parallel",),
            vmem_limit_bytes=32 * 1024 * 1024),
        cost_estimate=cost,
    )(x, act, kp["w1s"], kp["w1a"], kp["bh"], kp["w2"], kp["w3"], kp["w4"],
      kp["wt"], kp["bt"], kp["wl"], kp["bl"])

    val = out[:N]                                        # (N, 1)
    return jnp.squeeze(val, axis=0) if N == 1 else val   # mimics .squeeze(0)


def packed_ref_forward(state, action, npk):
    """Full-precision (f64) forward through the PACKED matrices; validates the
    packing independently of the bf16 kernel path."""
    x = np.asarray(state, np.float64).reshape(state.shape[0], -1)
    a = np.asarray(action, np.float64)
    leaky = lambda v: np.where(v > 0, v, NEG_SLOPE * v)
    d = lambda n: np.asarray(npk[n], np.float64)
    h = leaky(x @ d("w1s") + a @ d("w1a") + d("bh")[0])
    h = leaky(h @ d("w2") + d("bh")[1])
    h = leaky(h @ d("w3") + d("bh")[2])
    h = leaky(h @ d("w4") + d("bh")[3])
    av = leaky(h @ d("wt") + d("bt"))
    return (av * d("wl")).sum(axis=1, keepdims=True) + d("bl")


def torch_ref_forward(state, action, p):
    """Pure numpy reference following the PyTorch definitions exactly."""
    state = np.asarray(state, np.float64)
    action = np.asarray(action, np.float64)
    N, C, L = state.shape
    a = np.repeat(action[:, :, None], L, axis=2)
    x = np.concatenate([state, a], axis=1)

    def leaky(v):
        return np.where(v > 0, v, NEG_SLOPE * v)

    def conv1d(xb, w, b, stride, pad):
        Co, Ci, k = w.shape
        xp = np.pad(xb, ((0, 0), (pad, pad)))
        Lo = (xb.shape[1] + 2 * pad - k) // stride + 1
        out = np.zeros((Co, Lo))
        for t in range(Lo):
            win = xp[:, t * stride:t * stride + k]
            out[:, t] = np.tensordot(w, win, axes=([1, 2], [0, 1])) + b
        return out

    def convT1d(xb, w, b, stride, pad):
        Ci, Co, k = w.shape
        Lin = xb.shape[1]
        Lo = (Lin - 1) * stride - 2 * pad + k
        full = np.zeros((Co, Lo + 2 * pad))
        for t in range(Lin):
            for j in range(k):
                full[:, t * stride + j] += xb[:, t] @ w[:, :, j]
        return full[:, pad:pad + Lo] + b[:, None]

    to64 = lambda name: np.asarray(p[name], np.float64)
    wl, bl = to64("wl"), to64("bl")
    outs = []
    for n in range(N):
        h = leaky(conv1d(x[n], to64("w1"), to64("b1"), 4, 2))
        h = leaky(conv1d(h, to64("w2"), to64("b2"), 1, 1))
        h = leaky(conv1d(h, to64("w3"), to64("b3"), 1, 1))
        h = leaky(conv1d(h, to64("w4"), to64("b4"), 1, 1))
        h = leaky(convT1d(h, to64("wt"), to64("bt"), 4, 2))
        outs.append(wl @ h.reshape(-1) + bl)   # torch Flatten is channel-major
    return np.stack(outs, axis=0)              # (N, 1)


if __name__ == "__main__":
    N, channels, action_dim, K = 2, 4, 2, 16   # L=64 fixed by Linear(64*K, 1)
    key = jax.random.PRNGKey(0)
    p_key, s_key, a_key = jax.random.split(key, 3)

    params = init_params(p_key, channels, action_dim, K)
    kparams = pack_params(params, channels, action_dim, K)

    state = jax.random.normal(s_key, (N, channels, L_IN), jnp.float32)
    action = jax.random.normal(a_key, (N, action_dim), jnp.float32)

    ref = torch_ref_forward(state, action, params)

    # Validate the packed-matrix path in full precision (guards packing bugs
    # independently of the bf16 MXU path).
    npk = _pack_numpy(params, channels, action_dim, K)
    packed_ref = packed_ref_forward(state, action, npk)
    np.testing.assert_allclose(packed_ref, ref, rtol=1e-5, atol=1e-6)

    out = metacritic_forward(state, action, kparams)
    out = jax.block_until_ready(out)

    assert out.shape == (N, 1), out.shape
    # bf16 MXU path (f32 accumulation) => looser tolerance than the f64 ref.
    np.testing.assert_allclose(np.asarray(out), ref, rtol=5e-2, atol=5e-2)
    print("KERNEL_OK")
</pallas_src>

<mosaic_0001>
module attributes {stable_mosaic.version = 11 : i64} {
  func.func @metacritic_kernel(%arg0: i32, %arg1: memref<256x256xf32, #tpu.memory_space<vmem>>, %arg2: memref<256x2xf32, #tpu.memory_space<vmem>>, %arg3: memref<256x256xbf16, #tpu.memory_space<vmem>>, %arg4: memref<2x256xf32, #tpu.memory_space<vmem>>, %arg5: memref<4x256xbf16, #tpu.memory_space<vmem>>, %arg6: memref<256x256xbf16, #tpu.memory_space<vmem>>, %arg7: memref<256x256xbf16, #tpu.memory_space<vmem>>, %arg8: memref<256x256xbf16, #tpu.memory_space<vmem>>, %arg9: memref<256x1024xbf16, #tpu.memory_space<vmem>>, %arg10: memref<1x1024xbf16, #tpu.memory_space<vmem>>, %arg11: memref<1x1024xf32, #tpu.memory_space<vmem>>, %arg12: memref<1x1xf32, #tpu.memory_space<vmem>>, %arg13: memref<256x1xf32, #tpu.memory_space<vmem>>) attributes {dimension_semantics = [#tpu.dimension_semantics<parallel>], iteration_bounds = array<i64: 1>, scalar_prefetch = 0 : i64, scratch_operands = 0 : i64, tpu.core_type = #tpu.core_type<tc>, window_params = [{transform_indices = @transform_0, window_bounds = array<i64: 256, 256>}, {transform_indices = @transform_1, window_bounds = array<i64: 256, 2>}, {pipeline_mode = #tpu.pipeline_mode<synchronous>, transform_indices = @transform_2, window_bounds = array<i64: 256, 256>}, {pipeline_mode = #tpu.pipeline_mode<synchronous>, transform_indices = @transform_3, window_bounds = array<i64: 2, 256>}, {pipeline_mode = #tpu.pipeline_mode<synchronous>, transform_indices = @transform_4, window_bounds = array<i64: 4, 256>}, {pipeline_mode = #tpu.pipeline_mode<synchronous>, transform_indices = @transform_5, window_bounds = array<i64: 256, 256>}, {pipeline_mode = #tpu.pipeline_mode<synchronous>, transform_indices = @transform_6, window_bounds = array<i64: 256, 256>}, {pipeline_mode = #tpu.pipeline_mode<synchronous>, transform_indices = @transform_7, window_bounds = array<i64: 256, 256>}, {pipeline_mode = #tpu.pipeline_mode<synchronous>, transform_indices = @transform_8, window_bounds = array<i64: 256, 1024>}, {pipeline_mode = #tpu.pipeline_mode<synchronous>, transform_indices = @transform_9, window_bounds = array<i64: 1, 1024>}, {pipeline_mode = #tpu.pipeline_mode<synchronous>, transform_indices = @transform_10, window_bounds = array<i64: 1, 1024>}, {pipeline_mode = #tpu.pipeline_mode<synchronous>, transform_indices = @transform_11, window_bounds = array<i64: 1, 1>}, {transform_indices = @transform_12, window_bounds = array<i64: 256, 1>}]} {
    %c0 = arith.constant 0 : index
    %c0_0 = arith.constant 0 : index
    %0 = vector.load %arg1[%c0, %c0_0] : memref<256x256xf32, #tpu.memory_space<vmem>>, vector<256x256xf32>
    %1 = arith.truncf %0 : vector<256x256xf32> to vector<256x256xbf16>
    %c0_1 = arith.constant 0 : index
    %c0_2 = arith.constant 0 : index
    %2 = vector.load %arg3[%c0_1, %c0_2] : memref<256x256xbf16, #tpu.memory_space<vmem>>, vector<256x256xbf16>
    %cst = arith.constant dense<0.000000e+00> : vector<256x256xf32>
    %3 = tpu.matmul %1, %2, %cst {dimension_numbers = #tpu.dot_dimension_numbers<[1], [0], [0], [1], [0, 0, 1, 1], [], []>} : vector<256x256xbf16>, vector<256x256xbf16>, vector<256x256xf32> -> vector<256x256xf32>
    %c0_3 = arith.constant 0 : index
    %c0_4 = arith.constant 0 : index
    %4 = vector.load %arg2[%c0_3, %c0_4] : memref<256x2xf32, #tpu.memory_space<vmem>>, vector<256x2xf32>
    %c0_5 = arith.constant 0 : index
    %c0_6 = arith.constant 0 : index
    %5 = vector.load %arg4[%c0_5, %c0_6] : memref<2x256xf32, #tpu.memory_space<vmem>>, vector<2x256xf32>
    %6 = vector.extract_strided_slice %4 {offsets = [0, 0], sizes = [256, 1], strides = [1, 1]} : vector<256x2xf32> to vector<256x1xf32>
    %7 = vector.extract_strided_slice %5 {offsets = [0, 0], sizes = [1, 256], strides = [1, 1]} : vector<2x256xf32> to vector<1x256xf32>
    %8 = vector.broadcast %6 : vector<256x1xf32> to vector<256x256xf32>
    %9 = vector.broadcast %7 : vector<1x256xf32> to vector<256x256xf32>
    %10 = arith.mulf %8, %9 : vector<256x256xf32>
    %11 = arith.addf %3, %10 : vector<256x256xf32>
    %12 = vector.extract_strided_slice %4 {offsets = [0, 1], sizes = [256, 1], strides = [1, 1]} : vector<256x2xf32> to vector<256x1xf32>
    %13 = vector.extract_strided_slice %5 {offsets = [1, 0], sizes = [1, 256], strides = [1, 1]} : vector<2x256xf32> to vector<1x256xf32>
    %14 = vector.broadcast %12 : vector<256x1xf32> to vector<256x256xf32>
    %15 = vector.broadcast %13 : vector<1x256xf32> to vector<256x256xf32>
    %16 = arith.mulf %14, %15 : vector<256x256xf32>
    %17 = arith.addf %11, %16 : vector<256x256xf32>
    %c0_7 = arith.constant 0 : index
    %c0_8 = arith.constant 0 : index
    %18 = vector.load %arg5[%c0_7, %c0_8] : memref<4x256xbf16, #tpu.memory_space<vmem>>, vector<4x256xbf16>
    %19 = vector.extract_strided_slice %18 {offsets = [0, 0], sizes = [1, 256], strides = [1, 1]} : vector<4x256xbf16> to vector<1x256xbf16>
    %20 = arith.truncf %17 : vector<256x256xf32> to vector<256x256xbf16>
    %21 = vector.broadcast %19 : vector<1x256xbf16> to vector<256x256xbf16>
    %22 = arith.addf %20, %21 : vector<256x256xbf16>
    %cst_9 = arith.constant 1.000980e-02 : bf16
    %23 = vector.broadcast %cst_9 : bf16 to vector<256x256xbf16>
    %24 = arith.mulf %23, %22 : vector<256x256xbf16>
    %25 = arith.maximumf %22, %24 : vector<256x256xbf16>
    %c0_10 = arith.constant 0 : index
    %c0_11 = arith.constant 0 : index
    %26 = vector.load %arg6[%c0_10, %c0_11] : memref<256x256xbf16, #tpu.memory_space<vmem>>, vector<256x256xbf16>
    %cst_12 = arith.constant dense<0.000000e+00> : vector<256x256xf32>
    %27 = tpu.matmul %25, %26, %cst_12 {dimension_numbers = #tpu.dot_dimension_numbers<[1], [0], [0], [1], [0, 0, 1, 1], [], []>} : vector<256x256xbf16>, vector<256x256xbf16>, vector<256x256xf32> -> vector<256x256xf32>
    %28 = vector.extract_strided_slice %18 {offsets = [1, 0], sizes = [1, 256], strides = [1, 1]} : vector<4x256xbf16> to vector<1x256xbf16>
    %29 = arith.truncf %27 : vector<256x256xf32> to vector<256x256xbf16>
    %30 = vector.broadcast %28 : vector<1x256xbf16> to vector<256x256xbf16>
    %31 = arith.addf %29, %30 : vector<256x256xbf16>
    %cst_13 = arith.constant 1.000980e-02 : bf16
    %32 = vector.broadcast %cst_13 : bf16 to vector<256x256xbf16>
    %33 = arith.mulf %32, %31 : vector<256x256xbf16>
    %34 = arith.maximumf %31, %33 : vector<256x256xbf16>
    %c0_14 = arith.constant 0 : index
    %c0_15 = arith.constant 0 : index
    %35 = vector.load %arg7[%c0_14, %c0_15] : memref<256x256xbf16, #tpu.memory_space<vmem>>, vector<256x256xbf16>
    %cst_16 = arith.constant dense<0.000000e+00> : vector<256x256xf32>
    %36 = tpu.matmul %34, %35, %cst_16 {dimension_numbers = #tpu.dot_dimension_numbers<[1], [0], [0], [1], [0, 0, 1, 1], [], []>} : vector<256x256xbf16>, vector<256x256xbf16>, vector<256x256xf32> -> vector<256x256xf32>
    %37 = vector.extract_strided_slice %18 {offsets = [2, 0], sizes = [1, 256], strides = [1, 1]} : vector<4x256xbf16> to vector<1x256xbf16>
    %38 = arith.truncf %36 : vector<256x256xf32> to vector<256x256xbf16>
    %39 = vector.broadcast %37 : vector<1x256xbf16> to vector<256x256xbf16>
    %40 = arith.addf %38, %39 : vector<256x256xbf16>
    %cst_17 = arith.constant 1.000980e-02 : bf16
    %41 = vector.broadcast %cst_17 : bf16 to vector<256x256xbf16>
    %42 = arith.mulf %41, %40 : vector<256x256xbf16>
    %43 = arith.maximumf %40, %42 : vector<256x256xbf16>
    %c0_18 = arith.constant 0 : index
    %c0_19 = arith.constant 0 : index
    %44 = vector.load %arg8[%c0_18, %c0_19] : memref<256x256xbf16, #tpu.memory_space<vmem>>, vector<256x256xbf16>
    %cst_20 = arith.constant dense<0.000000e+00> : vector<256x256xf32>
    %45 = tpu.matmul %43, %44, %cst_20 {dimension_numbers = #tpu.dot_dimension_numbers<[1], [0], [0], [1], [0, 0, 1, 1], [], []>} : vector<256x256xbf16>, vector<256x256xbf16>, vector<256x256xf32> -> vector<256x256xf32>
    %46 = vector.extract_strided_slice %18 {offsets = [3, 0], sizes = [1, 256], strides = [1, 1]} : vector<4x256xbf16> to vector<1x256xbf16>
    %47 = arith.truncf %45 : vector<256x256xf32> to vector<256x256xbf16>
    %48 = vector.broadcast %46 : vector<1x256xbf16> to vector<256x256xbf16>
    %49 = arith.addf %47, %48 : vector<256x256xbf16>
    %cst_21 = arith.constant 1.000980e-02 : bf16
    %50 = vector.broadcast %cst_21 : bf16 to vector<256x256xbf16>
    %51 = arith.mulf %50, %49 : vector<256x256xbf16>
    %52 = arith.maximumf %49, %51 : vector<256x256xbf16>
    %c0_22 = arith.constant 0 : index
    %c0_23 = arith.constant 0 : index
    %53 = vector.load %arg9[%c0_22, %c0_23] : memref<256x1024xbf16, #tpu.memory_space<vmem>>, vector<256x1024xbf16>
    %cst_24 = arith.constant dense<0.000000e+00> : vector<256x1024xf32>
    %54 = tpu.matmul %52, %53, %cst_24 {dimension_numbers = #tpu.dot_dimension_numbers<[1], [0], [0], [1], [0, 0, 1, 1], [], []>} : vector<256x256xbf16>, vector<256x1024xbf16>, vector<256x1024xf32> -> vector<256x1024xf32>
    %c0_25 = arith.constant 0 : index
    %c0_26 = arith.constant 0 : index
    %55 = vector.load %arg10[%c0_25, %c0_26] : memref<1x1024xbf16, #tpu.memory_space<vmem>>, vector<1x1024xbf16>
    %56 = arith.truncf %54 : vector<256x1024xf32> to vector<256x1024xbf16>
    %57 = vector.broadcast %55 : vector<1x1024xbf16> to vector<256x1024xbf16>
    %58 = arith.addf %56, %57 : vector<256x1024xbf16>
    %cst_27 = arith.constant 1.000980e-02 : bf16
    %59 = vector.broadcast %cst_27 : bf16 to vector<256x1024xbf16>
    %60 = arith.mulf %59, %58 : vector<256x1024xbf16>
    %61 = arith.maximumf %58, %60 : vector<256x1024xbf16>
    %62 = arith.extf %61 : vector<256x1024xbf16> to vector<256x1024xf32>
    %c0_28 = arith.constant 0 : index
    %c0_29 = arith.constant 0 : index
    %63 = vector.load %arg11[%c0_28, %c0_29] : memref<1x1024xf32, #tpu.memory_space<vmem>>, vector<1x1024xf32>
    %64 = vector.broadcast %63 : vector<1x1024xf32> to vector<256x1024xf32>
    %65 = arith.mulf %62, %64 : vector<256x1024xf32>
    %cst_30 = arith.constant dense<0.000000e+00> : vector<256xf32>
    %66 = vector.multi_reduction <add>, %65, %cst_30 [1] : vector<256x1024xf32> to vector<256xf32>
    %67 = vector.shape_cast %66 : vector<256xf32> to vector<256x1xf32>
    %c0_31 = arith.constant 0 : index
    %c0_32 = arith.constant 0 : index
    %68 = vector.load %arg12[%c0_31, %c0_32] : memref<1x1xf32, #tpu.memory_space<vmem>>, vector<1x1xf32>
    %69 = vector.broadcast %68 : vector<1x1xf32> to vector<256x1xf32>
    %70 = arith.addf %67, %69 : vector<256x1xf32>
    %c0_33 = arith.constant 0 : index
    %c0_34 = arith.constant 0 : index
    %71 = vector.load %arg13[%c0_33, %c0_34] : memref<256x1xf32, #tpu.memory_space<vmem>>, vector<256x1xf32>
    tpu.vector_store %arg13[%c0_33, %c0_34], %70 {strides = array<i32>} : memref<256x1xf32, #tpu.memory_space<vmem>>, vector<256x1xf32>,
    return
  }
  func.func @transform_0(%arg0: i32) -> (i32, i32) {
    %c0_i32 = arith.constant 0 : i32
    %c0_i32_0 = arith.constant 0 : i32
    return %arg0, %c0_i32 : i32, i32
  }
  func.func @transform_1(%arg0: i32) -> (i32, i32) {
    %c0_i32 = arith.constant 0 : i32
    %c0_i32_0 = arith.constant 0 : i32
    return %arg0, %c0_i32 : i32, i32
  }
  func.func @transform_2(%arg0: i32) -> (i32, i32) {
    %c0_i32 = arith.constant 0 : i32
    %c0_i32_0 = arith.constant 0 : i32
    %c0_i32_1 = arith.constant 0 : i32
    return %c0_i32, %c0_i32_0 : i32, i32
  }
  func.func @transform_3(%arg0: i32) -> (i32, i32) {
    %c0_i32 = arith.constant 0 : i32
    %c0_i32_0 = arith.constant 0 : i32
    %c0_i32_1 = arith.constant 0 : i32
    return %c0_i32, %c0_i32_0 : i32, i32
  }
  func.func @transform_4(%arg0: i32) -> (i32, i32) {
    %c0_i32 = arith.constant 0 : i32
    %c0_i32_0 = arith.constant 0 : i32
    %c0_i32_1 = arith.constant 0 : i32
    return %c0_i32, %c0_i32_0 : i32, i32
  }
  func.func @transform_5(%arg0: i32) -> (i32, i32) {
    %c0_i32 = arith.constant 0 : i32
    %c0_i32_0 = arith.constant 0 : i32
    %c0_i32_1 = arith.constant 0 : i32
    return %c0_i32, %c0_i32_0 : i32, i32
  }
  func.func @transform_6(%arg0: i32) -> (i32, i32) {
    %c0_i32 = arith.constant 0 : i32
    %c0_i32_0 = arith.constant 0 : i32
    %c0_i32_1 = arith.constant 0 : i32
    return %c0_i32, %c0_i32_0 : i32, i32
  }
  func.func @transform_7(%arg0: i32) -> (i32, i32) {
    %c0_i32 = arith.constant 0 : i32
    %c0_i32_0 = arith.constant 0 : i32
    %c0_i32_1 = arith.constant 0 : i32
    return %c0_i32, %c0_i32_0 : i32, i32
  }
  func.func @transform_8(%arg0: i32) -> (i32, i32) {
    %c0_i32 = arith.constant 0 : i32
    %c0_i32_0 = arith.constant 0 : i32
    %c0_i32_1 = arith.constant 0 : i32
    return %c0_i32, %c0_i32_0 : i32, i32
  }
  func.func @transform_9(%arg0: i32) -> (i32, i32) {
    %c0_i32 = arith.constant 0 : i32
    %c0_i32_0 = arith.constant 0 : i32
    %c0_i32_1 = arith.constant 0 : i32
    return %c0_i32, %c0_i32_0 : i32, i32
  }
  func.func @transform_10(%arg0: i32) -> (i32, i32) {
    %c0_i32 = arith.constant 0 : i32
    %c0_i32_0 = arith.constant 0 : i32
    %c0_i32_1 = arith.constant 0 : i32
    return %c0_i32, %c0_i32_0 : i32, i32
  }
  func.func @transform_11(%arg0: i32) -> (i32, i32) {
    %c0_i32 = arith.constant 0 : i32
    %c0_i32_0 = arith.constant 0 : i32
    %c0_i32_1 = arith.constant 0 : i32
    return %c0_i32, %c0_i32_0 : i32, i32
  }
  func.func @transform_12(%arg0: i32) -> (i32, i32) {
    %c0_i32 = arith.constant 0 : i32
    %c0_i32_0 = arith.constant 0 : i32
    return %arg0, %c0_i32 : i32, i32
  }
}

</mosaic_0001>

<llo_original>
// kernel: metacritic_forward.1
$region0: #{metacritic_forward.1}
  #allocation0 [shape = 'u32[]', space=smem, size = 0x4, offset = 0x4, fixed_abs, tag = 'smem constant byte address 0x4 - core index']
  #allocation1 [shape = 'u32[144,128]{1,0:T(1,128)}', space=vmem, size = 0x12000, scoped, tag = 'internal scratch']
  #allocation2 [shape = 'f32[1,1]{1,0:T(1,128)S(1)}', space=vmem, size = 0x200, scoped, tag = 'scoped memory for metacritic_forward.1']
  %s0 = inlined_call_operand.vmem [shape: f32[256,256], index: 0, kind: input, shape index: {}]
  %s1 = inlined_call_operand.vmem [shape: f32[256,2], index: 1, kind: input, shape index: {}]
  %s2 = inlined_call_operand.vmem [shape: bf16[256,256], index: 2, kind: input, shape index: {}]
  %s3 = inlined_call_operand.vmem [shape: f32[2,256], index: 3, kind: input, shape index: {}]
  %s4 = inlined_call_operand.vmem [shape: bf16[4,256], index: 4, kind: input, shape index: {}]
  %s5 = inlined_call_operand.vmem [shape: bf16[256,256], index: 5, kind: input, shape index: {}]
  %s6 = inlined_call_operand.vmem [shape: bf16[256,256], index: 6, kind: input, shape index: {}]
  %s7 = inlined_call_operand.hbm [shape: bf16[256,256], index: 7, kind: input, shape index: {}]
  %s8 = inlined_call_operand.hbm [shape: bf16[256,1024], index: 8, kind: input, shape index: {}]
  %s9 = inlined_call_operand.vmem [shape: bf16[1,1024], index: 9, kind: input, shape index: {}]
  %s10 = inlined_call_operand.vmem [shape: f32[1,1024], index: 10, kind: input, shape index: {}]
  %s11 = inlined_call_operand.<no memory space> [shape: f32[1,1], index: 11, kind: input, shape index: {}]
  %s12 = inlined_call_operand.vmem [shape: f32[256,1], index: 12, kind: output, shape index: {}]
  %s13 = sld [smem:[#allocation0]]
  $region66: #{metacritic_forward.1} parent=0
    _
  %s15 = ssub.s32 1, %s13
  %s16 = scalar_select 0, %s15, %s13
  %v17 = vstv %s11
  %18 = vst [vmem:[#allocation2] sm:$0x1] %v17
  $region1: #{metacritic_forward.1} parent=0
    #allocation3 [shape = 'u8[131072]{0}', space=vmem, size = 0x20000, scoped, tag = 'input window, operand 7, single buffered']
    #allocation4 [shape = 's32[1]{0}', space=sflag, size = 0x4, scoped, tag = 'scoped memory for metacritic_forward.1']
    #allocation5 [shape = 'u8[524288]{0}', space=vmem, size = 0x80000, scoped, tag = 'input window, operand 8, single buffered']
    #allocation6 [shape = 's32[1]{0}', space=sflag, size = 0x4, scoped, tag = 'scoped memory for metacritic_forward.1']
    %19 = vsyncpa [#allocation4], 0
    %20 = vsyncpa [#allocation6], 0
    // Predicated region
    $region2: #{metacritic_forward.1} parent=1 // pred_check
      _
    $region3: #{metacritic_forward.1} parent=1 // pred_check_branch
      %22 = sbr.rel (0) target = $region5
    $region4: #{metacritic_forward.1} parent=1 // pred_region
      _
    $region5: #{metacritic_forward.1} parent=1 // pred_fallthru
      _
    // Predicated region
    $region6: #{metacritic_forward.1} parent=1 // pred_check
      _
    $region7: #{metacritic_forward.1} parent=1 // pred_check_branch
      %24 = sbr.rel (0) target = $region9
    $region8: #{metacritic_forward.1} parent=1 // pred_region
      _
    $region9: #{metacritic_forward.1} parent=1 // pred_fallthru
      _
    // Predicated region
    $region10: #{metacritic_forward.1} parent=1 // pred_check
      _
    $region11: #{metacritic_forward.1} parent=1 // pred_check_branch
      %26 = sbr.rel (0) target = $region13
    $region12: #{metacritic_forward.1} parent=1 // pred_region
      _
    $region13: #{metacritic_forward.1} parent=1 // pred_fallthru
      _
    // Predicated region
    $region14: #{metacritic_forward.1} parent=1 // pred_check
      _
    $region15: #{metacritic_forward.1} parent=1 // pred_check_branch
      %28 = sbr.rel (0) target = $region17
    $region16: #{metacritic_forward.1} parent=1 // pred_region
      _
    $region17: #{metacritic_forward.1} parent=1 // pred_fallthru
      _
    // Predicated region
    $region18: #{metacritic_forward.1} parent=1 // pred_check
      _
    $region19: #{metacritic_forward.1} parent=1 // pred_check_branch
      %30 = sbr.rel (0) target = $region21
    $region20: #{metacritic_forward.1} parent=1 // pred_region
      _
    $region21: #{metacritic_forward.1} parent=1 // pred_fallthru
      _
    // Predicated region
    $region22: #{metacritic_forward.1} parent=1 // pred_check
      _
    $region23: #{metacritic_forward.1} parent=1 // pred_check_branch
      %32 = sbr.rel (0) target = $region25
    $region24: #{metacritic_forward.1} parent=1 // pred_region
      _
    $region25: #{metacritic_forward.1} parent=1 // pred_fallthru
      _
    // Predicated region
    $region26: #{metacritic_forward.1} parent=1 // pred_check
      _
    $region27: #{metacritic_forward.1} parent=1 // pred_check_branch
      %34 = sbr.rel (0) target = $region29
    $region28: #{metacritic_forward.1} parent=1 // pred_region
      _
    $region29: #{metacritic_forward.1} parent=1 // pred_fallthru
      _
    // Predicated region
    $region30: #{metacritic_forward.1} parent=1 // pred_check
      _
    $region31: #{metacritic_forward.1} parent=1 // pred_check_branch
      %36 = sbr.rel (0) target = $region33
    $region32: #{metacritic_forward.1} parent=1 // pred_region
      %s38 = ssub.s32 4096, 4096
      %39 = vsyncadd [#allocation4], %s38
      %s40 = sshll.u32 [#allocation3], 4
      %s41 = int_to_ptr.vmem [resolvable:$true] %s40
      %46 = dma.hbm_to_vmem [thread:$0]  %s7, 4096, %s41, [#allocation4], 128, 128, 8
    $region33: #{metacritic_forward.1} parent=1 // pred_fallthru
      _
    // Predicated region
    $region34: #{metacritic_forward.1} parent=1 // pred_check
      _
    $region35: #{metacritic_forward.1} parent=1 // pred_check_branch
      %48 = sbr.rel (0) target = $region37
    $region36: #{metacritic_forward.1} parent=1 // pred_region
      %s50 = ssub.s32 16384, 16384
      %51 = vsyncadd [#allocation6], %s50
      %s52 = sshll.u32 [#allocation5], 4
      %s53 = int_to_ptr.vmem [resolvable:$true] %s52
      %58 = dma.hbm_to_vmem [thread:$0]  %s8, 16384, %s53, [#allocation6], 512, 512, 32
    $region37: #{metacritic_forward.1} parent=1 // pred_fallthru
      _
    // Predicated region
    $region38: #{metacritic_forward.1} parent=1 // pred_check
      _
    $region39: #{metacritic_forward.1} parent=1 // pred_check_branch
      %60 = sbr.rel (0) target = $region41
    $region40: #{metacritic_forward.1} parent=1 // pred_region
      _
    $region41: #{metacritic_forward.1} parent=1 // pred_fallthru
      _
    // Predicated region
    $region42: #{metacritic_forward.1} parent=1 // pred_check
      _
    $region43: #{metacritic_forward.1} parent=1 // pred_check_branch
      %62 = sbr.rel (0) target = $region45
    $region44: #{metacritic_forward.1} parent=1 // pred_region
      _
    $region45: #{metacritic_forward.1} parent=1 // pred_fallthru
      _
    // Predicated region
    $region46: #{metacritic_forward.1} parent=1 // pred_check
      _
    $region47: #{metacritic_forward.1} parent=1 // pred_check_branch
      %64 = sbr.rel (0) target = $region49
    $region48: #{metacritic_forward.1} parent=1 // pred_region
      _
    $region49: #{metacritic_forward.1} parent=1 // pred_fallthru
      _
    // Predicated region
    $region50: #{metacritic_forward.1} parent=1 // pred_check
      _
    $region51: #{metacritic_forward.1} parent=1 // pred_check_branch
      %66 = sbr.rel (0) target = $region53
    $region52: #{metacritic_forward.1} parent=1 // pred_region
      %67 = dma.done [#allocation4], 4096
    $region53: #{metacritic_forward.1} parent=1 // pred_fallthru
      _
    // Predicated region
    $region54: #{metacritic_forward.1} parent=1 // pred_check
      _
    $region55: #{metacritic_forward.1} parent=1 // pred_check_branch
      %69 = sbr.rel (0) target = $region57
    $region56: #{metacritic_forward.1} parent=1 // pred_region
      %70 = dma.done [#allocation6], 16384
    $region57: #{metacritic_forward.1} parent=1 // pred_fallthru
      _
    %v72 = vld [vmem:[%s0] sm:$0xff]
    %v73 = vld [vmem:[%s0 + $0x8] sm:$0xff]
    %v74 = vld [vmem:[%s0 + $0x10] sm:$0xff]
    %v75 = vld [vmem:[%s0 + $0x18] sm:$0xff]
    %v76 = vld [vmem:[%s0 + $0x20] sm:$0xff]
    %v77 = vld [vmem:[%s0 + $0x28] sm:$0xff]
    %v78 = vld [vmem:[%s0 + $0x30] sm:$0xff]
    %v79 = vld [vmem:[%s0 + $0x38] sm:$0xff]
    %v80 = vld [vmem:[%s0 + $0x40] sm:$0xff]
    %v81 = vld [vmem:[%s0 + $0x48] sm:$0xff]
    %v82 = vld [vmem:[%s0 + $0x50] sm:$0xff]
    %v83 = vld [vmem:[%s0 + $0x58] sm:$0xff]
    %v84 = vld [vmem:[%s0 + $0x60] sm:$0xff]
    %v85 = vld [vmem:[%s0 + $0x68] sm:$0xff]
    %v86 = vld [vmem:[%s0 + $0x70] sm:$0xff]
    %v87 = vld [vmem:[%s0 + $0x78] sm:$0xff]
    %v88 = vld [vmem:[%s0 + $0x80] sm:$0xff]
    %v89 = vld [vmem:[%s0 + $0x88] sm:$0xff]
    %v90 = vld [vmem:[%s0 + $0x90] sm:$0xff]
    %v91 = vld [vmem:[%s0 + $0x98] sm:$0xff]
    %v92 = vld [vmem:[%s0 + $0xa0] sm:$0xff]
    %v93 = vld [vmem:[%s0 + $0xa8] sm:$0xff]
    %v94 = vld [vmem:[%s0 + $0xb0] sm:$0xff]
    %v95 = vld [vmem:[%s0 + $0xb8] sm:$0xff]
    %v96 = vld [vmem:[%s0 + $0xc0] sm:$0xff]
    %v97 = vld [vmem:[%s0 + $0xc8] sm:$0xff]
    %v98 = vld [vmem:[%s0 + $0xd0] sm:$0xff]
    %v99 = vld [vmem:[%s0 + $0xd8] sm:$0xff]
    %v100 = vld [vmem:[%s0 + $0xe0] sm:$0xff]
    %v101 = vld [vmem:[%s0 + $0xe8] sm:$0xff]
    %v102 = vld [vmem:[%s0 + $0xf0] sm:$0xff]
    %v103 = vld [vmem:[%s0 + $0xf8] sm:$0xff]
    %v104 = vld [vmem:[%s0 + $0x100] sm:$0xff]
    %v105 = vld [vmem:[%s0 + $0x108] sm:$0xff]
    %v106 = vld [vmem:[%s0 + $0x110] sm:$0xff]
    %v107 = vld [vmem:[%s0 + $0x118] sm:$0xff]
    %v108 = vld [vmem:[%s0 + $0x120] sm:$0xff]
    %v109 = vld [vmem:[%s0 + $0x128] sm:$0xff]
    %v110 = vld [vmem:[%s0 + $0x130] sm:$0xff]
    %v111 = vld [vmem:[%s0 + $0x138] sm:$0xff]
    %v112 = vld [vmem:[%s0 + $0x140] sm:$0xff]
    %v113 = vld [vmem:[%s0 + $0x148] sm:$0xff]
    %v114 = vld [vmem:[%s0 + $0x150] sm:$0xff]
    %v115 = vld [vmem:[%s0 + $0x158] sm:$0xff]
    %v116 = vld [vmem:[%s0 + $0x160] sm:$0xff]
    %v117 = vld [vmem:[%s0 + $0x168] sm:$0xff]
    %v118 = vld [vmem:[%s0 + $0x170] sm:$0xff]
    %v119 = vld [vmem:[%s0 + $0x178] sm:$0xff]
    %v120 = vld [vmem:[%s0 + $0x180] sm:$0xff]
    %v121 = vld [vmem:[%s0 + $0x188] sm:$0xff]
    %v122 = vld [vmem:[%s0 + $0x190] sm:$0xff]
    %v123 = vld [vmem:[%s0 + $0x198] sm:$0xff]
    %v124 = vld [vmem:[%s0 + $0x1a0] sm:$0xff]
    %v125 = vld [vmem:[%s0 + $0x1a8] sm:$0xff]
    %v126 = vld [vmem:[%s0 + $0x1b0] sm:$0xff]
    %v127 = vld [vmem:[%s0 + $0x1b8] sm:$0xff]
    %v128 = vld [vmem:[%s0 + $0x1c0] sm:$0xff]
    %v129 = vld [vmem:[%s0 + $0x1c8] sm:$0xff]
    %v130 = vld [vmem:[%s0 + $0x1d0] sm:$0xff]
    %v131 = vld [vmem:[%s0 + $0x1d8] sm:$0xff]
    %v132 = vld [vmem:[%s0 + $0x1e0] sm:$0xff]
    %v133 = vld [vmem:[%s0 + $0x1e8] sm:$0xff]
    %v134 = vld [vmem:[%s0 + $0x1f0] sm:$0xff]
    %v135 = vld [vmem:[%s0 + $0x1f8] sm:$0xff]
    %v136 = vpack.c.bf16 %v74, %v72
    %v137 = vpack.c.bf16 %v75, %v73
    %v138 = vpack.c.bf16 %v78, %v76
    %v139 = vpack.c.bf16 %v79, %v77
    %v140 = vpack.c.bf16 %v82, %v80
    %v141 = vpack.c.bf16 %v83, %v81
    %v142 = vpack.c.bf16 %v86, %v84
    %v143 = vpack.c.bf16 %v87, %v85
    %v144 = vpack.c.bf16 %v90, %v88
    %v145 = vpack.c.bf16 %v91, %v89
    %v146 = vpack.c.bf16 %v94, %v92
    %v147 = vpack.c.bf16 %v95, %v93
    %v148 = vpack.c.bf16 %v98, %v96
    %v149 = vpack.c.bf16 %v99, %v97
    %v150 = vpack.c.bf16 %v102, %v100
    %v151 = vpack.c.bf16 %v103, %v101
    %v152 = vpack.c.bf16 %v106, %v104
    %v153 = vpack.c.bf16 %v107, %v105
    %v154 = vpack.c.bf16 %v110, %v108
    %v155 = vpack.c.bf16 %v111, %v109
    %v156 = vpack.c.bf16 %v114, %v112
    %v157 = vpack.c.bf16 %v115, %v113
    %v158 = vpack.c.bf16 %v118, %v116
    %v159 = vpack.c.bf16 %v119, %v117
    %v160 = vpack.c.bf16 %v122, %v120
    %v161 = vpack.c.bf16 %v123, %v121
    %v162 = vpack.c.bf16 %v126, %v124
    %v163 = vpack.c.bf16 %v127, %v125
    %v164 = vpack.c.bf16 %v130, %v128
    %v165 = vpack.c.bf16 %v131, %v129
    %v166 = vpack.c.bf16 %v134, %v132
    %v167 = vpack.c.bf16 %v135, %v133
    %v168 = vld [vmem:[%s2] sm:$0xff]
    %v169 = vld [vmem:[%s2 + $0x8] sm:$0xff]
    %v170 = vld [vmem:[%s2 + $0x10] sm:$0xff]
    %v171 = vld [vmem:[%s2 + $0x18] sm:$0xff]
    %v172 = vld [vmem:[%s2 + $0x20] sm:$0xff]
    %v173 = vld [vmem:[%s2 + $0x28] sm:$0xff]
    %v174 = vld [vmem:[%s2 + $0x30] sm:$0xff]
    %v175 = vld [vmem:[%s2 + $0x38] sm:$0xff]
    %v176 = vld [vmem:[%s2 + $0x40] sm:$0xff]
    %v177 = vld [vmem:[%s2 + $0x48] sm:$0xff]
    %v178 = vld [vmem:[%s2 + $0x50] sm:$0xff]
    %v179 = vld [vmem:[%s2 + $0x58] sm:$0xff]
    %v180 = vld [vmem:[%s2 + $0x60] sm:$0xff]
    %v181 = vld [vmem:[%s2 + $0x68] sm:$0xff]
    %v182 = vld [vmem:[%s2 + $0x70] sm:$0xff]
    %v183 = vld [vmem:[%s2 + $0x78] sm:$0xff]
    %v184 = vld [vmem:[%s2 + $0x80] sm:$0xff]
    %v185 = vld [vmem:[%s2 + $0x88] sm:$0xff]
    %v186 = vld [vmem:[%s2 + $0x90] sm:$0xff]
    %v187 = vld [vmem:[%s2 + $0x98] sm:$0xff]
    %v188 = vld [vmem:[%s2 + $0xa0] sm:$0xff]
    %v189 = vld [vmem:[%s2 + $0xa8] sm:$0xff]
    %v190 = vld [vmem:[%s2 + $0xb0] sm:$0xff]
    %v191 = vld [vmem:[%s2 + $0xb8] sm:$0xff]
    %v192 = vld [vmem:[%s2 + $0xc0] sm:$0xff]
    %v193 = vld [vmem:[%s2 + $0xc8] sm:$0xff]
    %v194 = vld [vmem:[%s2 + $0xd0] sm:$0xff]
    %v195 = vld [vmem:[%s2 + $0xd8] sm:$0xff]
    %v196 = vld [vmem:[%s2 + $0xe0] sm:$0xff]
    %v197 = vld [vmem:[%s2 + $0xe8] sm:$0xff]
    %v198 = vld [vmem:[%s2 + $0xf0] sm:$0xff]
    %v199 = vld [vmem:[%s2 + $0xf8] sm:$0xff]
    %v200 = vld [vmem:[%s1] sm:$0xff]
    %v201 = vld [vmem:[%s1 + $0x8] sm:$0xff]
    %v202 = vld [vmem:[%s1 + $0x10] sm:$0xff]
    %v203 = vld [vmem:[%s1 + $0x18] sm:$0xff]
    %v204 = vld [vmem:[%s1 + $0x20] sm:$0xff]
    %v205 = vld [vmem:[%s1 + $0x28] sm:$0xff]
    %v206 = vld [vmem:[%s1 + $0x30] sm:$0xff]
    %v207 = vld [vmem:[%s1 + $0x38] sm:$0xff]
    %v208 = vld [vmem:[%s1 + $0x40] sm:$0xff]
    %v209 = vld [vmem:[%s1 + $0x48] sm:$0xff]
    %v210 = vld [vmem:[%s1 + $0x50] sm:$0xff]
    %v211 = vld [vmem:[%s1 + $0x58] sm:$0xff]
    %v212 = vld [vmem:[%s1 + $0x60] sm:$0xff]
    %v213 = vld [vmem:[%s1 + $0x68] sm:$0xff]
    %v214 = vld [vmem:[%s1 + $0x70] sm:$0xff]
    %v215 = vld [vmem:[%s1 + $0x78] sm:$0xff]
    %v216 = vld [vmem:[%s1 + $0x80] sm:$0xff]
    %v217 = vld [vmem:[%s1 + $0x88] sm:$0xff]
    %v218 = vld [vmem:[%s1 + $0x90] sm:$0xff]
    %v219 = vld [vmem:[%s1 + $0x98] sm:$0xff]
    %v220 = vld [vmem:[%s1 + $0xa0] sm:$0xff]
    %v221 = vld [vmem:[%s1 + $0xa8] sm:$0xff]
    %v222 = vld [vmem:[%s1 + $0xb0] sm:$0xff]
    %v223 = vld [vmem:[%s1 + $0xb8] sm:$0xff]
    %v224 = vld [vmem:[%s1 + $0xc0] sm:$0xff]
    %v225 = vld [vmem:[%s1 + $0xc8] sm:$0xff]
    %v226 = vld [vmem:[%s1 + $0xd0] sm:$0xff]
    %v227 = vld [vmem:[%s1 + $0xd8] sm:$0xff]
    %v228 = vld [vmem:[%s1 + $0xe0] sm:$0xff]
    %v229 = vld [vmem:[%s1 + $0xe8] sm:$0xff]
    %v230 = vld [vmem:[%s1 + $0xf0] sm:$0xff]
    %v231 = vld [vmem:[%s1 + $0xf8] sm:$0xff]
    %v232 = vld [vmem:[%s3] sm:$0xf]
    %234 = vset.pattern.permute.xlu0 0
    %235 = vperm.xlu0 %234, %v200
    %v236 = vpop.permute.xlu0 %235
    %239 = vset.pattern.permute.xlu0 0
    %240 = vperm.xlu0 %239, %v201
    %v241 = vpop.permute.xlu0 %240
    %244 = vset.pattern.permute.xlu0 0
    %245 = vperm.xlu0 %244, %v202
    %v246 = vpop.permute.xlu0 %245
    %249 = vset.pattern.permute.xlu0 0
    %250 = vperm.xlu0 %249, %v203
    %v251 = vpop.permute.xlu0 %250
    %254 = vset.pattern.permute.xlu0 0
    %255 = vperm.xlu0 %254, %v204
    %v256 = vpop.permute.xlu0 %255
    %259 = vset.pattern.permute.xlu0 0
    %260 = vperm.xlu0 %259, %v205
    %v261 = vpop.permute.xlu0 %260
    %264 = vset.pattern.permute.xlu0 0
    %265 = vperm.xlu0 %264, %v206
    %v266 = vpop.permute.xlu0 %265
    %269 = vset.pattern.permute.xlu0 0
    %270 = vperm.xlu0 %269, %v207
    %v271 = vpop.permute.xlu0 %270
    %274 = vset.pattern.permute.xlu0 0
    %275 = vperm.xlu0 %274, %v208
    %v276 = vpop.permute.xlu0 %275
    %279 = vset.pattern.permute.xlu0 0
    %280 = vperm.xlu0 %279, %v209
    %v281 = vpop.permute.xlu0 %280
    %284 = vset.pattern.permute.xlu0 0
    %285 = vperm.xlu0 %284, %v210
    %v286 = vpop.permute.xlu0 %285
    %289 = vset.pattern.permute.xlu0 0
    %290 = vperm.xlu0 %289, %v211
    %v291 = vpop.permute.xlu0 %290
    %294 = vset.pattern.permute.xlu0 0
    %295 = vperm.xlu0 %294, %v212
    %v296 = vpop.permute.xlu0 %295
    %299 = vset.pattern.permute.xlu0 0
    %300 = vperm.xlu0 %299, %v213
    %v301 = vpop.permute.xlu0 %300
    %304 = vset.pattern.permute.xlu0 0
    %305 = vperm.xlu0 %304, %v214
    %v306 = vpop.permute.xlu0 %305
    %309 = vset.pattern.permute.xlu0 0
    %310 = vperm.xlu0 %309, %v215
    %v311 = vpop.permute.xlu0 %310
    %314 = vset.pattern.permute.xlu0 0
    %315 = vperm.xlu0 %314, %v216
    %v316 = vpop.permute.xlu0 %315
    %319 = vset.pattern.permute.xlu0 0
    %320 = vperm.xlu0 %319, %v217
    %v321 = vpop.permute.xlu0 %320
    %324 = vset.pattern.permute.xlu0 0
    %325 = vperm.xlu0 %324, %v218
    %v326 = vpop.permute.xlu0 %325
    %329 = vset.pattern.permute.xlu0 0
    %330 = vperm.xlu0 %329, %v219
    %v331 = vpop.permute.xlu0 %330
    %334 = vset.pattern.permute.xlu0 0
    %335 = vperm.xlu0 %334, %v220
    %v336 = vpop.permute.xlu0 %335
    %339 = vset.pattern.permute.xlu0 0
    %340 = vperm.xlu0 %339, %v221
    %v341 = vpop.permute.xlu0 %340
    %344 = vset.pattern.permute.xlu0 0
    %345 = vperm.xlu0 %344, %v222
    %v346 = vpop.permute.xlu0 %345
    %349 = vset.pattern.permute.xlu0 0
    %350 = vperm.xlu0 %349, %v223
    %v351 = vpop.permute.xlu0 %350
    %354 = vset.pattern.permute.xlu0 0
    %355 = vperm.xlu0 %354, %v224
    %v356 = vpop.permute.xlu0 %355
    %359 = vset.pattern.permute.xlu0 0
    %360 = vperm.xlu0 %359, %v225
    %v361 = vpop.permute.xlu0 %360
    %364 = vset.pattern.permute.xlu0 0
    %365 = vperm.xlu0 %364, %v226
    %v366 = vpop.permute.xlu0 %365
    %369 = vset.pattern.permute.xlu0 0
    %370 = vperm.xlu0 %369, %v227
    %v371 = vpop.permute.xlu0 %370
    %374 = vset.pattern.permute.xlu0 0
    %375 = vperm.xlu0 %374, %v228
    %v376 = vpop.permute.xlu0 %375
    %379 = vset.pattern.permute.xlu0 0
    %380 = vperm.xlu0 %379, %v229
    %v381 = vpop.permute.xlu0 %380
    %384 = vset.pattern.permute.xlu0 0
    %385 = vperm.xlu0 %384, %v230
    %v386 = vpop.permute.xlu0 %385
    %389 = vset.pattern.permute.xlu0 0
    %390 = vperm.xlu0 %389, %v231
    %v391 = vpop.permute.xlu0 %390
    %v394 = vlaneseq
    %v395 = vshrl.u32 %v394, 7
    %v396 = vsub.s32 0, %v395
    %v397 = vrot.slane %v232, %v396
    %v398 = vlaneseq
    %v399 = vshrl.u32 %v398, 7
    %v400 = vsub.s32 2, %v399
    %v401 = vrot.slane %v232, %v400
    %v404 = vlaneseq
    %v405 = vshrl.u32 %v404, 7
    %v406 = vsub.s32 0, %v405
    %v407 = vrot.slane %v397, %v406
    %v408 = vlaneseq
    %v409 = vshrl.u32 %v408, 7
    %v410 = vsub.s32 0, %v409
    %v411 = vrot.slane %v401, %v410
    %v412 = vmul.f32 %v236, %v407
    %v413 = vmul.f32 %v236, %v411
    %v414 = vmul.f32 %v241, %v407
    %v415 = vmul.f32 %v241, %v411
    %v416 = vmul.f32 %v246, %v407
    %v417 = vmul.f32 %v246, %v411
    %v418 = vmul.f32 %v251, %v407
    %v419 = vmul.f32 %v251, %v411
    %v420 = vmul.f32 %v256, %v407
    %v421 = vmul.f32 %v256, %v411
    %v422 = vmul.f32 %v261, %v407
    %v423 = vmul.f32 %v261, %v411
    %v424 = vmul.f32 %v266, %v407
    %v425 = vmul.f32 %v266, %v411
    %v426 = vmul.f32 %v271, %v407
    %v427 = vmul.f32 %v271, %v411
    %v428 = vmul.f32 %v276, %v407
    %v429 = vmul.f32 %v276, %v411
    %v430 = vmul.f32 %v281, %v407
    %v431 = vmul.f32 %v281, %v411
    %v432 = vmul.f32 %v286, %v407
    %v433 = vmul.f32 %v286, %v411
    %v434 = vmul.f32 %v291, %v407
    %v435 = vmul.f32 %v291, %v411
    %v436 = vmul.f32 %v296, %v407
    %v437 = vmul.f32 %v296, %v411
    %v438 = vmul.f32 %v301, %v407
    %v439 = vmul.f32 %v301, %v411
    %v440 = vmul.f32 %v306, %v407
    %v441 = vmul.f32 %v306, %v411
    %v442 = vmul.f32 %v311, %v407
    %v443 = vmul.f32 %v311, %v411
    %v444 = vmul.f32 %v316, %v407
    %v445 = vmul.f32 %v316, %v411
    %v446 = vmul.f32 %v321, %v407
    %v447 = vmul.f32 %v321, %v411
    %v448 = vmul.f32 %v326, %v407
    %v449 = vmul.f32 %v326, %v411
    %v450 = vmul.f32 %v331, %v407
    %v451 = vmul.f32 %v331, %v411
    %v452 = vmul.f32 %v336, %v407
    %v453 = vmul.f32 %v336, %v411
    %v454 = vmul.f32 %v341, %v407
    %v455 = vmul.f32 %v341, %v411
    %v456 = vmul.f32 %v346, %v407
    %v457 = vmul.f32 %v346, %v411
    %v458 = vmul.f32 %v351, %v407
    %v459 = vmul.f32 %v351, %v411
    %v460 = vmul.f32 %v356, %v407
    %v461 = vmul.f32 %v356, %v411
    %v462 = vmul.f32 %v361, %v407
    %v463 = vmul.f32 %v361, %v411
    %v464 = vmul.f32 %v366, %v407
    %v465 = vmul.f32 %v366, %v411
    %v466 = vmul.f32 %v371, %v407
    %v467 = vmul.f32 %v371, %v411
    %v468 = vmul.f32 %v376, %v407
    %v469 = vmul.f32 %v376, %v411
    %v470 = vmul.f32 %v381, %v407
    %v471 = vmul.f32 %v381, %v411
    %v472 = vmul.f32 %v386, %v407
    %v473 = vmul.f32 %v386, %v411
    %v474 = vmul.f32 %v391, %v407
    %v475 = vmul.f32 %v391, %v411
    %v508 = vunpack.c.l.b16 %v168
    %v509 = vunpack.c.h.b16 %v168
    %v510 = vunpack.c.l.b16 %v169
    %v511 = vunpack.c.h.b16 %v169
    %v512 = vunpack.c.l.b16 %v170
    %v513 = vunpack.c.h.b16 %v170
    %v514 = vunpack.c.l.b16 %v171
    %v515 = vunpack.c.h.b16 %v171
    %v516 = vunpack.c.l.b16 %v172
    %v517 = vunpack.c.h.b16 %v172
    %v518 = vunpack.c.l.b16 %v173
    %v519 = vunpack.c.h.b16 %v173
    %v520 = vunpack.c.l.b16 %v174
    %v521 = vunpack.c.h.b16 %v174
    %v522 = vunpack.c.l.b16 %v175
    %v523 = vunpack.c.h.b16 %v175
    %v524 = vunpack.c.l.b16 %v176
    %v525 = vunpack.c.h.b16 %v176
    %v526 = vunpack.c.l.b16 %v177
    %v527 = vunpack.c.h.b16 %v177
    %v528 = vunpack.c.l.b16 %v178
    %v529 = vunpack.c.h.b16 %v178
    %v530 = vunpack.c.l.b16 %v179
    %v531 = vunpack.c.h.b16 %v179
    %v532 = vunpack.c.l.b16 %v180
    %v533 = vunpack.c.h.b16 %v180
    %v534 = vunpack.c.l.b16 %v181
    %v535 = vunpack.c.h.b16 %v181
    %v536 = vunpack.c.l.b16 %v182
    %v537 = vunpack.c.h.b16 %v182
    %v538 = vunpack.c.l.b16 %v183
    %v539 = vunpack.c.h.b16 %v183
    %v540 = vunpack.c.l.b16 %v184
    %v541 = vunpack.c.h.b16 %v184
    %v542 = vunpack.c.l.b16 %v185
    %v543 = vunpack.c.h.b16 %v185
    %v544 = vunpack.c.l.b16 %v186
    %v545 = vunpack.c.h.b16 %v186
    %v546 = vunpack.c.l.b16 %v187
    %v547 = vunpack.c.h.b16 %v187
    %v548 = vunpack.c.l.b16 %v188
    %v549 = vunpack.c.h.b16 %v188
    %v550 = vunpack.c.l.b16 %v189
    %v551 = vunpack.c.h.b16 %v189
    %v552 = vunpack.c.l.b16 %v190
    %v553 = vunpack.c.h.b16 %v190
    %v554 = vunpack.c.l.b16 %v191
    %v555 = vunpack.c.h.b16 %v191
    %v556 = vunpack.c.l.b16 %v192
    %v557 = vunpack.c.h.b16 %v192
    %v558 = vunpack.c.l.b16 %v193
    %v559 = vunpack.c.h.b16 %v193
    %v560 = vunpack.c.l.b16 %v194
    %v561 = vunpack.c.h.b16 %v194
    %v562 = vunpack.c.l.b16 %v195
    %v563 = vunpack.c.h.b16 %v195
    %v564 = vunpack.c.l.b16 %v196
    %v565 = vunpack.c.h.b16 %v196
    %v566 = vunpack.c.l.b16 %v197
    %v567 = vunpack.c.h.b16 %v197
    %v568 = vunpack.c.l.b16 %v198
    %v569 = vunpack.c.h.b16 %v198
    %v570 = vunpack.c.l.b16 %v199
    %v571 = vunpack.c.h.b16 %v199
    %v572 = vpack.c.b16 %v510, %v508
    %v573 = vpack.c.b16 %v511, %v509
    %v574 = vpack.c.b16 %v514, %v512
    %v575 = vpack.c.b16 %v515, %v513
    %v576 = vpack.c.b16 %v518, %v516
    %v577 = vpack.c.b16 %v519, %v517
    %v578 = vpack.c.b16 %v522, %v520
    %v579 = vpack.c.b16 %v523, %v521
    %v580 = vpack.c.b16 %v526, %v524
    %v581 = vpack.c.b16 %v527, %v525
    %v582 = vpack.c.b16 %v530, %v528
    %v583 = vpack.c.b16 %v531, %v529
    %v584 = vpack.c.b16 %v534, %v532
    %v585 = vpack.c.b16 %v535, %v533
    %v586 = vpack.c.b16 %v538, %v536
    %v587 = vpack.c.b16 %v539, %v537
    %v588 = vpack.c.b16 %v542, %v540
    %v589 = vpack.c.b16 %v543, %v541
    %v590 = vpack.c.b16 %v546, %v544
    %v591 = vpack.c.b16 %v547, %v545
    %v592 = vpack.c.b16 %v550, %v548
    %v593 = vpack.c.b16 %v551, %v549
    %v594 = vpack.c.b16 %v554, %v552
    %v595 = vpack.c.b16 %v555, %v553
    %v596 = vpack.c.b16 %v558, %v556
    %v597 = vpack.c.b16 %v559, %v557
    %v598 = vpack.c.b16 %v562, %v560
    %v599 = vpack.c.b16 %v563, %v561
    %v600 = vpack.c.b16 %v566, %v564
    %v601 = vpack.c.b16 %v567, %v565
    %v602 = vpack.c.b16 %v570, %v568
    %v603 = vpack.c.b16 %v571, %v569
    %636 = vmatprep.subr.bf16.mxu0 %v573
    %637 = vmatpush1.bf16.msra.mxu0 %v572
    %638 = vmatprep.subr.bf16.mxu0 %v575
    %639 = vmatpush1.bf16.msra.mxu0 %v574
    %640 = vmatprep.subr.bf16.mxu0 %v577
    %641 = vmatpush1.bf16.msra.mxu0 %v576
    %642 = vmatprep.subr.bf16.mxu0 %v579
    %643 = vmatpush1.bf16.msra.mxu0 %v578
    %644 = vmatprep.subr.bf16.mxu0 %v581
    %645 = vmatpush1.bf16.msra.mxu0 %v580
    %646 = vmatprep.subr.bf16.mxu0 %v583
    %647 = vmatpush1.bf16.msra.mxu0 %v582
    %648 = vmatprep.subr.bf16.mxu0 %v585
    %649 = vmatpush1.bf16.msra.mxu0 %v584
    %650 = vmatprep.subr.bf16.mxu0 %v587
    %651 = vmatpush1.bf16.msra.mxu0 %v586
    %652 = vmatprep.subr.bf16.mxu0 %v589
    %653 = vmatpush1.bf16.msra.mxu0 %v588
    %654 = vmatprep.subr.bf16.mxu0 %v591
    %655 = vmatpush1.bf16.msra.mxu0 %v590
    %656 = vmatprep.subr.bf16.mxu0 %v593
    %657 = vmatpush1.bf16.msra.mxu0 %v592
    %658 = vmatprep.subr.bf16.mxu0 %v595
    %659 = vmatpush1.bf16.msra.mxu0 %v594
    %660 = vmatprep.subr.bf16.mxu0 %v597
    %661 = vmatpush1.bf16.msra.mxu0 %v596
    %662 = vmatprep.subr.bf16.mxu0 %v599
    %663 = vmatpush1.bf16.msra.mxu0 %v598
    %664 = vmatprep.subr.bf16.mxu0 %v601
    %665 = vmatpush1.bf16.msra.mxu0 %v600
    %666 = vmatprep.subr.bf16.mxu0 %v603
    %667 = vmatpush1.bf16.msra.mxu0 %v602
    %668 = vmatprep.mubr.bf16.mxu0 %v137
    %669 = vmatmul.mubr.bf16.gmra.mrb[0].mxu0 %v136
    %v670 = vpop.f32.mrb[0].mxu0
    %v671 = vadd.f32 %v412, %v670
    %v672 = vpop.f32.mrb[0].mxu0
    %v673 = vadd.f32 %v413, %v672
    %v674 = vpop.f32.mrb[0].mxu0
    %v675 = vadd.f32 %v414, %v674
    %v676 = vpop.f32.mrb[0].mxu0
    %v677 = vadd.f32 %v415, %v676
    %678 = vmatprep.mubr.bf16.mxu0 %v139
    %679 = vmatmul.mubr.bf16.gmra.mrb[0].mxu0 %v138
    %v680 = vpop.f32.mrb[0].mxu0
    %v681 = vadd.f32 %v416, %v680
    %v682 = vpop.f32.mrb[0].mxu0
    %v683 = vadd.f32 %v417, %v682
    %v684 = vpop.f32.mrb[0].mxu0
    %v685 = vadd.f32 %v418, %v684
    %v686 = vpop.f32.mrb[0].mxu0
    %v687 = vadd.f32 %v419, %v686
    %688 = vmatprep.mubr.bf16.mxu0 %v141
    %689 = vmatmul.mubr.bf16.gmra.mrb[0].mxu0 %v140
    %v690 = vpop.f32.mrb[0].mxu0
    %v691 = vadd.f32 %v420, %v690
    %v692 = vpop.f32.mrb[0].mxu0
    %v693 = vadd.f32 %v421, %v692
    %v694 = vpop.f32.mrb[0].mxu0
    %v695 = vadd.f32 %v422, %v694
    %v696 = vpop.f32.mrb[0].mxu0
    %v697 = vadd.f32 %v423, %v696
    %698 = vmatprep.mubr.bf16.mxu0 %v143
    %699 = vmatmul.mubr.bf16.gmra.mrb[0].mxu0 %v142
    %v700 = vpop.f32.mrb[0].mxu0
    %v701 = vadd.f32 %v424, %v700
    %v702 = vpop.f32.mrb[0].mxu0
    %v703 = vadd.f32 %v425, %v702
    %v704 = vpop.f32.mrb[0].mxu0
    %v705 = vadd.f32 %v426, %v704
    %v706 = vpop.f32.mrb[0].mxu0
    %v707 = vadd.f32 %v427, %v706
    %708 = vmatprep.mubr.bf16.mxu0 %v145
    %709 = vmatmul.mubr.bf16.gmra.mrb[0].mxu0 %v144
    %v710 = vpop.f32.mrb[0].mxu0
    %v711 = vadd.f32 %v428, %v710
    %v712 = vpop.f32.mrb[0].mxu0
    %v713 = vadd.f32 %v429, %v712
    %v714 = vpop.f32.mrb[0].mxu0
    %v715 = vadd.f32 %v430, %v714
    %v716 = vpop.f32.mrb[0].mxu0
    %v717 = vadd.f32 %v431, %v716
    %718 = vmatprep.mubr.bf16.mxu0 %v147
    %719 = vmatmul.mubr.bf16.gmra.mrb[0].mxu0 %v146
    %v720 = vpop.f32.mrb[0].mxu0
    %v721 = vadd.f32 %v432, %v720
    %v722 = vpop.f32.mrb[0].mxu0
    %v723 = vadd.f32 %v433, %v722
    %v724 = vpop.f32.mrb[0].mxu0
    %v725 = vadd.f32 %v434, %v724
    %v726 = vpop.f32.mrb[0].mxu0
    %v727 = vadd.f32 %v435, %v726
    %728 = vmatprep.mubr.bf16.mxu0 %v149
    %729 = vmatmul.mubr.bf16.gmra.mrb[0].mxu0 %v148
    %v730 = vpop.f32.mrb[0].mxu0
    %v731 = vadd.f32 %v436, %v730
    %v732 = vpop.f32.mrb[0].mxu0
    %v733 = vadd.f32 %v437, %v732
    %v734 = vpop.f32.mrb[0].mxu0
    %v735 = vadd.f32 %v438, %v734
    %v736 = vpop.f32.mrb[0].mxu0
    %v737 = vadd.f32 %v439, %v736
    %738 = vmatprep.mubr.bf16.mxu0 %v151
    %739 = vmatmul.mubr.bf16.gmra.mrb[0].mxu0 %v150
    %v740 = vpop.f32.mrb[0].mxu0
    %v741 = vadd.f32 %v440, %v740
    %v742 = vpop.f32.mrb[0].mxu0
    %v743 = vadd.f32 %v441, %v742
    %v744 = vpop.f32.mrb[0].mxu0
    %v745 = vadd.f32 %v442, %v744
    %v746 = vpop.f32.mrb[0].mxu0
    %v747 = vadd.f32 %v443, %v746
    %748 = vmatprep.mubr.bf16.mxu0 %v153
    %749 = vmatmul.mubr.bf16.gmra.mrb[0].mxu0 %v152
    %v750 = vpop.f32.mrb[0].mxu0
    %v751 = vadd.f32 %v444, %v750
    %v752 = vpop.f32.mrb[0].mxu0
    %v753 = vadd.f32 %v445, %v752
    %v754 = vpop.f32.mrb[0].mxu0
    %v755 = vadd.f32 %v446, %v754
    %v756 = vpop.f32.mrb[0].mxu0
    %v757 = vadd.f32 %v447, %v756
    %758 = vmatprep.mubr.bf16.mxu0 %v155
    %759 = vmatmul.mubr.bf16.gmra.mrb[0].mxu0 %v154
    %v760 = vpop.f32.mrb[0].mxu0
    %v761 = vadd.f32 %v448, %v760
    %v762 = vpop.f32.mrb[0].mxu0
    %v763 = vadd.f32 %v449, %v762
    %v764 = vpop.f32.mrb[0].mxu0
    %v765 = vadd.f32 %v450, %v764
    %v766 = vpop.f32.mrb[0].mxu0
    %v767 = vadd.f32 %v451, %v766
    %768 = vmatprep.mubr.bf16.mxu0 %v157
    %769 = vmatmul.mubr.bf16.gmra.mrb[0].mxu0 %v156
    %v770 = vpop.f32.mrb[0].mxu0
    %v771 = vadd.f32 %v452, %v770
    %v772 = vpop.f32.mrb[0].mxu0
    %v773 = vadd.f32 %v453, %v772
    %v774 = vpop.f32.mrb[0].mxu0
    %v775 = vadd.f32 %v454, %v774
    %v776 = vpop.f32.mrb[0].mxu0
    %v777 = vadd.f32 %v455, %v776
    %778 = vmatprep.mubr.bf16.mxu0 %v159
    %779 = vmatmul.mubr.bf16.gmra.mrb[0].mxu0 %v158
    %v780 = vpop.f32.mrb[0].mxu0
    %v781 = vadd.f32 %v456, %v780
    %v782 = vpop.f32.mrb[0].mxu0
    %v783 = vadd.f32 %v457, %v782
    %v784 = vpop.f32.mrb[0].mxu0
    %v785 = vadd.f32 %v458, %v784
    %v786 = vpop.f32.mrb[0].mxu0
    %v787 = vadd.f32 %v459, %v786
    %788 = vmatprep.mubr.bf16.mxu0 %v161
    %789 = vmatmul.mubr.bf16.gmra.mrb[0].mxu0 %v160
    %v790 = vpop.f32.mrb[0].mxu0
    %v791 = vadd.f32 %v460, %v790
    %v792 = vpop.f32.mrb[0].mxu0
    %v793 = vadd.f32 %v461, %v792
    %v794 = vpop.f32.mrb[0].mxu0
    %v795 = vadd.f32 %v462, %v794
    %v796 = vpop.f32.mrb[0].mxu0
    %v797 = vadd.f32 %v463, %v796
    %798 = vmatprep.mubr.bf16.mxu0 %v163
    %799 = vmatmul.mubr.bf16.gmra.mrb[0].mxu0 %v162
    %v800 = vpop.f32.mrb[0].mxu0
    %v801 = vadd.f32 %v464, %v800
    %v802 = vpop.f32.mrb[0].mxu0
    %v803 = vadd.f32 %v465, %v802
    %v804 = vpop.f32.mrb[0].mxu0
    %v805 = vadd.f32 %v466, %v804
    %v806 = vpop.f32.mrb[0].mxu0
    %v807 = vadd.f32 %v467, %v806
    %808 = vmatprep.mubr.bf16.mxu0 %v165
    %809 = vmatmul.mubr.bf16.gmra.mrb[0].mxu0 %v164
    %v810 = vpop.f32.mrb[0].mxu0
    %v811 = vadd.f32 %v468, %v810
    %v812 = vpop.f32.mrb[0].mxu0
    %v813 = vadd.f32 %v469, %v812
    %v814 = vpop.f32.mrb[0].mxu0
    %v815 = vadd.f32 %v470, %v814
    %v816 = vpop.f32.mrb[0].mxu0
    %v817 = vadd.f32 %v471, %v816
    %818 = vmatprep.mubr.bf16.mxu0 %v167
    %819 = vmatmul.mubr.bf16.gmra.mrb[0].mxu0 %v166
    %v820 = vpop.f32.mrb[0].mxu0
    %v821 = vadd.f32 %v472, %v820
    %v822 = vpop.f32.mrb[0].mxu0
    %v823 = vadd.f32 %v473, %v822
    %v824 = vpop.f32.mrb[0].mxu0
    %v825 = vadd.f32 %v474, %v824
    %v826 = vpop.f32.mrb[0].mxu0
    %v827 = vadd.f32 %v475, %v826
    %828 = vdwg.mxu0
    %829 = vset.pattern.permute.xlu0 1
    %830 = vperm.xlu0 %829, %v200
    %v831 = vpop.permute.xlu0 %830
    %833 = vset.pattern.permute.xlu0 1
    %834 = vperm.xlu0 %833, %v201
    %v835 = vpop.permute.xlu0 %834
    %837 = vset.pattern.permute.xlu0 1
    %838 = vperm.xlu0 %837, %v202
    %v839 = vpop.permute.xlu0 %838
    %841 = vset.pattern.permute.xlu0 1
    %842 = vperm.xlu0 %841, %v203
    %v843 = vpop.permute.xlu0 %842
    %845 = vset.pattern.permute.xlu0 1
    %846 = vperm.xlu0 %845, %v204
    %v847 = vpop.permute.xlu0 %846
    %849 = vset.pattern.permute.xlu0 1
    %850 = vperm.xlu0 %849, %v205
    %v851 = vpop.permute.xlu0 %850
    %853 = vset.pattern.permute.xlu0 1
    %854 = vperm.xlu0 %853, %v206
    %v855 = vpop.permute.xlu0 %854
    %857 = vset.pattern.permute.xlu0 1
    %858 = vperm.xlu0 %857, %v207
    %v859 = vpop.permute.xlu0 %858
    %861 = vset.pattern.permute.xlu0 1
    %862 = vperm.xlu0 %861, %v208
    %v863 = vpop.permute.xlu0 %862
    %865 = vset.pattern.permute.xlu0 1
    %866 = vperm.xlu0 %865, %v209
    %v867 = vpop.permute.xlu0 %866
    %869 = vset.pattern.permute.xlu0 1
    %870 = vperm.xlu0 %869, %v210
    %v871 = vpop.permute.xlu0 %870
    %873 = vset.pattern.permute.xlu0 1
    %874 = vperm.xlu0 %873, %v211
    %v875 = vpop.permute.xlu0 %874
    %877 = vset.pattern.permute.xlu0 1
    %878 = vperm.xlu0 %877, %v212
    %v879 = vpop.permute.xlu0 %878
    %881 = vset.pattern.permute.xlu0 1
    %882 = vperm.xlu0 %881, %v213
    %v883 = vpop.permute.xlu0 %882
    %885 = vset.pattern.permute.xlu0 1
    %886 = vperm.xlu0 %885, %v214
    %v887 = vpop.permute.xlu0 %886
    %889 = vset.pattern.permute.xlu0 1
    %890 = vperm.xlu0 %889, %v215
    %v891 = vpop.permute.xlu0 %890
    %893 = vset.pattern.permute.xlu0 1
    %894 = vperm.xlu0 %893, %v216
    %v895 = vpop.permute.xlu0 %894
    %897 = vset.pattern.permute.xlu0 1
    %898 = vperm.xlu0 %897, %v217
    %v899 = vpop.permute.xlu0 %898
    %901 = vset.pattern.permute.xlu0 1
    %902 = vperm.xlu0 %901, %v218
    %v903 = vpop.permute.xlu0 %902
    %905 = vset.pattern.permute.xlu0 1
    %906 = vperm.xlu0 %905, %v219
    %v907 = vpop.permute.xlu0 %906
    %909 = vset.pattern.permute.xlu0 1
    %910 = vperm.xlu0 %909, %v220
    %v911 = vpop.permute.xlu0 %910
    %913 = vset.pattern.permute.xlu0 1
    %914 = vperm.xlu0 %913, %v221
    %v915 = vpop.permute.xlu0 %914
    %917 = vset.pattern.permute.xlu0 1
    %918 = vperm.xlu0 %917, %v222
    %v919 = vpop.permute.xlu0 %918
    %921 = vset.pattern.permute.xlu0 1
    %922 = vperm.xlu0 %921, %v223
    %v923 = vpop.permute.xlu0 %922
    %925 = vset.pattern.permute.xlu0 1
    %926 = vperm.xlu0 %925, %v224
    %v927 = vpop.permute.xlu0 %926
    %929 = vset.pattern.permute.xlu0 1
    %930 = vperm.xlu0 %929, %v225
    %v931 = vpop.permute.xlu0 %930
    %933 = vset.pattern.permute.xlu0 1
    %934 = vperm.xlu0 %933, %v226
    %v935 = vpop.permute.xlu0 %934
    %937 = vset.pattern.permute.xlu0 1
    %938 = vperm.xlu0 %937, %v227
    %v939 = vpop.permute.xlu0 %938
    %941 = vset.pattern.permute.xlu0 1
    %942 = vperm.xlu0 %941, %v228
    %v943 = vpop.permute.xlu0 %942
    %945 = vset.pattern.permute.xlu0 1
    %946 = vperm.xlu0 %945, %v229
    %v947 = vpop.permute.xlu0 %946
    %949 = vset.pattern.permute.xlu0 1
    %950 = vperm.xlu0 %949, %v230
    %v951 = vpop.permute.xlu0 %950
    %953 = vset.pattern.permute.xlu0 1
    %954 = vperm.xlu0 %953, %v231
    %v955 = vpop.permute.xlu0 %954
    %v957 = vlaneseq
    %v958 = vshrl.u32 %v957, 7
    %v959 = vsub.s32 1, %v958
    %v960 = vrot.slane %v232, %v959
    %v961 = vlaneseq
    %v962 = vshrl.u32 %v961, 7
    %v963 = vsub.s32 3, %v962
    %v964 = vrot.slane %v232, %v963
    %v967 = vlaneseq
    %v968 = vshrl.u32 %v967, 7
    %v969 = vsub.s32 1, %v968
    %v970 = vrot.slane %v960, %v969
    %v971 = vlaneseq
    %v972 = vshrl.u32 %v971, 7
    %v973 = vsub.s32 1, %v972
    %v974 = vrot.slane %v964, %v973
    %v975 = vmul.f32 %v831, %v970
    %v976 = vmul.f32 %v831, %v974
    %v977 = vmul.f32 %v835, %v970
    %v978 = vmul.f32 %v835, %v974
    %v979 = vmul.f32 %v839, %v970
    %v980 = vmul.f32 %v839, %v974
    %v981 = vmul.f32 %v843, %v970
    %v982 = vmul.f32 %v843, %v974
    %v983 = vmul.f32 %v847, %v970
    %v984 = vmul.f32 %v847, %v974
    %v985 = vmul.f32 %v851, %v970
    %v986 = vmul.f32 %v851, %v974
    %v987 = vmul.f32 %v855, %v970
    %v988 = vmul.f32 %v855, %v974
    %v989 = vmul.f32 %v859, %v970
    %v990 = vmul.f32 %v859, %v974
    %v991 = vmul.f32 %v863, %v970
    %v992 = vmul.f32 %v863, %v974
    %v993 = vmul.f32 %v867, %v970
    %v994 = vmul.f32 %v867, %v974
    %v995 = vmul.f32 %v871, %v970
    %v996 = vmul.f32 %v871, %v974
    %v997 = vmul.f32 %v875, %v970
    %v998 = vmul.f32 %v875, %v974
    %v999 = vmul.f32 %v879, %v970
    %v1000 = vmul.f32 %v879, %v974
    %v1001 = vmul.f32 %v883, %v970
    %v1002 = vmul.f32 %v883, %v974
    %v1003 = vmul.f32 %v887, %v970
    %v1004 = vmul.f32 %v887, %v974
    %v1005 = vmul.f32 %v891, %v970
    %v1006 = vmul.f32 %v891, %v974
    %v1007 = vmul.f32 %v895, %v970
    %v1008 = vmul.f32 %v895, %v974
    %v1009 = vmul.f32 %v899, %v970
    %v1010 = vmul.f32 %v899, %v974
    %v1011 = vmul.f32 %v903, %v970
    %v1012 = vmul.f32 %v903, %v974
    %v1013 = vmul.f32 %v907, %v970
    %v1014 = vmul.f32 %v907, %v974
    %v1015 = vmul.f32 %v911, %v970
    %v1016 = vmul.f32 %v911, %v974
    %v1017 = vmul.f32 %v915, %v970
    %v1018 = vmul.f32 %v915, %v974
    %v1019 = vmul.f32 %v919, %v970
    %v1020 = vmul.f32 %v919, %v974
    %v1021 = vmul.f32 %v923, %v970
    %v1022 = vmul.f32 %v923, %v974
    %v1023 = vmul.f32 %v927, %v970
    %v1024 = vmul.f32 %v927, %v974
    %v1025 = vmul.f32 %v931, %v970
    %v1026 = vmul.f32 %v931, %v974
    %v1027 = vmul.f32 %v935, %v970
    %v1028 = vmul.f32 %v935, %v974
    %v1029 = vmul.f32 %v939, %v970
    %v1030 = vmul.f32 %v939, %v974
    %v1031 = vmul.f32 %v943, %v970
    %v1032 = vmul.f32 %v943, %v974
    %v1033 = vmul.f32 %v947, %v970
    %v1034 = vmul.f32 %v947, %v974
    %v1035 = vmul.f32 %v951, %v970
    %v1036 = vmul.f32 %v951, %v974
    %v1037 = vmul.f32 %v955, %v970
    %v1038 = vmul.f32 %v955, %v974
    %v1039 = vadd.f32 %v671, %v975
    %v1040 = vadd.f32 %v673, %v976
    %v1041 = vadd.f32 %v675, %v977
    %v1042 = vadd.f32 %v677, %v978
    %v1043 = vadd.f32 %v681, %v979
    %v1044 = vadd.f32 %v683, %v980
    %v1045 = vadd.f32 %v685, %v981
    %v1046 = vadd.f32 %v687, %v982
    %v1047 = vadd.f32 %v691, %v983
    %v1048 = vadd.f32 %v693, %v984
    %v1049 = vadd.f32 %v695, %v985
    %v1050 = vadd.f32 %v697, %v986
    %v1051 = vadd.f32 %v701, %v987
    %v1052 = vadd.f32 %v703, %v988
    %v1053 = vadd.f32 %v705, %v989
    %v1054 = vadd.f32 %v707, %v990
    %v1055 = vadd.f32 %v711, %v991
    %v1056 = vadd.f32 %v713, %v992
    %v1057 = vadd.f32 %v715, %v993
    %v1058 = vadd.f32 %v717, %v994
    %v1059 = vadd.f32 %v721, %v995
    %v1060 = vadd.f32 %v723, %v996
    %v1061 = vadd.f32 %v725, %v997
    %v1062 = vadd.f32 %v727, %v998
    %v1063 = vadd.f32 %v731, %v999
    %v1064 = vadd.f32 %v733, %v1000
    %v1065 = vadd.f32 %v735, %v1001
    %v1066 = vadd.f32 %v737, %v1002
    %v1067 = vadd.f32 %v741, %v1003
    %v1068 = vadd.f32 %v743, %v1004
    %v1069 = vadd.f32 %v745, %v1005
    %v1070 = vadd.f32 %v747, %v1006
    %v1071 = vadd.f32 %v751, %v1007
    %v1072 = vadd.f32 %v753, %v1008
    %v1073 = vadd.f32 %v755, %v1009
    %v1074 = vadd.f32 %v757, %v1010
    %v1075 = vadd.f32 %v761, %v1011
    %v1076 = vadd.f32 %v763, %v1012
    %v1077 = vadd.f32 %v765, %v1013
    %v1078 = vadd.f32 %v767, %v1014
    %v1079 = vadd.f32 %v771, %v1015
    %v1080 = vadd.f32 %v773, %v1016
    %v1081 = vadd.f32 %v775, %v1017
    %v1082 = vadd.f32 %v777, %v1018
    %v1083 = vadd.f32 %v781, %v1019
    %v1084 = vadd.f32 %v783, %v1020
    %v1085 = vadd.f32 %v785, %v1021
    %v1086 = vadd.f32 %v787, %v1022
    %v1087 = vadd.f32 %v791, %v1023
    %v1088 = vadd.f32 %v793, %v1024
    %v1089 = vadd.f32 %v795, %v1025
    %v1090 = vadd.f32 %v797, %v1026
    %v1091 = vadd.f32 %v801, %v1027
    %v1092 = vadd.f32 %v803, %v1028
    %v1093 = vadd.f32 %v805, %v1029
    %v1094 = vadd.f32 %v807, %v1030
    %v1095 = vadd.f32 %v811, %v1031
    %v1096 = vadd.f32 %v813, %v1032
    %v1097 = vadd.f32 %v815, %v1033
    %v1098 = vadd.f32 %v817, %v1034
    %v1099 = vadd.f32 %v821, %v1035
    %v1100 = vadd.f32 %v823, %v1036
    %v1101 = vadd.f32 %v825, %v1037
    %v1102 = vadd.f32 %v827, %v1038
    %v1103 = vld [vmem:[%s4] sm:$0xf]
    %v1104 = vpack.c.bf16 %v1041, %v1039
    %v1105 = vpack.c.bf16 %v1042, %v1040
    %v1106 = vpack.c.bf16 %v1045, %v1043
    %v1107 = vpack.c.bf16 %v1046, %v1044
    %v1108 = vpack.c.bf16 %v1049, %v1047
    %v1109 = vpack.c.bf16 %v1050, %v1048
    %v1110 = vpack.c.bf16 %v1053, %v1051
    %v1111 = vpack.c.bf16 %v1054, %v1052
    %v1112 = vpack.c.bf16 %v1057, %v1055
    %v1113 = vpack.c.bf16 %v1058, %v1056
    %v1114 = vpack.c.bf16 %v1061, %v1059
    %v1115 = vpack.c.bf16 %v1062, %v1060
    %v1116 = vpack.c.bf16 %v1065, %v1063
    %v1117 = vpack.c.bf16 %v1066, %v1064
    %v1118 = vpack.c.bf16 %v1069, %v1067
    %v1119 = vpack.c.bf16 %v1070, %v1068
    %v1120 = vpack.c.bf16 %v1073, %v1071
    %v1121 = vpack.c.bf16 %v1074, %v1072
    %v1122 = vpack.c.bf16 %v1077, %v1075
    %v1123 = vpack.c.bf16 %v1078, %v1076
    %v1124 = vpack.c.bf16 %v1081, %v1079
    %v1125 = vpack.c.bf16 %v1082, %v1080
    %v1126 = vpack.c.bf16 %v1085, %v1083
    %v1127 = vpack.c.bf16 %v1086, %v1084
    %v1128 = vpack.c.bf16 %v1089, %v1087
    %v1129 = vpack.c.bf16 %v1090, %v1088
    %v1130 = vpack.c.bf16 %v1093, %v1091
    %v1131 = vpack.c.bf16 %v1094, %v1092
    %v1132 = vpack.c.bf16 %v1097, %v1095
    %v1133 = vpack.c.bf16 %v1098, %v1096
    %v1134 = vpack.c.bf16 %v1101, %v1099
    %v1135 = vpack.c.bf16 %v1102, %v1100
    %v1138 = vunpack.c.l.s4 1983009808
    %v1139 = vunpack.c.0.s8 %v1138
    %v1140 = vlaneseq
    %v1141 = vshrl.u32 %v1140, 7
    %v1142 = vsub.s32 %v1139, %v1141
    %v1143 = vrot.slane %v1103, %v1142
    %v1144 = vcombine.high %v1143, %v1143
    %v1146 = vpack.i.b16 %v1143, %v1143
    %v1148 = vlaneseq
    %v1149 = vshrl.u32 %v1148, 7
    %v1150 = vsub.s32 0, %v1149
    %v1151 = vrot.slane %v1146, %v1150
    %v1153 = vpack.i.b16 %v1144, %v1144
    %v1155 = vlaneseq
    %v1156 = vshrl.u32 %v1155, 7
    %v1157 = vsub.s32 0, %v1156
    %v1158 = vrot.slane %v1153, %v1157
    %v1159 = vadd.bf16 %v1104, %v1151
    %v1160 = vadd.bf16 %v1105, %v1158
    %v1161 = vadd.bf16 %v1106, %v1151
    %v1162 = vadd.bf16 %v1107, %v1158
    %v1163 = vadd.bf16 %v1108, %v1151
    %v1164 = vadd.bf16 %v1109, %v1158
    %v1165 = vadd.bf16 %v1110, %v1151
    %v1166 = vadd.bf16 %v1111, %v1158
    %v1167 = vadd.bf16 %v1112, %v1151
    %v1168 = vadd.bf16 %v1113, %v1158
    %v1169 = vadd.bf16 %v1114, %v1151
    %v1170 = vadd.bf16 %v1115, %v1158
    %v1171 = vadd.bf16 %v1116, %v1151
    %v1172 = vadd.bf16 %v1117, %v1158
    %v1173 = vadd.bf16 %v1118, %v1151
    %v1174 = vadd.bf16 %v1119, %v1158
    %v1175 = vadd.bf16 %v1120, %v1151
    %v1176 = vadd.bf16 %v1121, %v1158
    %v1177 = vadd.bf16 %v1122, %v1151
    %v1178 = vadd.bf16 %v1123, %v1158
    %v1179 = vadd.bf16 %v1124, %v1151
    %v1180 = vadd.bf16 %v1125, %v1158
    %v1181 = vadd.bf16 %v1126, %v1151
    %v1182 = vadd.bf16 %v1127, %v1158
    %v1183 = vadd.bf16 %v1128, %v1151
    %v1184 = vadd.bf16 %v1129, %v1158
    %v1185 = vadd.bf16 %v1130, %v1151
    %v1186 = vadd.bf16 %v1131, %v1158
    %v1187 = vadd.bf16 %v1132, %v1151
    %v1188 = vadd.bf16 %v1133, %v1158
    %v1189 = vadd.bf16 %v1134, %v1151
    %v1190 = vadd.bf16 %v1135, %v1158
    %v1191 = vmul.bf16 %v1159, 1009007652
    %v1192 = vmul.bf16 %v1160, 1009007652
    %v1193 = vmul.bf16 %v1161, 1009007652
    %v1194 = vmul.bf16 %v1162, 1009007652
    %v1195 = vmul.bf16 %v1163, 1009007652
    %v1196 = vmul.bf16 %v1164, 1009007652
    %v1197 = vmul.bf16 %v1165, 1009007652
    %v1198 = vmul.bf16 %v1166, 1009007652
    %v1199 = vmul.bf16 %v1167, 1009007652
    %v1200 = vmul.bf16 %v1168, 1009007652
    %v1201 = vmul.bf16 %v1169, 1009007652
    %v1202 = vmul.bf16 %v1170, 1009007652
    %v1203 = vmul.bf16 %v1171, 1009007652
    %v1204 = vmul.bf16 %v1172, 1009007652
    %v1205 = vmul.bf16 %v1173, 1009007652
    %v1206 = vmul.bf16 %v1174, 1009007652
    %v1207 = vmul.bf16 %v1175, 1009007652
    %v1208 = vmul.bf16 %v1176, 1009007652
    %v1209 = vmul.bf16 %v1177, 1009007652
    %v1210 = vmul.bf16 %v1178, 1009007652
    %v1211 = vmul.bf16 %v1179, 1009007652
    %v1212 = vmul.bf16 %v1180, 1009007652
    %v1213 = vmul.bf16 %v1181, 1009007652
    %v1214 = vmul.bf16 %v1182, 1009007652
    %v1215 = vmul.bf16 %v1183, 1009007652
    %v1216 = vmul.bf16 %v1184, 1009007652
    %v1217 = vmul.bf16 %v1185, 1009007652
    %v1218 = vmul.bf16 %v1186, 1009007652
    %v1219 = vmul.bf16 %v1187, 1009007652
    %v1220 = vmul.bf16 %v1188, 1009007652
    %v1221 = vmul.bf16 %v1189, 1009007652
    %v1222 = vmul.bf16 %v1190, 1009007652
    %v1223 = vmax.bf16 %v1159, %v1191
    %v1224 = vmax.bf16 %v1160, %v1192
    %v1225 = vmax.bf16 %v1161, %v1193
    %v1226 = vmax.bf16 %v1162, %v1194
    %v1227 = vmax.bf16 %v1163, %v1195
    %v1228 = vmax.bf16 %v1164, %v1196
    %v1229 = vmax.bf16 %v1165, %v1197
    %v1230 = vmax.bf16 %v1166, %v1198
    %v1231 = vmax.bf16 %v1167, %v1199
    %v1232 = vmax.bf16 %v1168, %v1200
    %v1233 = vmax.bf16 %v1169, %v1201
    %v1234 = vmax.bf16 %v1170, %v1202
    %v1235 = vmax.bf16 %v1171, %v1203
    %v1236 = vmax.bf16 %v1172, %v1204
    %v1237 = vmax.bf16 %v1173, %v1205
    %v1238 = vmax.bf16 %v1174, %v1206
    %v1239 = vmax.bf16 %v1175, %v1207
    %v1240 = vmax.bf16 %v1176, %v1208
    %v1241 = vmax.bf16 %v1177, %v1209
    %v1242 = vmax.bf16 %v1178, %v1210
    %v1243 = vmax.bf16 %v1179, %v1211
    %v1244 = vmax.bf16 %v1180, %v1212
    %v1245 = vmax.bf16 %v1181, %v1213
    %v1246 = vmax.bf16 %v1182, %v1214
    %v1247 = vmax.bf16 %v1183, %v1215
    %v1248 = vmax.bf16 %v1184, %v1216
    %v1249 = vmax.bf16 %v1185, %v1217
    %v1250 = vmax.bf16 %v1186, %v1218
    %v1251 = vmax.bf16 %v1187, %v1219
    %v1252 = vmax.bf16 %v1188, %v1220
    %v1253 = vmax.bf16 %v1189, %v1221
    %v1254 = vmax.bf16 %v1190, %v1222
    %v1255 = vld [vmem:[%s5] sm:$0xff]
    %v1256 = vld [vmem:[%s5 + $0x8] sm:$0xff]
    %v1257 = vld [vmem:[%s5 + $0x10] sm:$0xff]
    %v1258 = vld [vmem:[%s5 + $0x18] sm:$0xff]
    %v1259 = vld [vmem:[%s5 + $0x20] sm:$0xff]
    %v1260 = vld [vmem:[%s5 + $0x28] sm:$0xff]
    %v1261 = vld [vmem:[%s5 + $0x30] sm:$0xff]
    %v1262 = vld [vmem:[%s5 + $0x38] sm:$0xff]
    %v1263 = vld [vmem:[%s5 + $0x40] sm:$0xff]
    %v1264 = vld [vmem:[%s5 + $0x48] sm:$0xff]
    %v1265 = vld [vmem:[%s5 + $0x50] sm:$0xff]
    %v1266 = vld [vmem:[%s5 + $0x58] sm:$0xff]
    %v1267 = vld [vmem:[%s5 + $0x60] sm:$0xff]
    %v1268 = vld [vmem:[%s5 + $0x68] sm:$0xff]
    %v1269 = vld [vmem:[%s5 + $0x70] sm:$0xff]
    %v1270 = vld [vmem:[%s5 + $0x78] sm:$0xff]
    %v1271 = vld [vmem:[%s5 + $0x80] sm:$0xff]
    %v1272 = vld [vmem:[%s5 + $0x88] sm:$0xff]
    %v1273 = vld [vmem:[%s5 + $0x90] sm:$0xff]
    %v1274 = vld [vmem:[%s5 + $0x98] sm:$0xff]
    %v1275 = vld [vmem:[%s5 + $0xa0] sm:$0xff]
    %v1276 = vld [vmem:[%s5 + $0xa8] sm:$0xff]
    %v1277 = vld [vmem:[%s5 + $0xb0] sm:$0xff]
    %v1278 = vld [vmem:[%s5 + $0xb8] sm:$0xff]
    %v1279 = vld [vmem:[%s5 + $0xc0] sm:$0xff]
    %v1280 = vld [vmem:[%s5 + $0xc8] sm:$0xff]
    %v1281 = vld [vmem:[%s5 + $0xd0] sm:$0xff]
    %v1282 = vld [vmem:[%s5 + $0xd8] sm:$0xff]
    %v1283 = vld [vmem:[%s5 + $0xe0] sm:$0xff]
    %v1284 = vld [vmem:[%s5 + $0xe8] sm:$0xff]
    %v1285 = vld [vmem:[%s5 + $0xf0] sm:$0xff]
    %v1286 = vld [vmem:[%s5 + $0xf8] sm:$0xff]
    %v1319 = vunpack.c.l.b16 %v1255
    %v1320 = vunpack.c.h.b16 %v1255
    %v1321 = vunpack.c.l.b16 %v1256
    %v1322 = vunpack.c.h.b16 %v1256
    %v1323 = vunpack.c.l.b16 %v1257
    %v1324 = vunpack.c.h.b16 %v1257
    %v1325 = vunpack.c.l.b16 %v1258
    %v1326 = vunpack.c.h.b16 %v1258
    %v1327 = vunpack.c.l.b16 %v1259
    %v1328 = vunpack.c.h.b16 %v1259
    %v1329 = vunpack.c.l.b16 %v1260
    %v1330 = vunpack.c.h.b16 %v1260
    %v1331 = vunpack.c.l.b16 %v1261
    %v1332 = vunpack.c.h.b16 %v1261
    %v1333 = vunpack.c.l.b16 %v1262
    %v1334 = vunpack.c.h.b16 %v1262
    %v1335 = vunpack.c.l.b16 %v1263
    %v1336 = vunpack.c.h.b16 %v1263
    %v1337 = vunpack.c.l.b16 %v1264
    %v1338 = vunpack.c.h.b16 %v1264
    %v1339 = vunpack.c.l.b16 %v1265
    %v1340 = vunpack.c.h.b16 %v1265
    %v1341 = vunpack.c.l.b16 %v1266
    %v1342 = vunpack.c.h.b16 %v1266
    %v1343 = vunpack.c.l.b16 %v1267
    %v1344 = vunpack.c.h.b16 %v1267
    %v1345 = vunpack.c.l.b16 %v1268
    %v1346 = vunpack.c.h.b16 %v1268
    %v1347 = vunpack.c.l.b16 %v1269
    %v1348 = vunpack.c.h.b16 %v1269
    %v1349 = vunpack.c.l.b16 %v1270
    %v1350 = vunpack.c.h.b16 %v1270
    %v1351 = vunpack.c.l.b16 %v1271
    %v1352 = vunpack.c.h.b16 %v1271
    %v1353 = vunpack.c.l.b16 %v1272
    %v1354 = vunpack.c.h.b16 %v1272
    %v1355 = vunpack.c.l.b16 %v1273
    %v1356 = vunpack.c.h.b16 %v1273
    %v1357 = vunpack.c.l.b16 %v1274
    %v1358 = vunpack.c.h.b16 %v1274
    %v1359 = vunpack.c.l.b16 %v1275
    %v1360 = vunpack.c.h.b16 %v1275
    %v1361 = vunpack.c.l.b16 %v1276
    %v1362 = vunpack.c.h.b16 %v1276
    %v1363 = vunpack.c.l.b16 %v1277
    %v1364 = vunpack.c.h.b16 %v1277
    %v1365 = vunpack.c.l.b16 %v1278
    %v1366 = vunpack.c.h.b16 %v1278
    %v1367 = vunpack.c.l.b16 %v1279
    %v1368 = vunpack.c.h.b16 %v1279
    %v1369 = vunpack.c.l.b16 %v1280
    %v1370 = vunpack.c.h.b16 %v1280
    %v1371 = vunpack.c.l.b16 %v1281
    %v1372 = vunpack.c.h.b16 %v1281
    %v1373 = vunpack.c.l.b16 %v1282
    %v1374 = vunpack.c.h.b16 %v1282
    %v1375 = vunpack.c.l.b16 %v1283
    %v1376 = vunpack.c.h.b16 %v1283
    %v1377 = vunpack.c.l.b16 %v1284
    %v1378 = vunpack.c.h.b16 %v1284
    %v1379 = vunpack.c.l.b16 %v1285
    %v1380 = vunpack.c.h.b16 %v1285
    %v1381 = vunpack.c.l.b16 %v1286
    %v1382 = vunpack.c.h.b16 %v1286
    %v1383 = vpack.c.b16 %v1321, %v1319
    %v1384 = vpack.c.b16 %v1322, %v1320
    %v1385 = vpack.c.b16 %v1325, %v1323
    %v1386 = vpack.c.b16 %v1326, %v1324
    %v1387 = vpack.c.b16 %v1329, %v1327
    %v1388 = vpack.c.b16 %v1330, %v1328
    %v1389 = vpack.c.b16 %v1333, %v1331
    %v1390 = vpack.c.b16 %v1334, %v1332
    %v1391 = vpack.c.b16 %v1337, %v1335
    %v1392 = vpack.c.b16 %v1338, %v1336
    %v1393 = vpack.c.b16 %v1341, %v1339
    %v1394 = vpack.c.b16 %v1342, %v1340
    %v1395 = vpack.c.b16 %v1345, %v1343
    %v1396 = vpack.c.b16 %v1346, %v1344
    %v1397 = vpack.c.b16 %v1349, %v1347
    %v1398 = vpack.c.b16 %v1350, %v1348
    %v1399 = vpack.c.b16 %v1353, %v1351
    %v1400 = vpack.c.b16 %v1354, %v1352
    %v1401 = vpack.c.b16 %v1357, %v1355
    %v1402 = vpack.c.b16 %v1358, %v1356
    %v1403 = vpack.c.b16 %v1361, %v1359
    %v1404 = vpack.c.b16 %v1362, %v1360
    %v1405 = vpack.c.b16 %v1365, %v1363
    %v1406 = vpack.c.b16 %v1366, %v1364
    %v1407 = vpack.c.b16 %v1369, %v1367
    %v1408 = vpack.c.b16 %v1370, %v1368
    %v1409 = vpack.c.b16 %v1373, %v1371
    %v1410 = vpack.c.b16 %v1374, %v1372
    %v1411 = vpack.c.b16 %v1377, %v1375
    %v1412 = vpack.c.b16 %v1378, %v1376
    %v1413 = vpack.c.b16 %v1381, %v1379
    %v1414 = vpack.c.b16 %v1382, %v1380
    %1447 = vmatprep.subr.bf16.mxu0 %v1384
    %1448 = vmatpush1.bf16.msra.mxu0 %v1383
    %1449 = vmatprep.subr.bf16.mxu0 %v1386
    %1450 = vmatpush1.bf16.msra.mxu0 %v1385
    %1451 = vmatprep.subr.bf16.mxu0 %v1388
    %1452 = vmatpush1.bf16.msra.mxu0 %v1387
    %1453 = vmatprep.subr.bf16.mxu0 %v1390
    %1454 = vmatpush1.bf16.msra.mxu0 %v1389
    %1455 = vmatprep.subr.bf16.mxu0 %v1392
    %1456 = vmatpush1.bf16.msra.mxu0 %v1391
    %1457 = vmatprep.subr.bf16.mxu0 %v1394
    %1458 = vmatpush1.bf16.msra.mxu0 %v1393
    %1459 = vmatprep.subr.bf16.mxu0 %v1396
    %1460 = vmatpush1.bf16.msra.mxu0 %v1395
    %1461 = vmatprep.subr.bf16.mxu0 %v1398
    %1462 = vmatpush1.bf16.msra.mxu0 %v1397
    %1463 = vmatprep.subr.bf16.mxu0 %v1400
    %1464 = vmatpush1.bf16.msra.mxu0 %v1399
    %1465 = vmatprep.subr.bf16.mxu0 %v1402
    %1466 = vmatpush1.bf16.msra.mxu0 %v1401
    %1467 = vmatprep.subr.bf16.mxu0 %v1404
    %1468 = vmatpush1.bf16.msra.mxu0 %v1403
    %1469 = vmatprep.subr.bf16.mxu0 %v1406
    %1470 = vmatpush1.bf16.msra.mxu0 %v1405
    %1471 = vmatprep.subr.bf16.mxu0 %v1408
    %1472 = vmatpush1.bf16.msra.mxu0 %v1407
    %1473 = vmatprep.subr.bf16.mxu0 %v1410
    %1474 = vmatpush1.bf16.msra.mxu0 %v1409
    %1475 = vmatprep.subr.bf16.mxu0 %v1412
    %1476 = vmatpush1.bf16.msra.mxu0 %v1411
    %1477 = vmatprep.subr.bf16.mxu0 %v1414
    %1478 = vmatpush1.bf16.msra.mxu0 %v1413
    %1479 = vmatprep.mubr.bf16.mxu0 %v1224
    %1480 = vmatmul.mubr.bf16.gmra.mrb[0].mxu0 %v1223
    %v1481 = vpop.f32.mrb[0].mxu0
    %v1482 = vadd.f32 0.0, %v1481
    %v1483 = vpop.f32.mrb[0].mxu0
    %v1484 = vadd.f32 0.0, %v1483
    %v1485 = vpop.f32.mrb[0].mxu0
    %v1486 = vadd.f32 0.0, %v1485
    %v1487 = vpop.f32.mrb[0].mxu0
    %v1488 = vadd.f32 0.0, %v1487
    %1489 = vmatprep.mubr.bf16.mxu0 %v1226
    %1490 = vmatmul.mubr.bf16.gmra.mrb[0].mxu0 %v1225
    %v1491 = vpop.f32.mrb[0].mxu0
    %v1492 = vadd.f32 0.0, %v1491
    %v1493 = vpop.f32.mrb[0].mxu0
    %v1494 = vadd.f32 0.0, %v1493
    %v1495 = vpop.f32.mrb[0].mxu0
    %v1496 = vadd.f32 0.0, %v1495
    %v1497 = vpop.f32.mrb[0].mxu0
    %v1498 = vadd.f32 0.0, %v1497
    %1499 = vmatprep.mubr.bf16.mxu0 %v1228
    %1500 = vmatmul.mubr.bf16.gmra.mrb[0].mxu0 %v1227
    %v1501 = vpop.f32.mrb[0].mxu0
    %v1502 = vadd.f32 0.0, %v1501
    %v1503 = vpop.f32.mrb[0].mxu0
    %v1504 = vadd.f32 0.0, %v1503
    %v1505 = vpop.f32.mrb[0].mxu0
    %v1506 = vadd.f32 0.0, %v1505
    %v1507 = vpop.f32.mrb[0].mxu0
    %v1508 = vadd.f32 0.0, %v1507
    %1509 = vmatprep.mubr.bf16.mxu0 %v1230
    %1510 = vmatmul.mubr.bf16.gmra.mrb[0].mxu0 %v1229
    %v1511 = vpop.f32.mrb[0].mxu0
    %v1512 = vadd.f32 0.0, %v1511
    %v1513 = vpop.f32.mrb[0].mxu0
    %v1514 = vadd.f32 0.0, %v1513
    %v1515 = vpop.f32.mrb[0].mxu0
    %v1516 = vadd.f32 0.0, %v1515
    %v1517 = vpop.f32.mrb[0].mxu0
    %v1518 = vadd.f32 0.0, %v1517
    %1519 = vmatprep.mubr.bf16.mxu0 %v1232
    %1520 = vmatmul.mubr.bf16.gmra.mrb[0].mxu0 %v1231
    %v1521 = vpop.f32.mrb[0].mxu0
    %v1522 = vadd.f32 0.0, %v1521
    %v1523 = vpop.f32.mrb[0].mxu0
    %v1524 = vadd.f32 0.0, %v1523
    %v1525 = vpop.f32.mrb[0].mxu0
    %v1526 = vadd.f32 0.0, %v1525
    %v1527 = vpop.f32.mrb[0].mxu0
    %v1528 = vadd.f32 0.0, %v1527
    %1529 = vmatprep.mubr.bf16.mxu0 %v1234
    %1530 = vmatmul.mubr.bf16.gmra.mrb[0].mxu0 %v1233
    %v1531 = vpop.f32.mrb[0].mxu0
    %v1532 = vadd.f32 0.0, %v1531
    %v1533 = vpop.f32.mrb[0].mxu0
    %v1534 = vadd.f32 0.0, %v1533
    %v1535 = vpop.f32.mrb[0].mxu0
    %v1536 = vadd.f32 0.0, %v1535
    %v1537 = vpop.f32.mrb[0].mxu0
    %v1538 = vadd.f32 0.0, %v1537
    %1539 = vmatprep.mubr.bf16.mxu0 %v1236
    %1540 = vmatmul.mubr.bf16.gmra.mrb[0].mxu0 %v1235
    %v1541 = vpop.f32.mrb[0].mxu0
    %v1542 = vadd.f32 0.0, %v1541
    %v1543 = vpop.f32.mrb[0].mxu0
    %v1544 = vadd.f32 0.0, %v1543
    %v1545 = vpop.f32.mrb[0].mxu0
    %v1546 = vadd.f32 0.0, %v1545
    %v1547 = vpop.f32.mrb[0].mxu0
    %v1548 = vadd.f32 0.0, %v1547
    %1549 = vmatprep.mubr.bf16.mxu0 %v1238
    %1550 = vmatmul.mubr.bf16.gmra.mrb[0].mxu0 %v1237
    %v1551 = vpop.f32.mrb[0].mxu0
    %v1552 = vadd.f32 0.0, %v1551
    %v1553 = vpop.f32.mrb[0].mxu0
    %v1554 = vadd.f32 0.0, %v1553
    %v1555 = vpop.f32.mrb[0].mxu0
    %v1556 = vadd.f32 0.0, %v1555
    %v1557 = vpop.f32.mrb[0].mxu0
    %v1558 = vadd.f32 0.0, %v1557
    %1559 = vmatprep.mubr.bf16.mxu0 %v1240
    %1560 = vmatmul.mubr.bf16.gmra.mrb[0].mxu0 %v1239
    %v1561 = vpop.f32.mrb[0].mxu0
    %v1562 = vadd.f32 0.0, %v1561
    %v1563 = vpop.f32.mrb[0].mxu0
    %v1564 = vadd.f32 0.0, %v1563
    %v1565 = vpop.f32.mrb[0].mxu0
    %v1566 = vadd.f32 0.0, %v1565
    %v1567 = vpop.f32.mrb[0].mxu0
    %v1568 = vadd.f32 0.0, %v1567
    %1569 = vmatprep.mubr.bf16.mxu0 %v1242
    %1570 = vmatmul.mubr.bf16.gmra.mrb[0].mxu0 %v1241
    %v1571 = vpop.f32.mrb[0].mxu0
    %v1572 = vadd.f32 0.0, %v1571
    %v1573 = vpop.f32.mrb[0].mxu0
    %v1574 = vadd.f32 0.0, %v1573
    %v1575 = vpop.f32.mrb[0].mxu0
    %v1576 = vadd.f32 0.0, %v1575
    %v1577 = vpop.f32.mrb[0].mxu0
    %v1578 = vadd.f32 0.0, %v1577
    %1579 = vmatprep.mubr.bf16.mxu0 %v1244
    %1580 = vmatmul.mubr.bf16.gmra.mrb[0].mxu0 %v1243
    %v1581 = vpop.f32.mrb[0].mxu0
    %v1582 = vadd.f32 0.0, %v1581
    %v1583 = vpop.f32.mrb[0].mxu0
    %v1584 = vadd.f32 0.0, %v1583
    %v1585 = vpop.f32.mrb[0].mxu0
    %v1586 = vadd.f32 0.0, %v1585
    %v1587 = vpop.f32.mrb[0].mxu0
    %v1588 = vadd.f32 0.0, %v1587
    %1589 = vmatprep.mubr.bf16.mxu0 %v1246
    %1590 = vmatmul.mubr.bf16.gmra.mrb[0].mxu0 %v1245
    %v1591 = vpop.f32.mrb[0].mxu0
    %v1592 = vadd.f32 0.0, %v1591
    %v1593 = vpop.f32.mrb[0].mxu0
    %v1594 = vadd.f32 0.0, %v1593
    %v1595 = vpop.f32.mrb[0].mxu0
    %v1596 = vadd.f32 0.0, %v1595
    %v1597 = vpop.f32.mrb[0].mxu0
    %v1598 = vadd.f32 0.0, %v1597
    %1599 = vmatprep.mubr.bf16.mxu0 %v1248
    %1600 = vmatmul.mubr.bf16.gmra.mrb[0].mxu0 %v1247
    %v1601 = vpop.f32.mrb[0].mxu0
    %v1602 = vadd.f32 0.0, %v1601
    %v1603 = vpop.f32.mrb[0].mxu0
    %v1604 = vadd.f32 0.0, %v1603
    %v1605 = vpop.f32.mrb[0].mxu0
    %v1606 = vadd.f32 0.0, %v1605
    %v1607 = vpop.f32.mrb[0].mxu0
    %v1608 = vadd.f32 0.0, %v1607
    %1609 = vmatprep.mubr.bf16.mxu0 %v1250
    %1610 = vmatmul.mubr.bf16.gmra.mrb[0].mxu0 %v1249
    %v1611 = vpop.f32.mrb[0].mxu0
    %v1612 = vadd.f32 0.0, %v1611
    %v1613 = vpop.f32.mrb[0].mxu0
    %v1614 = vadd.f32 0.0, %v1613
    %v1615 = vpop.f32.mrb[0].mxu0
    %v1616 = vadd.f32 0.0, %v1615
    %v1617 = vpop.f32.mrb[0].mxu0
    %v1618 = vadd.f32 0.0, %v1617
    %1619 = vmatprep.mubr.bf16.mxu0 %v1252
    %1620 = vmatmul.mubr.bf16.gmra.mrb[0].mxu0 %v1251
    %v1621 = vpop.f32.mrb[0].mxu0
    %v1622 = vadd.f32 0.0, %v1621
    %v1623 = vpop.f32.mrb[0].mxu0
    %v1624 = vadd.f32 0.0, %v1623
    %v1625 = vpop.f32.mrb[0].mxu0
    %v1626 = vadd.f32 0.0, %v1625
    %v1627 = vpop.f32.mrb[0].mxu0
    %v1628 = vadd.f32 0.0, %v1627
    %1629 = vmatprep.mubr.bf16.mxu0 %v1254
    %1630 = vmatmul.mubr.bf16.gmra.mrb[0].mxu0 %v1253
    %v1631 = vpop.f32.mrb[0].mxu0
    %v1632 = vadd.f32 0.0, %v1631
    %v1633 = vpop.f32.mrb[0].mxu0
    %v1634 = vadd.f32 0.0, %v1633
    %v1635 = vpop.f32.mrb[0].mxu0
    %v1636 = vadd.f32 0.0, %v1635
    %v1637 = vpop.f32.mrb[0].mxu0
    %v1638 = vadd.f32 0.0, %v1637
    %1639 = vdwg.mxu0
    %v1640 = vpack.c.bf16 %v1486, %v1482
    %v1641 = vpack.c.bf16 %v1488, %v1484
    %v1642 = vpack.c.bf16 %v1496, %v1492
    %v1643 = vpack.c.bf16 %v1498, %v1494
    %v1644 = vpack.c.bf16 %v1506, %v1502
    %v1645 = vpack.c.bf16 %v1508, %v1504
    %v1646 = vpack.c.bf16 %v1516, %v1512
    %v1647 = vpack.c.bf16 %v1518, %v1514
    %v1648 = vpack.c.bf16 %v1526, %v1522
    %v1649 = vpack.c.bf16 %v1528, %v1524
    %v1650 = vpack.c.bf16 %v1536, %v1532
    %v1651 = vpack.c.bf16 %v1538, %v1534
    %v1652 = vpack.c.bf16 %v1546, %v1542
    %v1653 = vpack.c.bf16 %v1548, %v1544
    %v1654 = vpack.c.bf16 %v1556, %v1552
    %v1655 = vpack.c.bf16 %v1558, %v1554
    %v1656 = vpack.c.bf16 %v1566, %v1562
    %v1657 = vpack.c.bf16 %v1568, %v1564
    %v1658 = vpack.c.bf16 %v1576, %v1572
    %v1659 = vpack.c.bf16 %v1578, %v1574
    %v1660 = vpack.c.bf16 %v1586, %v1582
    %v1661 = vpack.c.bf16 %v1588, %v1584
    %v1662 = vpack.c.bf16 %v1596, %v1592
    %v1663 = vpack.c.bf16 %v1598, %v1594
    %v1664 = vpack.c.bf16 %v1606, %v1602
    %v1665 = vpack.c.bf16 %v1608, %v1604
    %v1666 = vpack.c.bf16 %v1616, %v1612
    %v1667 = vpack.c.bf16 %v1618, %v1614
    %v1668 = vpack.c.bf16 %v1626, %v1622
    %v1669 = vpack.c.bf16 %v1628, %v1624
    %v1670 = vpack.c.bf16 %v1636, %v1632
    %v1671 = vpack.c.bf16 %v1638, %v1634
    %v1672 = vshrl.u32 %v1143, 16
    %v1673 = vpack.i.b16 %v1672, %v1672
    %v1675 = vlaneseq
    %v1676 = vshrl.u32 %v1675, 7
    %v1677 = vsub.s32 0, %v1676
    %v1678 = vrot.slane %v1673, %v1677
    %v1679 = vshrl.u32 %v1144, 16
    %v1680 = vpack.i.b16 %v1679, %v1679
    %v1682 = vlaneseq
    %v1683 = vshrl.u32 %v1682, 7
    %v1684 = vsub.s32 0, %v1683
    %v1685 = vrot.slane %v1680, %v1684
    %v1686 = vadd.bf16 %v1640, %v1678
    %v1687 = vadd.bf16 %v1641, %v1685
    %v1688 = vadd.bf16 %v1642, %v1678
    %v1689 = vadd.bf16 %v1643, %v1685
    %v1690 = vadd.bf16 %v1644, %v1678
    %v1691 = vadd.bf16 %v1645, %v1685
    %v1692 = vadd.bf16 %v1646, %v1678
    %v1693 = vadd.bf16 %v1647, %v1685
    %v1694 = vadd.bf16 %v1648, %v1678
    %v1695 = vadd.bf16 %v1649, %v1685
    %v1696 = vadd.bf16 %v1650, %v1678
    %v1697 = vadd.bf16 %v1651, %v1685
    %v1698 = vadd.bf16 %v1652, %v1678
    %v1699 = vadd.bf16 %v1653, %v1685
    %v1700 = vadd.bf16 %v1654, %v1678
    %v1701 = vadd.bf16 %v1655, %v1685
    %v1702 = vadd.bf16 %v1656, %v1678
    %v1703 = vadd.bf16 %v1657, %v1685
    %v1704 = vadd.bf16 %v1658, %v1678
    %v1705 = vadd.bf16 %v1659, %v1685
    %v1706 = vadd.bf16 %v1660, %v1678
    %v1707 = vadd.bf16 %v1661, %v1685
    %v1708 = vadd.bf16 %v1662, %v1678
    %v1709 = vadd.bf16 %v1663, %v1685
    %v1710 = vadd.bf16 %v1664, %v1678
    %v1711 = vadd.bf16 %v1665, %v1685
    %v1712 = vadd.bf16 %v1666, %v1678
    %v1713 = vadd.bf16 %v1667, %v1685
    %v1714 = vadd.bf16 %v1668, %v1678
    %v1715 = vadd.bf16 %v1669, %v1685
    %v1716 = vadd.bf16 %v1670, %v1678
    %v1717 = vadd.bf16 %v1671, %v1685
    %v1718 = vmul.bf16 %v1686, 1009007652
    %v1719 = vmul.bf16 %v1687, 1009007652
    %v1720 = vmul.bf16 %v1688, 1009007652
    %v1721 = vmul.bf16 %v1689, 1009007652
    %v1722 = vmul.bf16 %v1690, 1009007652
    %v1723 = vmul.bf16 %v1691, 1009007652
    %v1724 = vmul.bf16 %v1692, 1009007652
    %v1725 = vmul.bf16 %v1693, 1009007652
    %v1726 = vmul.bf16 %v1694, 1009007652
    %v1727 = vmul.bf16 %v1695, 1009007652
    %v1728 = vmul.bf16 %v1696, 1009007652
    %v1729 = vmul.bf16 %v1697, 1009007652
    %v1730 = vmul.bf16 %v1698, 1009007652
    %v1731 = vmul.bf16 %v1699, 1009007652
    %v1732 = vmul.bf16 %v1700, 1009007652
    %v1733 = vmul.bf16 %v1701, 1009007652
    %v1734 = vmul.bf16 %v1702, 1009007652
    %v1735 = vmul.bf16 %v1703, 1009007652
    %v1736 = vmul.bf16 %v1704, 1009007652
    %v1737 = vmul.bf16 %v1705, 1009007652
    %v1738 = vmul.bf16 %v1706, 1009007652
    %v1739 = vmul.bf16 %v1707, 1009007652
    %v1740 = vmul.bf16 %v1708, 1009007652
    %v1741 = vmul.bf16 %v1709, 1009007652
    %v1742 = vmul.bf16 %v1710, 1009007652
    %v1743 = vmul.bf16 %v1711, 1009007652
    %v1744 = vmul.bf16 %v1712, 1009007652
    %v1745 = vmul.bf16 %v1713, 1009007652
    %v1746 = vmul.bf16 %v1714, 1009007652
    %v1747 = vmul.bf16 %v1715, 1009007652
    %v1748 = vmul.bf16 %v1716, 1009007652
    %v1749 = vmul.bf16 %v1717, 1009007652
    %v1750 = vmax.bf16 %v1686, %v1718
    %v1751 = vmax.bf16 %v1687, %v1719
    %v1752 = vmax.bf16 %v1688, %v1720
    %v1753 = vmax.bf16 %v1689, %v1721
    %v1754 = vmax.bf16 %v1690, %v1722
    %v1755 = vmax.bf16 %v1691, %v1723
    %v1756 = vmax.bf16 %v1692, %v1724
    %v1757 = vmax.bf16 %v1693, %v1725
    %v1758 = vmax.bf16 %v1694, %v1726
    %v1759 = vmax.bf16 %v1695, %v1727
    %v1760 = vmax.bf16 %v1696, %v1728
    %v1761 = vmax.bf16 %v1697, %v1729
    %v1762 = vmax.bf16 %v1698, %v1730
    %v1763 = vmax.bf16 %v1699, %v1731
    %v1764 = vmax.bf16 %v1700, %v1732
    %v1765 = vmax.bf16 %v1701, %v1733
    %v1766 = vmax.bf16 %v1702, %v1734
    %v1767 = vmax.bf16 %v1703, %v1735
    %v1768 = vmax.bf16 %v1704, %v1736
    %v1769 = vmax.bf16 %v1705, %v1737
    %v1770 = vmax.bf16 %v1706, %v1738
    %v1771 = vmax.bf16 %v1707, %v1739
    %v1772 = vmax.bf16 %v1708, %v1740
    %v1773 = vmax.bf16 %v1709, %v1741
    %v1774 = vmax.bf16 %v1710, %v1742
    %v1775 = vmax.bf16 %v1711, %v1743
    %v1776 = vmax.bf16 %v1712, %v1744
    %v1777 = vmax.bf16 %v1713, %v1745
    %v1778 = vmax.bf16 %v1714, %v1746
    %v1779 = vmax.bf16 %v1715, %v1747
    %v1780 = vmax.bf16 %v1716, %v1748
    %v1781 = vmax.bf16 %v1717, %v1749
    %v1782 = vld [vmem:[%s6] sm:$0xff]
    %v1783 = vld [vmem:[%s6 + $0x8] sm:$0xff]
    %v1784 = vld [vmem:[%s6 + $0x10] sm:$0xff]
    %v1785 = vld [vmem:[%s6 + $0x18] sm:$0xff]
    %v1786 = vld [vmem:[%s6 + $0x20] sm:$0xff]
    %v1787 = vld [vmem:[%s6 + $0x28] sm:$0xff]
    %v1788 = vld [vmem:[%s6 + $0x30] sm:$0xff]
    %v1789 = vld [vmem:[%s6 + $0x38] sm:$0xff]
    %v1790 = vld [vmem:[%s6 + $0x40] sm:$0xff]
    %v1791 = vld [vmem:[%s6 + $0x48] sm:$0xff]
    %v1792 = vld [vmem:[%s6 + $0x50] sm:$0xff]
    %v1793 = vld [vmem:[%s6 + $0x58] sm:$0xff]
    %v1794 = vld [vmem:[%s6 + $0x60] sm:$0xff]
    %v1795 = vld [vmem:[%s6 + $0x68] sm:$0xff]
    %v1796 = vld [vmem:[%s6 + $0x70] sm:$0xff]
    %v1797 = vld [vmem:[%s6 + $0x78] sm:$0xff]
    %v1798 = vld [vmem:[%s6 + $0x80] sm:$0xff]
    %v1799 = vld [vmem:[%s6 + $0x88] sm:$0xff]
    %v1800 = vld [vmem:[%s6 + $0x90] sm:$0xff]
    %v1801 = vld [vmem:[%s6 + $0x98] sm:$0xff]
    %v1802 = vld [vmem:[%s6 + $0xa0] sm:$0xff]
    %v1803 = vld [vmem:[%s6 + $0xa8] sm:$0xff]
    %v1804 = vld [vmem:[%s6 + $0xb0] sm:$0xff]
    %v1805 = vld [vmem:[%s6 + $0xb8] sm:$0xff]
    %v1806 = vld [vmem:[%s6 + $0xc0] sm:$0xff]
    %v1807 = vld [vmem:[%s6 + $0xc8] sm:$0xff]
    %v1808 = vld [vmem:[%s6 + $0xd0] sm:$0xff]
    %v1809 = vld [vmem:[%s6 + $0xd8] sm:$0xff]
    %v1810 = vld [vmem:[%s6 + $0xe0] sm:$0xff]
    %v1811 = vld [vmem:[%s6 + $0xe8] sm:$0xff]
    %v1812 = vld [vmem:[%s6 + $0xf0] sm:$0xff]
    %v1813 = vld [vmem:[%s6 + $0xf8] sm:$0xff]
    %v1846 = vunpack.c.l.b16 %v1782
    %v1847 = vunpack.c.h.b16 %v1782
    %v1848 = vunpack.c.l.b16 %v1783
    %v1849 = vunpack.c.h.b16 %v1783
    %v1850 = vunpack.c.l.b16 %v1784
    %v1851 = vunpack.c.h.b16 %v1784
    %v1852 = vunpack.c.l.b16 %v1785
    %v1853 = vunpack.c.h.b16 %v1785
    %v1854 = vunpack.c.l.b16 %v1786
    %v1855 = vunpack.c.h.b16 %v1786
    %v1856 = vunpack.c.l.b16 %v1787
    %v1857 = vunpack.c.h.b16 %v1787
    %v1858 = vunpack.c.l.b16 %v1788
    %v1859 = vunpack.c.h.b16 %v1788
    %v1860 = vunpack.c.l.b16 %v1789
    %v1861 = vunpack.c.h.b16 %v1789
    %v1862 = vunpack.c.l.b16 %v1790
    %v1863 = vunpack.c.h.b16 %v1790
    %v1864 = vunpack.c.l.b16 %v1791
    %v1865 = vunpack.c.h.b16 %v1791
    %v1866 = vunpack.c.l.b16 %v1792
    %v1867 = vunpack.c.h.b16 %v1792
    %v1868 = vunpack.c.l.b16 %v1793
    %v1869 = vunpack.c.h.b16 %v1793
    %v1870 = vunpack.c.l.b16 %v1794
    %v1871 = vunpack.c.h.b16 %v1794
    %v1872 = vunpack.c.l.b16 %v1795
    %v1873 = vunpack.c.h.b16 %v1795
    %v1874 = vunpack.c.l.b16 %v1796
    %v1875 = vunpack.c.h.b16 %v1796
    %v1876 = vunpack.c.l.b16 %v1797
    %v1877 = vunpack.c.h.b16 %v1797
    %v1878 = vunpack.c.l.b16 %v1798
    %v1879 = vunpack.c.h.b16 %v1798
    %v1880 = vunpack.c.l.b16 %v1799
    %v1881 = vunpack.c.h.b16 %v1799
    %v1882 = vunpack.c.l.b16 %v1800
    %v1883 = vunpack.c.h.b16 %v1800
    %v1884 = vunpack.c.l.b16 %v1801
    %v1885 = vunpack.c.h.b16 %v1801
    %v1886 = vunpack.c.l.b16 %v1802
    %v1887 = vunpack.c.h.b16 %v1802
    %v1888 = vunpack.c.l.b16 %v1803
    %v1889 = vunpack.c.h.b16 %v1803
    %v1890 = vunpack.c.l.b16 %v1804
    %v1891 = vunpack.c.h.b16 %v1804
    %v1892 = vunpack.c.l.b16 %v1805
    %v1893 = vunpack.c.h.b16 %v1805
    %v1894 = vunpack.c.l.b16 %v1806
    %v1895 = vunpack.c.h.b16 %v1806
    %v1896 = vunpack.c.l.b16 %v1807
    %v1897 = vunpack.c.h.b16 %v1807
    %v1898 = vunpack.c.l.b16 %v1808
    %v1899 = vunpack.c.h.b16 %v1808
    %v1900 = vunpack.c.l.b16 %v1809
    %v1901 = vunpack.c.h.b16 %v1809
    %v1902 = vunpack.c.l.b16 %v1810
    %v1903 = vunpack.c.h.b16 %v1810
    %v1904 = vunpack.c.l.b16 %v1811
    %v1905 = vunpack.c.h.b16 %v1811
    %v1906 = vunpack.c.l.b16 %v1812
    %v1907 = vunpack.c.h.b16 %v1812
    %v1908 = vunpack.c.l.b16 %v1813
    %v1909 = vunpack.c.h.b16 %v1813
    %v1910 = vpack.c.b16 %v1848, %v1846
    %v1911 = vpack.c.b16 %v1849, %v1847
    %v1912 = vpack.c.b16 %v1852, %v1850
    %v1913 = vpack.c.b16 %v1853, %v1851
    %v1914 = vpack.c.b16 %v1856, %v1854
    %v1915 = vpack.c.b16 %v1857, %v1855
    %v1916 = vpack.c.b16 %v1860, %v1858
    %v1917 = vpack.c.b16 %v1861, %v1859
    %v1918 = vpack.c.b16 %v1864, %v1862
    %v1919 = vpack.c.b16 %v1865, %v1863
    %v1920 = vpack.c.b16 %v1868, %v1866
    %v1921 = vpack.c.b16 %v1869, %v1867
    %v1922 = vpack.c.b16 %v1872, %v1870
    %v1923 = vpack.c.b16 %v1873, %v1871
    %v1924 = vpack.c.b16 %v1876, %v1874
    %v1925 = vpack.c.b16 %v1877, %v1875
    %v1926 = vpack.c.b16 %v1880, %v1878
    %v1927 = vpack.c.b16 %v1881, %v1879
    %v1928 = vpack.c.b16 %v1884, %v1882
    %v1929 = vpack.c.b16 %v1885, %v1883
    %v1930 = vpack.c.b16 %v1888, %v1886
    %v1931 = vpack.c.b16 %v1889, %v1887
    %v1932 = vpack.c.b16 %v1892, %v1890
    %v1933 = vpack.c.b16 %v1893, %v1891
    %v1934 = vpack.c.b16 %v1896, %v1894
    %v1935 = vpack.c.b16 %v1897, %v1895
    %v1936 = vpack.c.b16 %v1900, %v1898
    %v1937 = vpack.c.b16 %v1901, %v1899
    %v1938 = vpack.c.b16 %v1904, %v1902
    %v1939 = vpack.c.b16 %v1905, %v1903
    %v1940 = vpack.c.b16 %v1908, %v1906
    %v1941 = vpack.c.b16 %v1909, %v1907
    %1974 = vmatprep.subr.bf16.mxu0 %v1911
    %1975 = vmatpush1.bf16.msra.mxu0 %v1910
    %1976 = vmatprep.subr.bf16.mxu0 %v1913
    %1977 = vmatpush1.bf16.msra.mxu0 %v1912
    %1978 = vmatprep.subr.bf16.mxu0 %v1915
    %1979 = vmatpush1.bf16.msra.mxu0 %v1914
    %1980 = vmatprep.subr.bf16.mxu0 %v1917
    %1981 = vmatpush1.bf16.msra.mxu0 %v1916
    %1982 = vmatprep.subr.bf16.mxu0 %v1919
    %1983 = vmatpush1.bf16.msra.mxu0 %v1918
    %1984 = vmatprep.subr.bf16.mxu0 %v1921
    %1985 = vmatpush1.bf16.msra.mxu0 %v1920
    %1986 = vmatprep.subr.bf16.mxu0 %v1923
    %1987 = vmatpush1.bf16.msra.mxu0 %v1922
    %1988 = vmatprep.subr.bf16.mxu0 %v1925
    %1989 = vmatpush1.bf16.msra.mxu0 %v1924
    %1990 = vmatprep.subr.bf16.mxu0 %v1927
    %1991 = vmatpush1.bf16.msra.mxu0 %v1926
    %1992 = vmatprep.subr.bf16.mxu0 %v1929
    %1993 = vmatpush1.bf16.msra.mxu0 %v1928
    %1994 = vmatprep.subr.bf16.mxu0 %v1931
    %1995 = vmatpush1.bf16.msra.mxu0 %v1930
    %1996 = vmatprep.subr.bf16.mxu0 %v1933
    %1997 = vmatpush1.bf16.msra.mxu0 %v1932
    %1998 = vmatprep.subr.bf16.mxu0 %v1935
    %1999 = vmatpush1.bf16.msra.mxu0 %v1934
    %2000 = vmatprep.subr.bf16.mxu0 %v1937
    %2001 = vmatpush1.bf16.msra.mxu0 %v1936
    %2002 = vmatprep.subr.bf16.mxu0 %v1939
    %2003 = vmatpush1.bf16.msra.mxu0 %v1938
    %2004 = vmatprep.subr.bf16.mxu0 %v1941
    %2005 = vmatpush1.bf16.msra.mxu0 %v1940
    %2006 = vmatprep.mubr.bf16.mxu0 %v1751
    %2007 = vmatmul.mubr.bf16.gmra.mrb[0].mxu0 %v1750
    %v2008 = vpop.f32.mrb[0].mxu0
    %v2009 = vadd.f32 0.0, %v2008
    %v2010 = vpop.f32.mrb[0].mxu0
    %v2011 = vadd.f32 0.0, %v2010
    %v2012 = vpop.f32.mrb[0].mxu0
    %v2013 = vadd.f32 0.0, %v2012
    %v2014 = vpop.f32.mrb[0].mxu0
    %v2015 = vadd.f32 0.0, %v2014
    %2016 = vmatprep.mubr.bf16.mxu0 %v1753
    %2017 = vmatmul.mubr.bf16.gmra.mrb[0].mxu0 %v1752
    %v2018 = vpop.f32.mrb[0].mxu0
    %v2019 = vadd.f32 0.0, %v2018
    %v2020 = vpop.f32.mrb[0].mxu0
    %v2021 = vadd.f32 0.0, %v2020
    %v2022 = vpop.f32.mrb[0].mxu0
    %v2023 = vadd.f32 0.0, %v2022
    %v2024 = vpop.f32.mrb[0].mxu0
    %v2025 = vadd.f32 0.0, %v2024
    %2026 = vmatprep.mubr.bf16.mxu0 %v1755
    %2027 = vmatmul.mubr.bf16.gmra.mrb[0].mxu0 %v1754
    %v2028 = vpop.f32.mrb[0].mxu0
    %v2029 = vadd.f32 0.0, %v2028
    %v2030 = vpop.f32.mrb[0].mxu0
    %v2031 = vadd.f32 0.0, %v2030
    %v2032 = vpop.f32.mrb[0].mxu0
    %v2033 = vadd.f32 0.0, %v2032
    %v2034 = vpop.f32.mrb[0].mxu0
    %v2035 = vadd.f32 0.0, %v2034
    %2036 = vmatprep.mubr.bf16.mxu0 %v1757
    %2037 = vmatmul.mubr.bf16.gmra.mrb[0].mxu0 %v1756
    %v2038 = vpop.f32.mrb[0].mxu0
    %v2039 = vadd.f32 0.0, %v2038
    %v2040 = vpop.f32.mrb[0].mxu0
    %v2041 = vadd.f32 0.0, %v2040
    %v2042 = vpop.f32.mrb[0].mxu0
    %v2043 = vadd.f32 0.0, %v2042
    %v2044 = vpop.f32.mrb[0].mxu0
    %v2045 = vadd.f32 0.0, %v2044
    %2046 = vmatprep.mubr.bf16.mxu0 %v1759
    %2047 = vmatmul.mubr.bf16.gmra.mrb[0].mxu0 %v1758
    %v2048 = vpop.f32.mrb[0].mxu0
    %v2049 = vadd.f32 0.0, %v2048
    %v2050 = vpop.f32.mrb[0].mxu0
    %v2051 = vadd.f32 0.0, %v2050
    %v2052 = vpop.f32.mrb[0].mxu0
    %v2053 = vadd.f32 0.0, %v2052
    %v2054 = vpop.f32.mrb[0].mxu0
    %v2055 = vadd.f32 0.0, %v2054
    %2056 = vmatprep.mubr.bf16.mxu0 %v1761
    %2057 = vmatmul.mubr.bf16.gmra.mrb[0].mxu0 %v1760
    %v2058 = vpop.f32.mrb[0].mxu0
    %v2059 = vadd.f32 0.0, %v2058
    %v2060 = vpop.f32.mrb[0].mxu0
    %v2061 = vadd.f32 0.0, %v2060
    %v2062 = vpop.f32.mrb[0].mxu0
    %v2063 = vadd.f32 0.0, %v2062
    %v2064 = vpop.f32.mrb[0].mxu0
    %v2065 = vadd.f32 0.0, %v2064
    %2066 = vmatprep.mubr.bf16.mxu0 %v1763
    %2067 = vmatmul.mubr.bf16.gmra.mrb[0].mxu0 %v1762
    %v2068 = vpop.f32.mrb[0].mxu0
    %v2069 = vadd.f32 0.0, %v2068
    %v2070 = vpop.f32.mrb[0].mxu0
    %v2071 = vadd.f32 0.0, %v2070
    %v2072 = vpop.f32.mrb[0].mxu0
    %v2073 = vadd.f32 0.0, %v2072
    %v2074 = vpop.f32.mrb[0].mxu0
    %v2075 = vadd.f32 0.0, %v2074
    %2076 = vmatprep.mubr.bf16.mxu0 %v1765
    %2077 = vmatmul.mubr.bf16.gmra.mrb[0].mxu0 %v1764
    %v2078 = vpop.f32.mrb[0].mxu0
    %v2079 = vadd.f32 0.0, %v2078
    %v2080 = vpop.f32.mrb[0].mxu0
    %v2081 = vadd.f32 0.0, %v2080
    %v2082 = vpop.f32.mrb[0].mxu0
    %v2083 = vadd.f32 0.0, %v2082
    %v2084 = vpop.f32.mrb[0].mxu0
    %v2085 = vadd.f32 0.0, %v2084
    %2086 = vmatprep.mubr.bf16.mxu0 %v1767
    %2087 = vmatmul.mubr.bf16.gmra.mrb[0].mxu0 %v1766
    %v2088 = vpop.f32.mrb[0].mxu0
    %v2089 = vadd.f32 0.0, %v2088
    %v2090 = vpop.f32.mrb[0].mxu0
    %v2091 = vadd.f32 0.0, %v2090
    %v2092 = vpop.f32.mrb[0].mxu0
    %v2093 = vadd.f32 0.0, %v2092
    %v2094 = vpop.f32.mrb[0].mxu0
    %v2095 = vadd.f32 0.0, %v2094
    %2096 = vmatprep.mubr.bf16.mxu0 %v1769
    %2097 = vmatmul.mubr.bf16.gmra.mrb[0].mxu0 %v1768
    %v2098 = vpop.f32.mrb[0].mxu0
    %v2099 = vadd.f32 0.0, %v2098
    %v2100 = vpop.f32.mrb[0].mxu0
    %v2101 = vadd.f32 0.0, %v2100
    %v2102 = vpop.f32.mrb[0].mxu0
    %v2103 = vadd.f32 0.0, %v2102
    %v2104 = vpop.f32.mrb[0].mxu0
    %v2105 = vadd.f32 0.0, %v2104
    %2106 = vmatprep.mubr.bf16.mxu0 %v1771
    %2107 = vmatmul.mubr.bf16.gmra.mrb[0].mxu0 %v1770
    %v2108 = vpop.f32.mrb[0].mxu0
    %v2109 = vadd.f32 0.0, %v2108
    %v2110 = vpop.f32.mrb[0].mxu0
    %v2111 = vadd.f32 0.0, %v2110
    %v2112 = vpop.f32.mrb[0].mxu0
    %v2113 = vadd.f32 0.0, %v2112
    %v2114 = vpop.f32.mrb[0].mxu0
    %v2115 = vadd.f32 0.0, %v2114
    %2116 = vmatprep.mubr.bf16.mxu0 %v1773
    %2117 = vmatmul.mubr.bf16.gmra.mrb[0].mxu0 %v1772
    %v2118 = vpop.f32.mrb[0].mxu0
    %v2119 = vadd.f32 0.0, %v2118
    %v2120 = vpop.f32.mrb[0].mxu0
    %v2121 = vadd.f32 0.0, %v2120
    %v2122 = vpop.f32.mrb[0].mxu0
    %v2123 = vadd.f32 0.0, %v2122
    %v2124 = vpop.f32.mrb[0].mxu0
    %v2125 = vadd.f32 0.0, %v2124
    %2126 = vmatprep.mubr.bf16.mxu0 %v1775
    %2127 = vmatmul.mubr.bf16.gmra.mrb[0].mxu0 %v1774
    %v2128 = vpop.f32.mrb[0].mxu0
    %v2129 = vadd.f32 0.0, %v2128
    %v2130 = vpop.f32.mrb[0].mxu0
    %v2131 = vadd.f32 0.0, %v2130
    %v2132 = vpop.f32.mrb[0].mxu0
    %v2133 = vadd.f32 0.0, %v2132
    %v2134 = vpop.f32.mrb[0].mxu0
    %v2135 = vadd.f32 0.0, %v2134
    %2136 = vmatprep.mubr.bf16.mxu0 %v1777
    %2137 = vmatmul.mubr.bf16.gmra.mrb[0].mxu0 %v1776
    %v2138 = vpop.f32.mrb[0].mxu0
    %v2139 = vadd.f32 0.0, %v2138
    %v2140 = vpop.f32.mrb[0].mxu0
    %v2141 = vadd.f32 0.0, %v2140
    %v2142 = vpop.f32.mrb[0].mxu0
    %v2143 = vadd.f32 0.0, %v2142
    %v2144 = vpop.f32.mrb[0].mxu0
    %v2145 = vadd.f32 0.0, %v2144
    %2146 = vmatprep.mubr.bf16.mxu0 %v1779
    %2147 = vmatmul.mubr.bf16.gmra.mrb[0].mxu0 %v1778
    %v2148 = vpop.f32.mrb[0].mxu0
    %v2149 = vadd.f32 0.0, %v2148
    %v2150 = vpop.f32.mrb[0].mxu0
    %v2151 = vadd.f32 0.0, %v2150
    %v2152 = vpop.f32.mrb[0].mxu0
    %v2153 = vadd.f32 0.0, %v2152
    %v2154 = vpop.f32.mrb[0].mxu0
    %v2155 = vadd.f32 0.0, %v2154
    %2156 = vmatprep.mubr.bf16.mxu0 %v1781
    %2157 = vmatmul.mubr.bf16.gmra.mrb[0].mxu0 %v1780
    %v2158 = vpop.f32.mrb[0].mxu0
    %v2159 = vadd.f32 0.0, %v2158
    %v2160 = vpop.f32.mrb[0].mxu0
    %v2161 = vadd.f32 0.0, %v2160
    %v2162 = vpop.f32.mrb[0].mxu0
    %v2163 = vadd.f32 0.0, %v2162
    %v2164 = vpop.f32.mrb[0].mxu0
    %v2165 = vadd.f32 0.0, %v2164
    %2166 = vdwg.mxu0
    %v2167 = vpack.c.bf16 %v2013, %v2009
    %v2168 = vpack.c.bf16 %v2015, %v2011
    %v2169 = vpack.c.bf16 %v2023, %v2019
    %v2170 = vpack.c.bf16 %v2025, %v2021
    %v2171 = vpack.c.bf16 %v2033, %v2029
    %v2172 = vpack.c.bf16 %v2035, %v2031
    %v2173 = vpack.c.bf16 %v2043, %v2039
    %v2174 = vpack.c.bf16 %v2045, %v2041
    %v2175 = vpack.c.bf16 %v2053, %v2049
    %v2176 = vpack.c.bf16 %v2055, %v2051
    %v2177 = vpack.c.bf16 %v2063, %v2059
    %v2178 = vpack.c.bf16 %v2065, %v2061
    %v2179 = vpack.c.bf16 %v2073, %v2069
    %v2180 = vpack.c.bf16 %v2075, %v2071
    %v2181 = vpack.c.bf16 %v2083, %v2079
    %v2182 = vpack.c.bf16 %v2085, %v2081
    %v2183 = vpack.c.bf16 %v2093, %v2089
    %v2184 = vpack.c.bf16 %v2095, %v2091
    %v2185 = vpack.c.bf16 %v2103, %v2099
    %v2186 = vpack.c.bf16 %v2105, %v2101
    %v2187 = vpack.c.bf16 %v2113, %v2109
    %v2188 = vpack.c.bf16 %v2115, %v2111
    %v2189 = vpack.c.bf16 %v2123, %v2119
    %v2190 = vpack.c.bf16 %v2125, %v2121
    %v2191 = vpack.c.bf16 %v2133, %v2129
    %v2192 = vpack.c.bf16 %v2135, %v2131
    %v2193 = vpack.c.bf16 %v2143, %v2139
    %v2194 = vpack.c.bf16 %v2145, %v2141
    %v2195 = vpack.c.bf16 %v2153, %v2149
    %v2196 = vpack.c.bf16 %v2155, %v2151
    %v2197 = vpack.c.bf16 %v2163, %v2159
    %v2198 = vpack.c.bf16 %v2165, %v2161
    %v2199 = vlaneseq
    %v2200 = vshrl.u32 %v2199, 7
    %v2201 = vsub.s32 1, %v2200
    %v2202 = vrot.slane %v1146, %v2201
    %v2203 = vlaneseq
    %v2204 = vshrl.u32 %v2203, 7
    %v2205 = vsub.s32 1, %v2204
    %v2206 = vrot.slane %v1153, %v2205
    %v2207 = vadd.bf16 %v2167, %v2202
    %v2208 = vadd.bf16 %v2168, %v2206
    %v2209 = vadd.bf16 %v2169, %v2202
    %v2210 = vadd.bf16 %v2170, %v2206
    %v2211 = vadd.bf16 %v2171, %v2202
    %v2212 = vadd.bf16 %v2172, %v2206
    %v2213 = vadd.bf16 %v2173, %v2202
    %v2214 = vadd.bf16 %v2174, %v2206
    %v2215 = vadd.bf16 %v2175, %v2202
    %v2216 = vadd.bf16 %v2176, %v2206
    %v2217 = vadd.bf16 %v2177, %v2202
    %v2218 = vadd.bf16 %v2178, %v2206
    %v2219 = vadd.bf16 %v2179, %v2202
    %v2220 = vadd.bf16 %v2180, %v2206
    %v2221 = vadd.bf16 %v2181, %v2202
    %v2222 = vadd.bf16 %v2182, %v2206
    %v2223 = vadd.bf16 %v2183, %v2202
    %v2224 = vadd.bf16 %v2184, %v2206
    %v2225 = vadd.bf16 %v2185, %v2202
    %v2226 = vadd.bf16 %v2186, %v2206
    %v2227 = vadd.bf16 %v2187, %v2202
    %v2228 = vadd.bf16 %v2188, %v2206
    %v2229 = vadd.bf16 %v2189, %v2202
    %v2230 = vadd.bf16 %v2190, %v2206
    %v2231 = vadd.bf16 %v2191, %v2202
    %v2232 = vadd.bf16 %v2192, %v2206
    %v2233 = vadd.bf16 %v2193, %v2202
    %v2234 = vadd.bf16 %v2194, %v2206
    %v2235 = vadd.bf16 %v2195, %v2202
    %v2236 = vadd.bf16 %v2196, %v2206
    %v2237 = vadd.bf16 %v2197, %v2202
    %v2238 = vadd.bf16 %v2198, %v2206
    %v2239 = vmul.bf16 %v2207, 1009007652
    %v2240 = vmul.bf16 %v2208, 1009007652
    %v2241 = vmul.bf16 %v2209, 1009007652
    %v2242 = vmul.bf16 %v2210, 1009007652
    %v2243 = vmul.bf16 %v2211, 1009007652
    %v2244 = vmul.bf16 %v2212, 1009007652
    %v2245 = vmul.bf16 %v2213, 1009007652
    %v2246 = vmul.bf16 %v2214, 1009007652
    %v2247 = vmul.bf16 %v2215, 1009007652
    %v2248 = vmul.bf16 %v2216, 1009007652
    %v2249 = vmul.bf16 %v2217, 1009007652
    %v2250 = vmul.bf16 %v2218, 1009007652
    %v2251 = vmul.bf16 %v2219, 1009007652
    %v2252 = vmul.bf16 %v2220, 1009007652
    %v2253 = vmul.bf16 %v2221, 1009007652
    %v2254 = vmul.bf16 %v2222, 1009007652
    %v2255 = vmul.bf16 %v2223, 1009007652
    %v2256 = vmul.bf16 %v2224, 1009007652
    %v2257 = vmul.bf16 %v2225, 1009007652
    %v2258 = vmul.bf16 %v2226, 1009007652
    %v2259 = vmul.bf16 %v2227, 1009007652
    %v2260 = vmul.bf16 %v2228, 1009007652
    %v2261 = vmul.bf16 %v2229, 1009007652
    %v2262 = vmul.bf16 %v2230, 1009007652
    %v2263 = vmul.bf16 %v2231, 1009007652
    %v2264 = vmul.bf16 %v2232, 1009007652
    %v2265 = vmul.bf16 %v2233, 1009007652
    %v2266 = vmul.bf16 %v2234, 1009007652
    %v2267 = vmul.bf16 %v2235, 1009007652
    %v2268 = vmul.bf16 %v2236, 1009007652
    %v2269 = vmul.bf16 %v2237, 1009007652
    %v2270 = vmul.bf16 %v2238, 1009007652
    %v2271 = vmax.bf16 %v2207, %v2239
    %v2272 = vmax.bf16 %v2208, %v2240
    %v2273 = vmax.bf16 %v2209, %v2241
    %v2274 = vmax.bf16 %v2210, %v2242
    %v2275 = vmax.bf16 %v2211, %v2243
    %v2276 = vmax.bf16 %v2212, %v2244
    %v2277 = vmax.bf16 %v2213, %v2245
    %v2278 = vmax.bf16 %v2214, %v2246
    %v2279 = vmax.bf16 %v2215, %v2247
    %v2280 = vmax.bf16 %v2216, %v2248
    %v2281 = vmax.bf16 %v2217, %v2249
    %v2282 = vmax.bf16 %v2218, %v2250
    %v2283 = vmax.bf16 %v2219, %v2251
    %v2284 = vmax.bf16 %v2220, %v2252
    %v2285 = vmax.bf16 %v2221, %v2253
    %v2286 = vmax.bf16 %v2222, %v2254
    %v2287 = vmax.bf16 %v2223, %v2255
    %v2288 = vmax.bf16 %v2224, %v2256
    %v2289 = vmax.bf16 %v2225, %v2257
    %v2290 = vmax.bf16 %v2226, %v2258
    %v2291 = vmax.bf16 %v2227, %v2259
    %v2292 = vmax.bf16 %v2228, %v2260
    %v2293 = vmax.bf16 %v2229, %v2261
    %v2294 = vmax.bf16 %v2230, %v2262
    %v2295 = vmax.bf16 %v2231, %v2263
    %v2296 = vmax.bf16 %v2232, %v2264
    %v2297 = vmax.bf16 %v2233, %v2265
    %v2298 = vmax.bf16 %v2234, %v2266
    %v2299 = vmax.bf16 %v2235, %v2267
    %v2300 = vmax.bf16 %v2236, %v2268
    %v2301 = vmax.bf16 %v2237, %v2269
    %v2302 = vmax.bf16 %v2238, %v2270
    %v2303 = vld [vmem:[#allocation3] sm:$0xff]
    %v2304 = vld [vmem:[#allocation3 + $0x8] sm:$0xff]
    %v2305 = vld [vmem:[#allocation3 + $0x10] sm:$0xff]
    %v2306 = vld [vmem:[#allocation3 + $0x18] sm:$0xff]
    %v2307 = vld [vmem:[#allocation3 + $0x20] sm:$0xff]
    %v2308 = vld [vmem:[#allocation3 + $0x28] sm:$0xff]
    %v2309 = vld [vmem:[#allocation3 + $0x30] sm:$0xff]
    %v2310 = vld [vmem:[#allocation3 + $0x38] sm:$0xff]
    %v2311 = vld [vmem:[#allocation3 + $0x40] sm:$0xff]
    %v2312 = vld [vmem:[#allocation3 + $0x48] sm:$0xff]
    %v2313 = vld [vmem:[#allocation3 + $0x50] sm:$0xff]
    %v2314 = vld [vmem:[#allocation3 + $0x58] sm:$0xff]
    %v2315 = vld [vmem:[#allocation3 + $0x60] sm:$0xff]
    %v2316 = vld [vmem:[#allocation3 + $0x68] sm:$0xff]
    %v2317 = vld [vmem:[#allocation3 + $0x70] sm:$0xff]
    %v2318 = vld [vmem:[#allocation3 + $0x78] sm:$0xff]
    %v2319 = vld [vmem:[#allocation3 + $0x80] sm:$0xff]
    %v2320 = vld [vmem:[#allocation3 + $0x88] sm:$0xff]
    %v2321 = vld [vmem:[#allocation3 + $0x90] sm:$0xff]
    %v2322 = vld [vmem:[#allocation3 + $0x98] sm:$0xff]
    %v2323 = vld [vmem:[#allocation3 + $0xa0] sm:$0xff]
    %v2324 = vld [vmem:[#allocation3 + $0xa8] sm:$0xff]
    %v2325 = vld [vmem:[#allocation3 + $0xb0] sm:$0xff]
    %v2326 = vld [vmem:[#allocation3 + $0xb8] sm:$0xff]
    %v2327 = vld [vmem:[#allocation3 + $0xc0] sm:$0xff]
    %v2328 = vld [vmem:[#allocation3 + $0xc8] sm:$0xff]
    %v2329 = vld [vmem:[#allocation3 + $0xd0] sm:$0xff]
    %v2330 = vld [vmem:[#allocation3 + $0xd8] sm:$0xff]
    %v2331 = vld [vmem:[#allocation3 + $0xe0] sm:$0xff]
    %v2332 = vld [vmem:[#allocation3 + $0xe8] sm:$0xff]
    %v2333 = vld [vmem:[#allocation3 + $0xf0] sm:$0xff]
    %v2334 = vld [vmem:[#allocation3 + $0xf8] sm:$0xff]
    %v2367 = vunpack.c.l.b16 %v2303
    %v2368 = vunpack.c.h.b16 %v2303
    %v2369 = vunpack.c.l.b16 %v2304
    %v2370 = vunpack.c.h.b16 %v2304
    %v2371 = vunpack.c.l.b16 %v2305
    %v2372 = vunpack.c.h.b16 %v2305
    %v2373 = vunpack.c.l.b16 %v2306
    %v2374 = vunpack.c.h.b16 %v2306
    %v2375 = vunpack.c.l.b16 %v2307
    %v2376 = vunpack.c.h.b16 %v2307
    %v2377 = vunpack.c.l.b16 %v2308
    %v2378 = vunpack.c.h.b16 %v2308
    %v2379 = vunpack.c.l.b16 %v2309
    %v2380 = vunpack.c.h.b16 %v2309
    %v2381 = vunpack.c.l.b16 %v2310
    %v2382 = vunpack.c.h.b16 %v2310
    %v2383 = vunpack.c.l.b16 %v2311
    %v2384 = vunpack.c.h.b16 %v2311
    %v2385 = vunpack.c.l.b16 %v2312
    %v2386 = vunpack.c.h.b16 %v2312
    %v2387 = vunpack.c.l.b16 %v2313
    %v2388 = vunpack.c.h.b16 %v2313
    %v2389 = vunpack.c.l.b16 %v2314
    %v2390 = vunpack.c.h.b16 %v2314
    %v2391 = vunpack.c.l.b16 %v2315
    %v2392 = vunpack.c.h.b16 %v2315
    %v2393 = vunpack.c.l.b16 %v2316
    %v2394 = vunpack.c.h.b16 %v2316
    %v2395 = vunpack.c.l.b16 %v2317
    %v2396 = vunpack.c.h.b16 %v2317
    %v2397 = vunpack.c.l.b16 %v2318
    %v2398 = vunpack.c.h.b16 %v2318
    %v2399 = vunpack.c.l.b16 %v2319
    %v2400 = vunpack.c.h.b16 %v2319
    %v2401 = vunpack.c.l.b16 %v2320
    %v2402 = vunpack.c.h.b16 %v2320
    %v2403 = vunpack.c.l.b16 %v2321
    %v2404 = vunpack.c.h.b16 %v2321
    %v2405 = vunpack.c.l.b16 %v2322
    %v2406 = vunpack.c.h.b16 %v2322
    %v2407 = vunpack.c.l.b16 %v2323
    %v2408 = vunpack.c.h.b16 %v2323
    %v2409 = vunpack.c.l.b16 %v2324
    %v2410 = vunpack.c.h.b16 %v2324
    %v2411 = vunpack.c.l.b16 %v2325
    %v2412 = vunpack.c.h.b16 %v2325
    %v2413 = vunpack.c.l.b16 %v2326
    %v2414 = vunpack.c.h.b16 %v2326
    %v2415 = vunpack.c.l.b16 %v2327
    %v2416 = vunpack.c.h.b16 %v2327
    %v2417 = vunpack.c.l.b16 %v2328
    %v2418 = vunpack.c.h.b16 %v2328
    %v2419 = vunpack.c.l.b16 %v2329
    %v2420 = vunpack.c.h.b16 %v2329
    %v2421 = vunpack.c.l.b16 %v2330
    %v2422 = vunpack.c.h.b16 %v2330
    %v2423 = vunpack.c.l.b16 %v2331
    %v2424 = vunpack.c.h.b16 %v2331
    %v2425 = vunpack.c.l.b16 %v2332
    %v2426 = vunpack.c.h.b16 %v2332
    %v2427 = vunpack.c.l.b16 %v2333
    %v2428 = vunpack.c.h.b16 %v2333
    %v2429 = vunpack.c.l.b16 %v2334
    %v2430 = vunpack.c.h.b16 %v2334
    %v2431 = vpack.c.b16 %v2369, %v2367
    %v2432 = vpack.c.b16 %v2370, %v2368
    %v2433 = vpack.c.b16 %v2373, %v2371
    %v2434 = vpack.c.b16 %v2374, %v2372
    %v2435 = vpack.c.b16 %v2377, %v2375
    %v2436 = vpack.c.b16 %v2378, %v2376
    %v2437 = vpack.c.b16 %v2381, %v2379
    %v2438 = vpack.c.b16 %v2382, %v2380
    %v2439 = vpack.c.b16 %v2385, %v2383
    %v2440 = vpack.c.b16 %v2386, %v2384
    %v2441 = vpack.c.b16 %v2389, %v2387
    %v2442 = vpack.c.b16 %v2390, %v2388
    %v2443 = vpack.c.b16 %v2393, %v2391
    %v2444 = vpack.c.b16 %v2394, %v2392
    %v2445 = vpack.c.b16 %v2397, %v2395
    %v2446 = vpack.c.b16 %v2398, %v2396
    %v2447 = vpack.c.b16 %v2401, %v2399
    %v2448 = vpack.c.b16 %v2402, %v2400
    %v2449 = vpack.c.b16 %v2405, %v2403
    %v2450 = vpack.c.b16 %v2406, %v2404
    %v2451 = vpack.c.b16 %v2409, %v2407
    %v2452 = vpack.c.b16 %v2410, %v2408
    %v2453 = vpack.c.b16 %v2413, %v2411
    %v2454 = vpack.c.b16 %v2414, %v2412
    %v2455 = vpack.c.b16 %v2417, %v2415
    %v2456 = vpack.c.b16 %v2418, %v2416
    %v2457 = vpack.c.b16 %v2421, %v2419
    %v2458 = vpack.c.b16 %v2422, %v2420
    %v2459 = vpack.c.b16 %v2425, %v2423
    %v2460 = vpack.c.b16 %v2426, %v2424
    %v2461 = vpack.c.b16 %v2429, %v2427
    %v2462 = vpack.c.b16 %v2430, %v2428
    %2495 = vmatprep.subr.bf16.mxu0 %v2432
    %2496 = vmatpush1.bf16.msra.mxu0 %v2431
    %2497 = vmatprep.subr.bf16.mxu0 %v2434
    %2498 = vmatpush1.bf16.msra.mxu0 %v2433
    %2499 = vmatprep.subr.bf16.mxu0 %v2436
    %2500 = vmatpush1.bf16.msra.mxu0 %v2435
    %2501 = vmatprep.subr.bf16.mxu0 %v2438
    %2502 = vmatpush1.bf16.msra.mxu0 %v2437
    %2503 = vmatprep.subr.bf16.mxu0 %v2440
    %2504 = vmatpush1.bf16.msra.mxu0 %v2439
    %2505 = vmatprep.subr.bf16.mxu0 %v2442
    %2506 = vmatpush1.bf16.msra.mxu0 %v2441
    %2507 = vmatprep.subr.bf16.mxu0 %v2444
    %2508 = vmatpush1.bf16.msra.mxu0 %v2443
    %2509 = vmatprep.subr.bf16.mxu0 %v2446
    %2510 = vmatpush1.bf16.msra.mxu0 %v2445
    %2511 = vmatprep.subr.bf16.mxu0 %v2448
    %2512 = vmatpush1.bf16.msra.mxu0 %v2447
    %2513 = vmatprep.subr.bf16.mxu0 %v2450
    %2514 = vmatpush1.bf16.msra.mxu0 %v2449
    %2515 = vmatprep.subr.bf16.mxu0 %v2452
    %2516 = vmatpush1.bf16.msra.mxu0 %v2451
    %2517 = vmatprep.subr.bf16.mxu0 %v2454
    %2518 = vmatpush1.bf16.msra.mxu0 %v2453
    %2519 = vmatprep.subr.bf16.mxu0 %v2456
    %2520 = vmatpush1.bf16.msra.mxu0 %v2455
    %2521 = vmatprep.subr.bf16.mxu0 %v2458
    %2522 = vmatpush1.bf16.msra.mxu0 %v2457
    %2523 = vmatprep.subr.bf16.mxu0 %v2460
    %2524 = vmatpush1.bf16.msra.mxu0 %v2459
    %2525 = vmatprep.subr.bf16.mxu0 %v2462
    %2526 = vmatpush1.bf16.msra.mxu0 %v2461
    %2527 = vmatprep.mubr.bf16.mxu0 %v2272
    %2528 = vmatmul.mubr.bf16.gmra.mrb[0].mxu0 %v2271
    %v2529 = vpop.f32.mrb[0].mxu0
    %v2530 = vadd.f32 0.0, %v2529
    %v2531 = vpop.f32.mrb[0].mxu0
    %v2532 = vadd.f32 0.0, %v2531
    %v2533 = vpop.f32.mrb[0].mxu0
    %v2534 = vadd.f32 0.0, %v2533
    %v2535 = vpop.f32.mrb[0].mxu0
    %v2536 = vadd.f32 0.0, %v2535
    %2537 = vmatprep.mubr.bf16.mxu0 %v2274
    %2538 = vmatmul.mubr.bf16.gmra.mrb[0].mxu0 %v2273
    %v2539 = vpop.f32.mrb[0].mxu0
    %v2540 = vadd.f32 0.0, %v2539
    %v2541 = vpop.f32.mrb[0].mxu0
    %v2542 = vadd.f32 0.0, %v2541
    %v2543 = vpop.f32.mrb[0].mxu0
    %v2544 = vadd.f32 0.0, %v2543
    %v2545 = vpop.f32.mrb[0].mxu0
    %v2546 = vadd.f32 0.0, %v2545
    %2547 = vmatprep.mubr.bf16.mxu0 %v2276
    %2548 = vmatmul.mubr.bf16.gmra.mrb[0].mxu0 %v2275
    %v2549 = vpop.f32.mrb[0].mxu0
    %v2550 = vadd.f32 0.0, %v2549
    %v2551 = vpop.f32.mrb[0].mxu0
    %v2552 = vadd.f32 0.0, %v2551
    %v2553 = vpop.f32.mrb[0].mxu0
    %v2554 = vadd.f32 0.0, %v2553
    %v2555 = vpop.f32.mrb[0].mxu0
    %v2556 = vadd.f32 0.0, %v2555
    %2557 = vmatprep.mubr.bf16.mxu0 %v2278
    %2558 = vmatmul.mubr.bf16.gmra.mrb[0].mxu0 %v2277
    %v2559 = vpop.f32.mrb[0].mxu0
    %v2560 = vadd.f32 0.0, %v2559
    %v2561 = vpop.f32.mrb[0].mxu0
    %v2562 = vadd.f32 0.0, %v2561
    %v2563 = vpop.f32.mrb[0].mxu0
    %v2564 = vadd.f32 0.0, %v2563
    %v2565 = vpop.f32.mrb[0].mxu0
    %v2566 = vadd.f32 0.0, %v2565
    %2567 = vmatprep.mubr.bf16.mxu0 %v2280
    %2568 = vmatmul.mubr.bf16.gmra.mrb[0].mxu0 %v2279
    %v2569 = vpop.f32.mrb[0].mxu0
    %v2570 = vadd.f32 0.0, %v2569
    %v2571 = vpop.f32.mrb[0].mxu0
    %v2572 = vadd.f32 0.0, %v2571
    %v2573 = vpop.f32.mrb[0].mxu0
    %v2574 = vadd.f32 0.0, %v2573
    %v2575 = vpop.f32.mrb[0].mxu0
    %v2576 = vadd.f32 0.0, %v2575
    %2577 = vmatprep.mubr.bf16.mxu0 %v2282
    %2578 = vmatmul.mubr.bf16.gmra.mrb[0].mxu0 %v2281
    %v2579 = vpop.f32.mrb[0].mxu0
    %v2580 = vadd.f32 0.0, %v2579
    %v2581 = vpop.f32.mrb[0].mxu0
    %v2582 = vadd.f32 0.0, %v2581
    %v2583 = vpop.f32.mrb[0].mxu0
    %v2584 = vadd.f32 0.0, %v2583
    %v2585 = vpop.f32.mrb[0].mxu0
    %v2586 = vadd.f32 0.0, %v2585
    %2587 = vmatprep.mubr.bf16.mxu0 %v2284
    %2588 = vmatmul.mubr.bf16.gmra.mrb[0].mxu0 %v2283
    %v2589 = vpop.f32.mrb[0].mxu0
    %v2590 = vadd.f32 0.0, %v2589
    %v2591 = vpop.f32.mrb[0].mxu0
    %v2592 = vadd.f32 0.0, %v2591
    %v2593 = vpop.f32.mrb[0].mxu0
    %v2594 = vadd.f32 0.0, %v2593
    %v2595 = vpop.f32.mrb[0].mxu0
    %v2596 = vadd.f32 0.0, %v2595
    %2597 = vmatprep.mubr.bf16.mxu0 %v2286
    %2598 = vmatmul.mubr.bf16.gmra.mrb[0].mxu0 %v2285
    %v2599 = vpop.f32.mrb[0].mxu0
    %v2600 = vadd.f32 0.0, %v2599
    %v2601 = vpop.f32.mrb[0].mxu0
    %v2602 = vadd.f32 0.0, %v2601
    %v2603 = vpop.f32.mrb[0].mxu0
    %v2604 = vadd.f32 0.0, %v2603
    %v2605 = vpop.f32.mrb[0].mxu0
    %v2606 = vadd.f32 0.0, %v2605
    %2607 = vmatprep.mubr.bf16.mxu0 %v2288
    %2608 = vmatmul.mubr.bf16.gmra.mrb[0].mxu0 %v2287
    %v2609 = vpop.f32.mrb[0].mxu0
    %v2610 = vadd.f32 0.0, %v2609
    %v2611 = vpop.f32.mrb[0].mxu0
    %v2612 = vadd.f32 0.0, %v2611
    %v2613 = vpop.f32.mrb[0].mxu0
    %v2614 = vadd.f32 0.0, %v2613
    %v2615 = vpop.f32.mrb[0].mxu0
    %v2616 = vadd.f32 0.0, %v2615
    %2617 = vmatprep.mubr.bf16.mxu0 %v2290
    %2618 = vmatmul.mubr.bf16.gmra.mrb[0].mxu0 %v2289
    %v2619 = vpop.f32.mrb[0].mxu0
    %v2620 = vadd.f32 0.0, %v2619
    %v2621 = vpop.f32.mrb[0].mxu0
    %v2622 = vadd.f32 0.0, %v2621
    %v2623 = vpop.f32.mrb[0].mxu0
    %v2624 = vadd.f32 0.0, %v2623
    %v2625 = vpop.f32.mrb[0].mxu0
    %v2626 = vadd.f32 0.0, %v2625
    %2627 = vmatprep.mubr.bf16.mxu0 %v2292
    %2628 = vmatmul.mubr.bf16.gmra.mrb[0].mxu0 %v2291
    %v2629 = vpop.f32.mrb[0].mxu0
    %v2630 = vadd.f32 0.0, %v2629
    %v2631 = vpop.f32.mrb[0].mxu0
    %v2632 = vadd.f32 0.0, %v2631
    %v2633 = vpop.f32.mrb[0].mxu0
    %v2634 = vadd.f32 0.0, %v2633
    %v2635 = vpop.f32.mrb[0].mxu0
    %v2636 = vadd.f32 0.0, %v2635
    %2637 = vmatprep.mubr.bf16.mxu0 %v2294
    %2638 = vmatmul.mubr.bf16.gmra.mrb[0].mxu0 %v2293
    %v2639 = vpop.f32.mrb[0].mxu0
    %v2640 = vadd.f32 0.0, %v2639
    %v2641 = vpop.f32.mrb[0].mxu0
    %v2642 = vadd.f32 0.0, %v2641
    %v2643 = vpop.f32.mrb[0].mxu0
    %v2644 = vadd.f32 0.0, %v2643
    %v2645 = vpop.f32.mrb[0].mxu0
    %v2646 = vadd.f32 0.0, %v2645
    %2647 = vmatprep.mubr.bf16.mxu0 %v2296
    %2648 = vmatmul.mubr.bf16.gmra.mrb[0].mxu0 %v2295
    %v2649 = vpop.f32.mrb[0].mxu0
    %v2650 = vadd.f32 0.0, %v2649
    %v2651 = vpop.f32.mrb[0].mxu0
    %v2652 = vadd.f32 0.0, %v2651
    %v2653 = vpop.f32.mrb[0].mxu0
    %v2654 = vadd.f32 0.0, %v2653
    %v2655 = vpop.f32.mrb[0].mxu0
    %v2656 = vadd.f32 0.0, %v2655
    %2657 = vmatprep.mubr.bf16.mxu0 %v2298
    %2658 = vmatmul.mubr.bf16.gmra.mrb[0].mxu0 %v2297
    %v2659 = vpop.f32.mrb[0].mxu0
    %v2660 = vadd.f32 0.0, %v2659
    %v2661 = vpop.f32.mrb[0].mxu0
    %v2662 = vadd.f32 0.0, %v2661
    %v2663 = vpop.f32.mrb[0].mxu0
    %v2664 = vadd.f32 0.0, %v2663
    %v2665 = vpop.f32.mrb[0].mxu0
    %v2666 = vadd.f32 0.0, %v2665
    %2667 = vmatprep.mubr.bf16.mxu0 %v2300
    %2668 = vmatmul.mubr.bf16.gmra.mrb[0].mxu0 %v2299
    %v2669 = vpop.f32.mrb[0].mxu0
    %v2670 = vadd.f32 0.0, %v2669
    %v2671 = vpop.f32.mrb[0].mxu0
    %v2672 = vadd.f32 0.0, %v2671
    %v2673 = vpop.f32.mrb[0].mxu0
    %v2674 = vadd.f32 0.0, %v2673
    %v2675 = vpop.f32.mrb[0].mxu0
    %v2676 = vadd.f32 0.0, %v2675
    %2677 = vmatprep.mubr.bf16.mxu0 %v2302
    %2678 = vmatmul.mubr.bf16.gmra.mrb[0].mxu0 %v2301
    %v2679 = vpop.f32.mrb[0].mxu0
    %v2680 = vadd.f32 0.0, %v2679
    %v2681 = vpop.f32.mrb[0].mxu0
    %v2682 = vadd.f32 0.0, %v2681
    %v2683 = vpop.f32.mrb[0].mxu0
    %v2684 = vadd.f32 0.0, %v2683
    %v2685 = vpop.f32.mrb[0].mxu0
    %v2686 = vadd.f32 0.0, %v2685
    %2687 = vdwg.mxu0
    %v2688 = vpack.c.bf16 %v2534, %v2530
    %v2689 = vpack.c.bf16 %v2536, %v2532
    %v2690 = vpack.c.bf16 %v2544, %v2540
    %v2691 = vpack.c.bf16 %v2546, %v2542
    %v2692 = vpack.c.bf16 %v2554, %v2550
    %v2693 = vpack.c.bf16 %v2556, %v2552
    %v2694 = vpack.c.bf16 %v2564, %v2560
    %v2695 = vpack.c.bf16 %v2566, %v2562
    %v2696 = vpack.c.bf16 %v2574, %v2570
    %v2697 = vpack.c.bf16 %v2576, %v2572
    %v2698 = vpack.c.bf16 %v2584, %v2580
    %v2699 = vpack.c.bf16 %v2586, %v2582
    %v2700 = vpack.c.bf16 %v2594, %v2590
    %v2701 = vpack.c.bf16 %v2596, %v2592
    %v2702 = vpack.c.bf16 %v2604, %v2600
    %v2703 = vpack.c.bf16 %v2606, %v2602
    %v2704 = vpack.c.bf16 %v2614, %v2610
    %v2705 = vpack.c.bf16 %v2616, %v2612
    %v2706 = vpack.c.bf16 %v2624, %v2620
    %v2707 = vpack.c.bf16 %v2626, %v2622
    %v2708 = vpack.c.bf16 %v2634, %v2630
    %v2709 = vpack.c.bf16 %v2636, %v2632
    %v2710 = vpack.c.bf16 %v2644, %v2640
    %v2711 = vpack.c.bf16 %v2646, %v2642
    %v2712 = vpack.c.bf16 %v2654, %v2650
    %v2713 = vpack.c.bf16 %v2656, %v2652
    %v2714 = vpack.c.bf16 %v2664, %v2660
    %v2715 = vpack.c.bf16 %v2666, %v2662
    %v2716 = vpack.c.bf16 %v2674, %v2670
    %v2717 = vpack.c.bf16 %v2676, %v2672
    %v2718 = vpack.c.bf16 %v2684, %v2680
    %v2719 = vpack.c.bf16 %v2686, %v2682
    %v2720 = vlaneseq
    %v2721 = vshrl.u32 %v2720, 7
    %v2722 = vsub.s32 1, %v2721
    %v2723 = vrot.slane %v1673, %v2722
    %v2724 = vlaneseq
    %v2725 = vshrl.u32 %v2724, 7
    %v2726 = vsub.s32 1, %v2725
    %v2727 = vrot.slane %v1680, %v2726
    %v2728 = vadd.bf16 %v2688, %v2723
    %v2729 = vadd.bf16 %v2689, %v2727
    %v2730 = vadd.bf16 %v2690, %v2723
    %v2731 = vadd.bf16 %v2691, %v2727
    %v2732 = vadd.bf16 %v2692, %v2723
    %v2733 = vadd.bf16 %v2693, %v2727
    %v2734 = vadd.bf16 %v2694, %v2723
    %v2735 = vadd.bf16 %v2695, %v2727
    %v2736 = vadd.bf16 %v2696, %v2723
    %v2737 = vadd.bf16 %v2697, %v2727
    %v2738 = vadd.bf16 %v2698, %v2723
    %v2739 = vadd.bf16 %v2699, %v2727
    %v2740 = vadd.bf16 %v2700, %v2723
    %v2741 = vadd.bf16 %v2701, %v2727
    %v2742 = vadd.bf16 %v2702, %v2723
    %v2743 = vadd.bf16 %v2703, %v2727
    %v2744 = vadd.bf16 %v2704, %v2723
    %v2745 = vadd.bf16 %v2705, %v2727
    %v2746 = vadd.bf16 %v2706, %v2723
    %v2747 = vadd.bf16 %v2707, %v2727
    %v2748 = vadd.bf16 %v2708, %v2723
    %v2749 = vadd.bf16 %v2709, %v2727
    %v2750 = vadd.bf16 %v2710, %v2723
    %v2751 = vadd.bf16 %v2711, %v2727
    %v2752 = vadd.bf16 %v2712, %v2723
    %v2753 = vadd.bf16 %v2713, %v2727
    %v2754 = vadd.bf16 %v2714, %v2723
    %v2755 = vadd.bf16 %v2715, %v2727
    %v2756 = vadd.bf16 %v2716, %v2723
    %v2757 = vadd.bf16 %v2717, %v2727
    %v2758 = vadd.bf16 %v2718, %v2723
    %v2759 = vadd.bf16 %v2719, %v2727
    %v2760 = vmul.bf16 %v2728, 1009007652
    %v2761 = vmul.bf16 %v2729, 1009007652
    %v2762 = vmul.bf16 %v2730, 1009007652
    %v2763 = vmul.bf16 %v2731, 1009007652
    %v2764 = vmul.bf16 %v2732, 1009007652
    %v2765 = vmul.bf16 %v2733, 1009007652
    %v2766 = vmul.bf16 %v2734, 1009007652
    %v2767 = vmul.bf16 %v2735, 1009007652
    %v2768 = vmul.bf16 %v2736, 1009007652
    %v2769 = vmul.bf16 %v2737, 1009007652
    %v2770 = vmul.bf16 %v2738, 1009007652
    %v2771 = vmul.bf16 %v2739, 1009007652
    %v2772 = vmul.bf16 %v2740, 1009007652
    %v2773 = vmul.bf16 %v2741, 1009007652
    %v2774 = vmul.bf16 %v2742, 1009007652
    %v2775 = vmul.bf16 %v2743, 1009007652
    %v2776 = vmul.bf16 %v2744, 1009007652
    %v2777 = vmul.bf16 %v2745, 1009007652
    %v2778 = vmul.bf16 %v2746, 1009007652
    %v2779 = vmul.bf16 %v2747, 1009007652
    %v2780 = vmul.bf16 %v2748, 1009007652
    %v2781 = vmul.bf16 %v2749, 1009007652
    %v2782 = vmul.bf16 %v2750, 1009007652
    %v2783 = vmul.bf16 %v2751, 1009007652
    %v2784 = vmul.bf16 %v2752, 1009007652
    %v2785 = vmul.bf16 %v2753, 1009007652
    %v2786 = vmul.bf16 %v2754, 1009007652
    %v2787 = vmul.bf16 %v2755, 1009007652
    %v2788 = vmul.bf16 %v2756, 1009007652
    %v2789 = vmul.bf16 %v2757, 1009007652
    %v2790 = vmul.bf16 %v2758, 1009007652
    %v2791 = vmul.bf16 %v2759, 1009007652
    %v2792 = vmax.bf16 %v2728, %v2760
    %v2793 = vmax.bf16 %v2729, %v2761
    %v2794 = vmax.bf16 %v2730, %v2762
    %v2795 = vmax.bf16 %v2731, %v2763
    %v2796 = vmax.bf16 %v2732, %v2764
    %v2797 = vmax.bf16 %v2733, %v2765
    %v2798 = vmax.bf16 %v2734, %v2766
    %v2799 = vmax.bf16 %v2735, %v2767
    %v2800 = vmax.bf16 %v2736, %v2768
    %v2801 = vmax.bf16 %v2737, %v2769
    %v2802 = vmax.bf16 %v2738, %v2770
    %v2803 = vmax.bf16 %v2739, %v2771
    %v2804 = vmax.bf16 %v2740, %v2772
    %v2805 = vmax.bf16 %v2741, %v2773
    %v2806 = vmax.bf16 %v2742, %v2774
    %v2807 = vmax.bf16 %v2743, %v2775
    %v2808 = vmax.bf16 %v2744, %v2776
    %v2809 = vmax.bf16 %v2745, %v2777
    %v2810 = vmax.bf16 %v2746, %v2778
    %v2811 = vmax.bf16 %v2747, %v2779
    %v2812 = vmax.bf16 %v2748, %v2780
    %v2813 = vmax.bf16 %v2749, %v2781
    %v2814 = vmax.bf16 %v2750, %v2782
    %v2815 = vmax.bf16 %v2751, %v2783
    %v2816 = vmax.bf16 %v2752, %v2784
    %v2817 = vmax.bf16 %v2753, %v2785
    %v2818 = vmax.bf16 %v2754, %v2786
    %v2819 = vmax.bf16 %v2755, %v2787
    %v2820 = vmax.bf16 %v2756, %v2788
    %v2821 = vmax.bf16 %v2757, %v2789
    %v2822 = vmax.bf16 %v2758, %v2790
    %v2823 = vmax.bf16 %v2759, %v2791
    %v2824 = vld [vmem:[#allocation5] sm:$0xff]
    %v2825 = vld [vmem:[#allocation5 + $0x8] sm:$0xff]
    %v2826 = vld [vmem:[#allocation5 + $0x10] sm:$0xff]
    %v2827 = vld [vmem:[#allocation5 + $0x18] sm:$0xff]
    %v2828 = vld [vmem:[#allocation5 + $0x20] sm:$0xff]
    %v2829 = vld [vmem:[#allocation5 + $0x28] sm:$0xff]
    %v2830 = vld [vmem:[#allocation5 + $0x30] sm:$0xff]
    %v2831 = vld [vmem:[#allocation5 + $0x38] sm:$0xff]
    %v2832 = vld [vmem:[#allocation5 + $0x40] sm:$0xff]
    %v2833 = vld [vmem:[#allocation5 + $0x48] sm:$0xff]
    %v2834 = vld [vmem:[#allocation5 + $0x50] sm:$0xff]
    %v2835 = vld [vmem:[#allocation5 + $0x58] sm:$0xff]
    %v2836 = vld [vmem:[#allocation5 + $0x60] sm:$0xff]
    %v2837 = vld [vmem:[#allocation5 + $0x68] sm:$0xff]
    %v2838 = vld [vmem:[#allocation5 + $0x70] sm:$0xff]
    %v2839 = vld [vmem:[#allocation5 + $0x78] sm:$0xff]
    %v2840 = vld [vmem:[#allocation5 + $0x80] sm:$0xff]
    %v2841 = vld [vmem:[#allocation5 + $0x88] sm:$0xff]
    %v2842 = vld [vmem:[#allocation5 + $0x90] sm:$0xff]
    %v2843 = vld [vmem:[#allocation5 + $0x98] sm:$0xff]
    %v2844 = vld [vmem:[#allocation5 + $0xa0] sm:$0xff]
    %v2845 = vld [vmem:[#allocation5 + $0xa8] sm:$0xff]
    %v2846 = vld [vmem:[#allocation5 + $0xb0] sm:$0xff]
    %v2847 = vld [vmem:[#allocation5 + $0xb8] sm:$0xff]
    %v2848 = vld [vmem:[#allocation5 + $0xc0] sm:$0xff]
    %v2849 = vld [vmem:[#allocation5 + $0xc8] sm:$0xff]
    %v2850 = vld [vmem:[#allocation5 + $0xd0] sm:$0xff]
    %v2851 = vld [vmem:[#allocation5 + $0xd8] sm:$0xff]
    %v2852 = vld [vmem:[#allocation5 + $0xe0] sm:$0xff]
    %v2853 = vld [vmem:[#allocation5 + $0xe8] sm:$0xff]
    %v2854 = vld [vmem:[#allocation5 + $0xf0] sm:$0xff]
    %v2855 = vld [vmem:[#allocation5 + $0xf8] sm:$0xff]
    %v2856 = vld [vmem:[#allocation5 + $0x100] sm:$0xff]
    %v2857 = vld [vmem:[#allocation5 + $0x108] sm:$0xff]
    %v2858 = vld [vmem:[#allocation5 + $0x110] sm:$0xff]
    %v2859 = vld [vmem:[#allocation5 + $0x118] sm:$0xff]
    %v2860 = vld [vmem:[#allocation5 + $0x120] sm:$0xff]
    %v2861 = vld [vmem:[#allocation5 + $0x128] sm:$0xff]
    %v2862 = vld [vmem:[#allocation5 + $0x130] sm:$0xff]
    %v2863 = vld [vmem:[#allocation5 + $0x138] sm:$0xff]
    %v2864 = vld [vmem:[#allocation5 + $0x140] sm:$0xff]
    %v2865 = vld [vmem:[#allocation5 + $0x148] sm:$0xff]
    %v2866 = vld [vmem:[#allocation5 + $0x150] sm:$0xff]
    %v2867 = vld [vmem:[#allocation5 + $0x158] sm:$0xff]
    %v2868 = vld [vmem:[#allocation5 + $0x160] sm:$0xff]
    %v2869 = vld [vmem:[#allocation5 + $0x168] sm:$0xff]
    %v2870 = vld [vmem:[#allocation5 + $0x170] sm:$0xff]
    %v2871 = vld [vmem:[#allocation5 + $0x178] sm:$0xff]
    %v2872 = vld [vmem:[#allocation5 + $0x180] sm:$0xff]
    %v2873 = vld [vmem:[#allocation5 + $0x188] sm:$0xff]
    %v2874 = vld [vmem:[#allocation5 + $0x190] sm:$0xff]
    %v2875 = vld [vmem:[#allocation5 + $0x198] sm:$0xff]
    %v2876 = vld [vmem:[#allocation5 + $0x1a0] sm:$0xff]
    %v2877 = vld [vmem:[#allocation5 + $0x1a8] sm:$0xff]
    %v2878 = vld [vmem:[#allocation5 + $0x1b0] sm:$0xff]
    %v2879 = vld [vmem:[#allocation5 + $0x1b8] sm:$0xff]
    %v2880 = vld [vmem:[#allocation5 + $0x1c0] sm:$0xff]
    %v2881 = vld [vmem:[#allocation5 + $0x1c8] sm:$0xff]
    %v2882 = vld [vmem:[#allocation5 + $0x1d0] sm:$0xff]
    %v2883 = vld [vmem:[#allocation5 + $0x1d8] sm:$0xff]
    %v2884 = vld [vmem:[#allocation5 + $0x1e0] sm:$0xff]
    %v2885 = vld [vmem:[#allocation5 + $0x1e8] sm:$0xff]
    %v2886 = vld [vmem:[#allocation5 + $0x1f0] sm:$0xff]
    %v2887 = vld [vmem:[#allocation5 + $0x1f8] sm:$0xff]
    %v2888 = vld [vmem:[#allocation5 + $0x200] sm:$0xff]
    %v2889 = vld [vmem:[#allocation5 + $0x208] sm:$0xff]
    %v2890 = vld [vmem:[#allocation5 + $0x210] sm:$0xff]
    %v2891 = vld [vmem:[#allocation5 + $0x218] sm:$0xff]
    %v2892 = vld [vmem:[#allocation5 + $0x220] sm:$0xff]
    %v2893 = vld [vmem:[#allocation5 + $0x228] sm:$0xff]
    %v2894 = vld [vmem:[#allocation5 + $0x230] sm:$0xff]
    %v2895 = vld [vmem:[#allocation5 + $0x238] sm:$0xff]
    %v2896 = vld [vmem:[#allocation5 + $0x240] sm:$0xff]
    %v2897 = vld [vmem:[#allocation5 + $0x248] sm:$0xff]
    %v2898 = vld [vmem:[#allocation5 + $0x250] sm:$0xff]
    %v2899 = vld [vmem:[#allocation5 + $0x258] sm:$0xff]
    %v2900 = vld [vmem:[#allocation5 + $0x260] sm:$0xff]
    %v2901 = vld [vmem:[#allocation5 + $0x268] sm:$0xff]
    %v2902 = vld [vmem:[#allocation5 + $0x270] sm:$0xff]
    %v2903 = vld [vmem:[#allocation5 + $0x278] sm:$0xff]
    %v2904 = vld [vmem:[#allocation5 + $0x280] sm:$0xff]
    %v2905 = vld [vmem:[#allocation5 + $0x288] sm:$0xff]
    %v2906 = vld [vmem:[#allocation5 + $0x290] sm:$0xff]
    %v2907 = vld [vmem:[#allocation5 + $0x298] sm:$0xff]
    %v2908 = vld [vmem:[#allocation5 + $0x2a0] sm:$0xff]
    %v2909 = vld [vmem:[#allocation5 + $0x2a8] sm:$0xff]
    %v2910 = vld [vmem:[#allocation5 + $0x2b0] sm:$0xff]
    %v2911 = vld [vmem:[#allocation5 + $0x2b8] sm:$0xff]
    %v2912 = vld [vmem:[#allocation5 + $0x2c0] sm:$0xff]
    %v2913 = vld [vmem:[#allocation5 + $0x2c8] sm:$0xff]
    %v2914 = vld [vmem:[#allocation5 + $0x2d0] sm:$0xff]
    %v2915 = vld [vmem:[#allocation5 + $0x2d8] sm:$0xff]
    %v2916 = vld [vmem:[#allocation5 + $0x2e0] sm:$0xff]
    %v2917 = vld [vmem:[#allocation5 + $0x2e8] sm:$0xff]
    %v2918 = vld [vmem:[#allocation5 + $0x2f0] sm:$0xff]
    %v2919 = vld [vmem:[#allocation5 + $0x2f8] sm:$0xff]
    %v2920 = vld [vmem:[#allocation5 + $0x300] sm:$0xff]
    %v2921 = vld [vmem:[#allocation5 + $0x308] sm:$0xff]
    %v2922 = vld [vmem:[#allocation5 + $0x310] sm:$0xff]
    %v2923 = vld [vmem:[#allocation5 + $0x318] sm:$0xff]
    %v2924 = vld [vmem:[#allocation5 + $0x320] sm:$0xff]
    %v2925 = vld [vmem:[#allocation5 + $0x328] sm:$0xff]
    %v2926 = vld [vmem:[#allocation5 + $0x330] sm:$0xff]
    %v2927 = vld [vmem:[#allocation5 + $0x338] sm:$0xff]
    %v2928 = vld [vmem:[#allocation5 + $0x340] sm:$0xff]
    %v2929 = vld [vmem:[#allocation5 + $0x348] sm:$0xff]
    %v2930 = vld [vmem:[#allocation5 + $0x350] sm:$0xff]
    %v2931 = vld [vmem:[#allocation5 + $0x358] sm:$0xff]
    %v2932 = vld [vmem:[#allocation5 + $0x360] sm:$0xff]
    %v2933 = vld [vmem:[#allocation5 + $0x368] sm:$0xff]
    %v2934 = vld [vmem:[#allocation5 + $0x370] sm:$0xff]
    %v2935 = vld [vmem:[#allocation5 + $0x378] sm:$0xff]
    %v2936 = vld [vmem:[#allocation5 + $0x380] sm:$0xff]
    %v2937 = vld [vmem:[#allocation5 + $0x388] sm:$0xff]
    %v2938 = vld [vmem:[#allocation5 + $0x390] sm:$0xff]
    %v2939 = vld [vmem:[#allocation5 + $0x398] sm:$0xff]
    %v2940 = vld [vmem:[#allocation5 + $0x3a0] sm:$0xff]
    %v2941 = vld [vmem:[#allocation5 + $0x3a8] sm:$0xff]
    %v2942 = vld [vmem:[#allocation5 + $0x3b0] sm:$0xff]
    %v2943 = vld [vmem:[#allocation5 + $0x3b8] sm:$0xff]
    %v2944 = vld [vmem:[#allocation5 + $0x3c0] sm:$0xff]
    %v2945 = vld [vmem:[#allocation5 + $0x3c8] sm:$0xff]
    %v2946 = vld [vmem:[#allocation5 + $0x3d0] sm:$0xff]
    %v2947 = vld [vmem:[#allocation5 + $0x3d8] sm:$0xff]
    %v2948 = vld [vmem:[#allocation5 + $0x3e0] sm:$0xff]
    %v2949 = vld [vmem:[#allocation5 + $0x3e8] sm:$0xff]
    %v2950 = vld [vmem:[#allocation5 + $0x3f0] sm:$0xff]
    %v2951 = vld [vmem:[#allocation5 + $0x3f8] sm:$0xff]
    %v3080 = vunpack.c.l.b16 %v2824
    %v3081 = vunpack.c.h.b16 %v2824
    %v3082 = vunpack.c.l.b16 %v2825
    %v3083 = vunpack.c.h.b16 %v2825
    %v3084 = vunpack.c.l.b16 %v2826
    %v3085 = vunpack.c.h.b16 %v2826
    %v3086 = vunpack.c.l.b16 %v2827
    %v3087 = vunpack.c.h.b16 %v2827
    %v3088 = vunpack.c.l.b16 %v2828
    %v3089 = vunpack.c.h.b16 %v2828
    %v3090 = vunpack.c.l.b16 %v2829
    %v3091 = vunpack.c.h.b16 %v2829
    %v3092 = vunpack.c.l.b16 %v2830
    %v3093 = vunpack.c.h.b16 %v2830
    %v3094 = vunpack.c.l.b16 %v2831
    %v3095 = vunpack.c.h.b16 %v2831
    %v3096 = vunpack.c.l.b16 %v2832
    %v3097 = vunpack.c.h.b16 %v2832
    %v3098 = vunpack.c.l.b16 %v2833
    %v3099 = vunpack.c.h.b16 %v2833
    %v3100 = vunpack.c.l.b16 %v2834
    %v3101 = vunpack.c.h.b16 %v2834
    %v3102 = vunpack.c.l.b16 %v2835
    %v3103 = vunpack.c.h.b16 %v2835
    %v3104 = vunpack.c.l.b16 %v2836
    %v3105 = vunpack.c.h.b16 %v2836
    %v3106 = vunpack.c.l.b16 %v2837
    %v3107 = vunpack.c.h.b16 %v2837
    %v3108 = vunpack.c.l.b16 %v2838
    %v3109 = vunpack.c.h.b16 %v2838
    %v3110 = vunpack.c.l.b16 %v2839
    %v3111 = vunpack.c.h.b16 %v2839
    %v3112 = vunpack.c.l.b16 %v2840
    %v3113 = vunpack.c.h.b16 %v2840
    %v3114 = vunpack.c.l.b16 %v2841
    %v3115 = vunpack.c.h.b16 %v2841
    %v3116 = vunpack.c.l.b16 %v2842
    %v3117 = vunpack.c.h.b16 %v2842
    %v3118 = vunpack.c.l.b16 %v2843
    %v3119 = vunpack.c.h.b16 %v2843
    %v3120 = vunpack.c.l.b16 %v2844
    %v3121 = vunpack.c.h.b16 %v2844
    %v3122 = vunpack.c.l.b16 %v2845
    %v3123 = vunpack.c.h.b16 %v2845
    %v3124 = vunpack.c.l.b16 %v2846
    %v3125 = vunpack.c.h.b16 %v2846
    %v3126 = vunpack.c.l.b16 %v2847
    %v3127 = vunpack.c.h.b16 %v2847
    %v3128 = vunpack.c.l.b16 %v2848
    %v3129 = vunpack.c.h.b16 %v2848
    %v3130 = vunpack.c.l.b16 %v2849
    %v3131 = vunpack.c.h.b16 %v2849
    %v3132 = vunpack.c.l.b16 %v2850
    %v3133 = vunpack.c.h.b16 %v2850
    %v3134 = vunpack.c.l.b16 %v2851
    %v3135 = vunpack.c.h.b16 %v2851
    %v3136 = vunpack.c.l.b16 %v2852
    %v3137 = vunpack.c.h.b16 %v2852
    %v3138 = vunpack.c.l.b16 %v2853
    %v3139 = vunpack.c.h.b16 %v2853
    %v3140 = vunpack.c.l.b16 %v2854
    %v3141 = vunpack.c.h.b16 %v2854
    %v3142 = vunpack.c.l.b16 %v2855
    %v3143 = vunpack.c.h.b16 %v2855
    %v3144 = vunpack.c.l.b16 %v2856
    %v3145 = vunpack.c.h.b16 %v2856
    %v3146 = vunpack.c.l.b16 %v2857
    %v3147 = vunpack.c.h.b16 %v2857
    %v3148 = vunpack.c.l.b16 %v2858
    %v3149 = vunpack.c.h.b16 %v2858
    %v3150 = vunpack.c.l.b16 %v2859
    %v3151 = vunpack.c.h.b16 %v2859
    %v3152 = vunpack.c.l.b16 %v2860
    %v3153 = vunpack.c.h.b16 %v2860
    %v3154 = vunpack.c.l.b16 %v2861
    %v3155 = vunpack.c.h.b16 %v2861
    %v3156 = vunpack.c.l.b16 %v2862
    %v3157 = vunpack.c.h.b16 %v2862
    %v3158 = vunpack.c.l.b16 %v2863
    %v3159 = vunpack.c.h.b16 %v2863
    %v3160 = vunpack.c.l.b16 %v2864
    %v3161 = vunpack.c.h.b16 %v2864
    %v3162 = vunpack.c.l.b16 %v2865
    %v3163 = vunpack.c.h.b16 %v2865
    %v3164 = vunpack.c.l.b16 %v2866
    %v3165 = vunpack.c.h.b16 %v2866
    %v3166 = vunpack.c.l.b16 %v2867
    %v3167 = vunpack.c.h.b16 %v2867
    %v3168 = vunpack.c.l.b16 %v2868
    %v3169 = vunpack.c.h.b16 %v2868
    %v3170 = vunpack.c.l.b16 %v2869
    %v3171 = vunpack.c.h.b16 %v2869
    %v3172 = vunpack.c.l.b16 %v2870
    %v3173 = vunpack.c.h.b16 %v2870
    %v3174 = vunpack.c.l.b16 %v2871
    %v3175 = vunpack.c.h.b16 %v2871
    %v3176 = vunpack.c.l.b16 %v2872
    %v3177 = vunpack.c.h.b16 %v2872
    %v3178 = vunpack.c.l.b16 %v2873
    %v3179 = vunpack.c.h.b16 %v2873
    %v3180 = vunpack.c.l.b16 %v2874
    %v3181 = vunpack.c.h.b16 %v2874
    %v3182 = vunpack.c.l.b16 %v2875
    %v3183 = vunpack.c.h.b16 %v2875
    %v3184 = vunpack.c.l.b16 %v2876
    %v3185 = vunpack.c.h.b16 %v2876
    %v3186 = vunpack.c.l.b16 %v2877
    %v3187 = vunpack.c.h.b16 %v2877
    %v3188 = vunpack.c.l.b16 %v2878
    %v3189 = vunpack.c.h.b16 %v2878
    %v3190 = vunpack.c.l.b16 %v2879
    %v3191 = vunpack.c.h.b16 %v2879
    %v3192 = vunpack.c.l.b16 %v2880
    %v3193 = vunpack.c.h.b16 %v2880
    %v3194 = vunpack.c.l.b16 %v2881
    %v3195 = vunpack.c.h.b16 %v2881
    %v3196 = vunpack.c.l.b16 %v2882
    %v3197 = vunpack.c.h.b16 %v2882
    %v3198 = vunpack.c.l.b16 %v2883
    %v3199 = vunpack.c.h.b16 %v2883
    %v3200 = vunpack.c.l.b16 %v2884
    %v3201 = vunpack.c.h.b16 %v2884
    %v3202 = vunpack.c.l.b16 %v2885
    %v3203 = vunpack.c.h.b16 %v2885
    %v3204 = vunpack.c.l.b16 %v2886
    %v3205 = vunpack.c.h.b16 %v2886
    %v3206 = vunpack.c.l.b16 %v2887
    %v3207 = vunpack.c.h.b16 %v2887
    %v3208 = vunpack.c.l.b16 %v2888
    %v3209 = vunpack.c.h.b16 %v2888
    %v3210 = vunpack.c.l.b16 %v2889
    %v3211 = vunpack.c.h.b16 %v2889
    %v3212 = vunpack.c.l.b16 %v2890
    %v3213 = vunpack.c.h.b16 %v2890
    %v3214 = vunpack.c.l.b16 %v2891
    %v3215 = vunpack.c.h.b16 %v2891
    %v3216 = vunpack.c.l.b16 %v2892
    %v3217 = vunpack.c.h.b16 %v2892
    %v3218 = vunpack.c.l.b16 %v2893
    %v3219 = vunpack.c.h.b16 %v2893
    %v3220 = vunpack.c.l.b16 %v2894
    %v3221 = vunpack.c.h.b16 %v2894
    %v3222 = vunpack.c.l.b16 %v2895
    %v3223 = vunpack.c.h.b16 %v2895
    %v3224 = vunpack.c.l.b16 %v2896
    %v3225 = vunpack.c.h.b16 %v2896
    %v3226 = vunpack.c.l.b16 %v2897
    %v3227 = vunpack.c.h.b16 %v2897
    %v3228 = vunpack.c.l.b16 %v2898
    %v3229 = vunpack.c.h.b16 %v2898
    %v3230 = vunpack.c.l.b16 %v2899
    %v3231 = vunpack.c.h.b16 %v2899
    %v3232 = vunpack.c.l.b16 %v2900
    %v3233 = vunpack.c.h.b16 %v2900
    %v3234 = vunpack.c.l.b16 %v2901
    %v3235 = vunpack.c.h.b16 %v2901
    %v3236 = vunpack.c.l.b16 %v2902
    %v3237 = vunpack.c.h.b16 %v2902
    %v3238 = vunpack.c.l.b16 %v2903
    %v3239 = vunpack.c.h.b16 %v2903
    %v3240 = vunpack.c.l.b16 %v2904
    %v3241 = vunpack.c.h.b16 %v2904
    %v3242 = vunpack.c.l.b16 %v2905
    %v3243 = vunpack.c.h.b16 %v2905
    %v3244 = vunpack.c.l.b16 %v2906
    %v3245 = vunpack.c.h.b16 %v2906
    %v3246 = vunpack.c.l.b16 %v2907
    %v3247 = vunpack.c.h.b16 %v2907
    %v3248 = vunpack.c.l.b16 %v2908
    %v3249 = vunpack.c.h.b16 %v2908
    %v3250 = vunpack.c.l.b16 %v2909
    %v3251 = vunpack.c.h.b16 %v2909
    %v3252 = vunpack.c.l.b16 %v2910
    %v3253 = vunpack.c.h.b16 %v2910
    %v3254 = vunpack.c.l.b16 %v2911
    %v3255 = vunpack.c.h.b16 %v2911
    %v3256 = vunpack.c.l.b16 %v2912
    %v3257 = vunpack.c.h.b16 %v2912
    %v3258 = vunpack.c.l.b16 %v2913
    %v3259 = vunpack.c.h.b16 %v2913
    %v3260 = vunpack.c.l.b16 %v2914
    %v3261 = vunpack.c.h.b16 %v2914
    %v3262 = vunpack.c.l.b16 %v2915
    %v3263 = vunpack.c.h.b16 %v2915
    %v3264 = vunpack.c.l.b16 %v2916
    %v3265 = vunpack.c.h.b16 %v2916
    %v3266 = vunpack.c.l.b16 %v2917
    %v3267 = vunpack.c.h.b16 %v2917
    %v3268 = vunpack.c.l.b16 %v2918
    %v3269 = vunpack.c.h.b16 %v2918
    %v3270 = vunpack.c.l.b16 %v2919
    %v3271 = vunpack.c.h.b16 %v2919
    %v3272 = vunpack.c.l.b16 %v2920
    %v3273 = vunpack.c.h.b16 %v2920
    %v3274 = vunpack.c.l.b16 %v2921
    %v3275 = vunpack.c.h.b16 %v2921
    %v3276 = vunpack.c.l.b16 %v2922
    %v3277 = vunpack.c.h.b16 %v2922
    %v3278 = vunpack.c.l.b16 %v2923
    %v3279 = vunpack.c.h.b16 %v2923
    %v3280 = vunpack.c.l.b16 %v2924
    %v3281 = vunpack.c.h.b16 %v2924
    %v3282 = vunpack.c.l.b16 %v2925
    %v3283 = vunpack.c.h.b16 %v2925
    %v3284 = vunpack.c.l.b16 %v2926
    %v3285 = vunpack.c.h.b16 %v2926
    %v3286 = vunpack.c.l.b16 %v2927
    %v3287 = vunpack.c.h.b16 %v2927
    %v3288 = vunpack.c.l.b16 %v2928
    %v3289 = vunpack.c.h.b16 %v2928
    %v3290 = vunpack.c.l.b16 %v2929
    %v3291 = vunpack.c.h.b16 %v2929
    %v3292 = vunpack.c.l.b16 %v2930
    %v3293 = vunpack.c.h.b16 %v2930
    %v3294 = vunpack.c.l.b16 %v2931
    %v3295 = vunpack.c.h.b16 %v2931
    %v3296 = vunpack.c.l.b16 %v2932
    %v3297 = vunpack.c.h.b16 %v2932
    %v3298 = vunpack.c.l.b16 %v2933
    %v3299 = vunpack.c.h.b16 %v2933
    %v3300 = vunpack.c.l.b16 %v2934
    %v3301 = vunpack.c.h.b16 %v2934
    %v3302 = vunpack.c.l.b16 %v2935
    %v3303 = vunpack.c.h.b16 %v2935
    %v3304 = vunpack.c.l.b16 %v2936
    %v3305 = vunpack.c.h.b16 %v2936
    %v3306 = vunpack.c.l.b16 %v2937
    %v3307 = vunpack.c.h.b16 %v2937
    %v3308 = vunpack.c.l.b16 %v2938
    %v3309 = vunpack.c.h.b16 %v2938
    %v3310 = vunpack.c.l.b16 %v2939
    %v3311 = vunpack.c.h.b16 %v2939
    %v3312 = vunpack.c.l.b16 %v2940
    %v3313 = vunpack.c.h.b16 %v2940
    %v3314 = vunpack.c.l.b16 %v2941
    %v3315 = vunpack.c.h.b16 %v2941
    %v3316 = vunpack.c.l.b16 %v2942
    %v3317 = vunpack.c.h.b16 %v2942
    %v3318 = vunpack.c.l.b16 %v2943
    %v3319 = vunpack.c.h.b16 %v2943
    %v3320 = vunpack.c.l.b16 %v2944
    %v3321 = vunpack.c.h.b16 %v2944
    %v3322 = vunpack.c.l.b16 %v2945
    %v3323 = vunpack.c.h.b16 %v2945
    %v3324 = vunpack.c.l.b16 %v2946
    %v3325 = vunpack.c.h.b16 %v2946
    %v3326 = vunpack.c.l.b16 %v2947
    %v3327 = vunpack.c.h.b16 %v2947
    %v3328 = vunpack.c.l.b16 %v2948
    %v3329 = vunpack.c.h.b16 %v2948
    %v3330 = vunpack.c.l.b16 %v2949
    %v3331 = vunpack.c.h.b16 %v2949
    %v3332 = vunpack.c.l.b16 %v2950
    %v3333 = vunpack.c.h.b16 %v2950
    %v3334 = vunpack.c.l.b16 %v2951
    %v3335 = vunpack.c.h.b16 %v2951
    %v3336 = vpack.c.b16 %v3088, %v3080
    %v3337 = vpack.c.b16 %v3089, %v3081
    %v3338 = vpack.c.b16 %v3090, %v3082
    %v3339 = vpack.c.b16 %v3091, %v3083
    %v3340 = vpack.c.b16 %v3092, %v3084
    %v3341 = vpack.c.b16 %v3093, %v3085
    %v3342 = vpack.c.b16 %v3094, %v3086
    %v3343 = vpack.c.b16 %v3095, %v3087
    %v3344 = vpack.c.b16 %v3104, %v3096
    %v3345 = vpack.c.b16 %v3105, %v3097
    %v3346 = vpack.c.b16 %v3106, %v3098
    %v3347 = vpack.c.b16 %v3107, %v3099
    %v3348 = vpack.c.b16 %v3108, %v3100
    %v3349 = vpack.c.b16 %v3109, %v3101
    %v3350 = vpack.c.b16 %v3110, %v3102
    %v3351 = vpack.c.b16 %v3111, %v3103
    %v3352 = vpack.c.b16 %v3120, %v3112
    %v3353 = vpack.c.b16 %v3121, %v3113
    %v3354 = vpack.c.b16 %v3122, %v3114
    %v3355 = vpack.c.b16 %v3123, %v3115
    %v3356 = vpack.c.b16 %v3124, %v3116
    %v3357 = vpack.c.b16 %v3125, %v3117
    %v3358 = vpack.c.b16 %v3126, %v3118
    %v3359 = vpack.c.b16 %v3127, %v3119
    %v3360 = vpack.c.b16 %v3136, %v3128
    %v3361 = vpack.c.b16 %v3137, %v3129
    %v3362 = vpack.c.b16 %v3138, %v3130
    %v3363 = vpack.c.b16 %v3139, %v3131
    %v3364 = vpack.c.b16 %v3140, %v3132
    %v3365 = vpack.c.b16 %v3141, %v3133
    %v3366 = vpack.c.b16 %v3142, %v3134
    %v3367 = vpack.c.b16 %v3143, %v3135
    %v3368 = vpack.c.b16 %v3152, %v3144
    %v3369 = vpack.c.b16 %v3153, %v3145
    %v3370 = vpack.c.b16 %v3154, %v3146
    %v3371 = vpack.c.b16 %v3155, %v3147
    %v3372 = vpack.c.b16 %v3156, %v3148
    %v3373 = vpack.c.b16 %v3157, %v3149
    %v3374 = vpack.c.b16 %v3158, %v3150
    %v3375 = vpack.c.b16 %v3159, %v3151
    %v3376 = vpack.c.b16 %v3168, %v3160
    %v3377 = vpack.c.b16 %v3169, %v3161
    %v3378 = vpack.c.b16 %v3170, %v3162
    %v3379 = vpack.c.b16 %v3171, %v3163
    %v3380 = vpack.c.b16 %v3172, %v3164
    %v3381 = vpack.c.b16 %v3173, %v3165
    %v3382 = vpack.c.b16 %v3174, %v3166
    %v3383 = vpack.c.b16 %v3175, %v3167
    %v3384 = vpack.c.b16 %v3184, %v3176
    %v3385 = vpack.c.b16 %v3185, %v3177
    %v3386 = vpack.c.b16 %v3186, %v3178
    %v3387 = vpack.c.b16 %v3187, %v3179
    %v3388 = vpack.c.b16 %v3188, %v3180
    %v3389 = vpack.c.b16 %v3189, %v3181
    %v3390 = vpack.c.b16 %v3190, %v3182
    %v3391 = vpack.c.b16 %v3191, %v3183
    %v3392 = vpack.c.b16 %v3200, %v3192
    %v3393 = vpack.c.b16 %v3201, %v3193
    %v3394 = vpack.c.b16 %v3202, %v3194
    %v3395 = vpack.c.b16 %v3203, %v3195
    %v3396 = vpack.c.b16 %v3204, %v3196
    %v3397 = vpack.c.b16 %v3205, %v3197
    %v3398 = vpack.c.b16 %v3206, %v3198
    %v3399 = vpack.c.b16 %v3207, %v3199
    %v3400 = vpack.c.b16 %v3216, %v3208
    %v3401 = vpack.c.b16 %v3217, %v3209
    %v3402 = vpack.c.b16 %v3218, %v3210
    %v3403 = vpack.c.b16 %v3219, %v3211
    %v3404 = vpack.c.b16 %v3220, %v3212
    %v3405 = vpack.c.b16 %v3221, %v3213
    %v3406 = vpack.c.b16 %v3222, %v3214
    %v3407 = vpack.c.b16 %v3223, %v3215
    %v3408 = vpack.c.b16 %v3232, %v3224
    %v3409 = vpack.c.b16 %v3233, %v3225
    %v3410 = vpack.c.b16 %v3234, %v3226
    %v3411 = vpack.c.b16 %v3235, %v3227
    %v3412 = vpack.c.b16 %v3236, %v3228
    %v3413 = vpack.c.b16 %v3237, %v3229
    %v3414 = vpack.c.b16 %v3238, %v3230
    %v3415 = vpack.c.b16 %v3239, %v3231
    %v3416 = vpack.c.b16 %v3248, %v3240
    %v3417 = vpack.c.b16 %v3249, %v3241
    %v3418 = vpack.c.b16 %v3250, %v3242
    %v3419 = vpack.c.b16 %v3251, %v3243
    %v3420 = vpack.c.b16 %v3252, %v3244
    %v3421 = vpack.c.b16 %v3253, %v3245
    %v3422 = vpack.c.b16 %v3254, %v3246
    %v3423 = vpack.c.b16 %v3255, %v3247
    %v3424 = vpack.c.b16 %v3264, %v3256
    %v3425 = vpack.c.b16 %v3265, %v3257
    %v3426 = vpack.c.b16 %v3266, %v3258
    %v3427 = vpack.c.b16 %v3267, %v3259
    %v3428 = vpack.c.b16 %v3268, %v3260
    %v3429 = vpack.c.b16 %v3269, %v3261
    %v3430 = vpack.c.b16 %v3270, %v3262
    %v3431 = vpack.c.b16 %v3271, %v3263
    %v3432 = vpack.c.b16 %v3280, %v3272
    %v3433 = vpack.c.b16 %v3281, %v3273
    %v3434 = vpack.c.b16 %v3282, %v3274
    %v3435 = vpack.c.b16 %v3283, %v3275
    %v3436 = vpack.c.b16 %v3284, %v3276
    %v3437 = vpack.c.b16 %v3285, %v3277
    %v3438 = vpack.c.b16 %v3286, %v3278
    %v3439 = vpack.c.b16 %v3287, %v3279
    %v3440 = vpack.c.b16 %v3296, %v3288
    %v3441 = vpack.c.b16 %v3297, %v3289
    %v3442 = vpack.c.b16 %v3298, %v3290
    %v3443 = vpack.c.b16 %v3299, %v3291
    %v3444 = vpack.c.b16 %v3300, %v3292
    %v3445 = vpack.c.b16 %v3301, %v3293
    %v3446 = vpack.c.b16 %v3302, %v3294
    %v3447 = vpack.c.b16 %v3303, %v3295
    %v3448 = vpack.c.b16 %v3312, %v3304
    %v3449 = vpack.c.b16 %v3313, %v3305
    %v3450 = vpack.c.b16 %v3314, %v3306
    %v3451 = vpack.c.b16 %v3315, %v3307
    %v3452 = vpack.c.b16 %v3316, %v3308
    %v3453 = vpack.c.b16 %v3317, %v3309
    %v3454 = vpack.c.b16 %v3318, %v3310
    %v3455 = vpack.c.b16 %v3319, %v3311
    %v3456 = vpack.c.b16 %v3328, %v3320
    %v3457 = vpack.c.b16 %v3329, %v3321
    %v3458 = vpack.c.b16 %v3330, %v3322
    %v3459 = vpack.c.b16 %v3331, %v3323
    %v3460 = vpack.c.b16 %v3332, %v3324
    %v3461 = vpack.c.b16 %v3333, %v3325
    %v3462 = vpack.c.b16 %v3334, %v3326
    %v3463 = vpack.c.b16 %v3335, %v3327
    %3592 = vmatprep.subr.bf16.mxu0 %v3337
    %3593 = vmatpush1.bf16.msra.mxu0 %v3336
    %3594 = vmatprep.subr.bf16.mxu0 %v3345
    %3595 = vmatpush1.bf16.msra.mxu0 %v3344
    %3596 = vmatprep.subr.bf16.mxu0 %v3353
    %3597 = vmatpush1.bf16.msra.mxu0 %v3352
    %3598 = vmatprep.subr.bf16.mxu0 %v3361
    %3599 = vmatpush1.bf16.msra.mxu0 %v3360
    %3600 = vmatprep.subr.bf16.mxu0 %v3369
    %3601 = vmatpush1.bf16.msra.mxu0 %v3368
    %3602 = vmatprep.subr.bf16.mxu0 %v3377
    %3603 = vmatpush1.bf16.msra.mxu0 %v3376
    %3604 = vmatprep.subr.bf16.mxu0 %v3385
    %3605 = vmatpush1.bf16.msra.mxu0 %v3384
    %3606 = vmatprep.subr.bf16.mxu0 %v3393
    %3607 = vmatpush1.bf16.msra.mxu0 %v3392
    %3608 = vmatprep.subr.bf16.mxu0 %v3401
    %3609 = vmatpush1.bf16.msra.mxu0 %v3400
    %3610 = vmatprep.subr.bf16.mxu0 %v3409
    %3611 = vmatpush1.bf16.msra.mxu0 %v3408
    %3612 = vmatprep.subr.bf16.mxu0 %v3417
    %3613 = vmatpush1.bf16.msra.mxu0 %v3416
    %3614 = vmatprep.subr.bf16.mxu0 %v3425
    %3615 = vmatpush1.bf16.msra.mxu0 %v3424
    %3616 = vmatprep.subr.bf16.mxu0 %v3433
    %3617 = vmatpush1.bf16.msra.mxu0 %v3432
    %3618 = vmatprep.subr.bf16.mxu0 %v3441
    %3619 = vmatpush1.bf16.msra.mxu0 %v3440
    %3620 = vmatprep.subr.bf16.mxu0 %v3449
    %3621 = vmatpush1.bf16.msra.mxu0 %v3448
    %3622 = vmatprep.subr.bf16.mxu0 %v3457
    %3623 = vmatpush1.bf16.msra.mxu0 %v3456
    %3624 = vmatprep.mubr.bf16.mxu0 %v2793
    %3625 = vmatmul.mubr.bf16.gmra.mrb[0].mxu0 %v2792
    %v3626 = vpop.f32.mrb[0].mxu0
    %v3627 = vadd.f32 0.0, %v3626
    %v3628 = vpop.f32.mrb[0].mxu0
    %v3629 = vadd.f32 0.0, %v3628
    %v3630 = vpop.f32.mrb[0].mxu0
    %v3631 = vadd.f32 0.0, %v3630
    %v3632 = vpop.f32.mrb[0].mxu0
    %v3633 = vadd.f32 0.0, %v3632
    %3634 = vmatprep.mubr.bf16.mxu0 %v2795
    %3635 = vmatmul.mubr.bf16.gmra.mrb[0].mxu0 %v2794
    %v3636 = vpop.f32.mrb[0].mxu0
    %v3637 = vadd.f32 0.0, %v3636
    %v3638 = vpop.f32.mrb[0].mxu0
    %v3639 = vadd.f32 0.0, %v3638
    %v3640 = vpop.f32.mrb[0].mxu0
    %v3641 = vadd.f32 0.0, %v3640
    %v3642 = vpop.f32.mrb[0].mxu0
    %v3643 = vadd.f32 0.0, %v3642
    %3644 = vmatprep.mubr.bf16.mxu0 %v2797
    %3645 = vmatmul.mubr.bf16.gmra.mrb[0].mxu0 %v2796
    %v3646 = vpop.f32.mrb[0].mxu0
    %v3647 = vadd.f32 0.0, %v3646
    %v3648 = vpop.f32.mrb[0].mxu0
    %v3649 = vadd.f32 0.0, %v3648
    %v3650 = vpop.f32.mrb[0].mxu0
    %v3651 = vadd.f32 0.0, %v3650
    %v3652 = vpop.f32.mrb[0].mxu0
    %v3653 = vadd.f32 0.0, %v3652
    %3654 = vmatprep.mubr.bf16.mxu0 %v2799
    %3655 = vmatmul.mubr.bf16.gmra.mrb[0].mxu0 %v2798
    %v3656 = vpop.f32.mrb[0].mxu0
    %v3657 = vadd.f32 0.0, %v3656
    %v3658 = vpop.f32.mrb[0].mxu0
    %v3659 = vadd.f32 0.0, %v3658
    %v3660 = vpop.f32.mrb[0].mxu0
    %v3661 = vadd.f32 0.0, %v3660
    %v3662 = vpop.f32.mrb[0].mxu0
    %v3663 = vadd.f32 0.0, %v3662
    %3664 = vmatprep.mubr.bf16.mxu0 %v2801
    %3665 = vmatmul.mubr.bf16.gmra.mrb[0].mxu0 %v2800
    %v3666 = vpop.f32.mrb[0].mxu0
    %v3667 = vadd.f32 0.0, %v3666
    %v3668 = vpop.f32.mrb[0].mxu0
    %v3669 = vadd.f32 0.0, %v3668
    %v3670 = vpop.f32.mrb[0].mxu0
    %v3671 = vadd.f32 0.0, %v3670
    %v3672 = vpop.f32.mrb[0].mxu0
    %v3673 = vadd.f32 0.0, %v3672
    %3674 = vmatprep.mubr.bf16.mxu0 %v2803
    %3675 = vmatmul.mubr.bf16.gmra.mrb[0].mxu0 %v2802
    %v3676 = vpop.f32.mrb[0].mxu0
    %v3677 = vadd.f32 0.0, %v3676
    %v3678 = vpop.f32.mrb[0].mxu0
    %v3679 = vadd.f32 0.0, %v3678
    %v3680 = vpop.f32.mrb[0].mxu0
    %v3681 = vadd.f32 0.0, %v3680
    %v3682 = vpop.f32.mrb[0].mxu0
    %v3683 = vadd.f32 0.0, %v3682
    %3684 = vmatprep.mubr.bf16.mxu0 %v2805
    %3685 = vmatmul.mubr.bf16.gmra.mrb[0].mxu0 %v2804
    %v3686 = vpop.f32.mrb[0].mxu0
    %v3687 = vadd.f32 0.0, %v3686
    %v3688 = vpop.f32.mrb[0].mxu0
    %v3689 = vadd.f32 0.0, %v3688
    %v3690 = vpop.f32.mrb[0].mxu0
    %v3691 = vadd.f32 0.0, %v3690
    %v3692 = vpop.f32.mrb[0].mxu0
    %v3693 = vadd.f32 0.0, %v3692
    %3694 = vmatprep.mubr.bf16.mxu0 %v2807
    %3695 = vmatmul.mubr.bf16.gmra.mrb[0].mxu0 %v2806
    %v3696 = vpop.f32.mrb[0].mxu0
    %v3697 = vadd.f32 0.0, %v3696
    %v3698 = vpop.f32.mrb[0].mxu0
    %v3699 = vadd.f32 0.0, %v3698
    %v3700 = vpop.f32.mrb[0].mxu0
    %v3701 = vadd.f32 0.0, %v3700
    %v3702 = vpop.f32.mrb[0].mxu0
    %v3703 = vadd.f32 0.0, %v3702
    %3704 = vmatprep.mubr.bf16.mxu0 %v2809
    %3705 = vmatmul.mubr.bf16.gmra.mrb[0].mxu0 %v2808
    %v3706 = vpop.f32.mrb[0].mxu0
    %v3707 = vadd.f32 0.0, %v3706
    %v3708 = vpop.f32.mrb[0].mxu0
    %v3709 = vadd.f32 0.0, %v3708
    %v3710 = vpop.f32.mrb[0].mxu0
    %v3711 = vadd.f32 0.0, %v3710
    %v3712 = vpop.f32.mrb[0].mxu0
    %v3713 = vadd.f32 0.0, %v3712
    %3714 = vmatprep.mubr.bf16.mxu0 %v2811
    %3715 = vmatmul.mubr.bf16.gmra.mrb[0].mxu0 %v2810
    %v3716 = vpop.f32.mrb[0].mxu0
    %v3717 = vadd.f32 0.0, %v3716
    %v3718 = vpop.f32.mrb[0].mxu0
    %v3719 = vadd.f32 0.0, %v3718
    %v3720 = vpop.f32.mrb[0].mxu0
    %v3721 = vadd.f32 0.0, %v3720
    %v3722 = vpop.f32.mrb[0].mxu0
    %v3723 = vadd.f32 0.0, %v3722
    %3724 = vmatprep.mubr.bf16.mxu0 %v2813
    %3725 = vmatmul.mubr.bf16.gmra.mrb[0].mxu0 %v2812
    %v3726 = vpop.f32.mrb[0].mxu0
    %v3727 = vadd.f32 0.0, %v3726
    %v3728 = vpop.f32.mrb[0].mxu0
    %v3729 = vadd.f32 0.0, %v3728
    %v3730 = vpop.f32.mrb[0].mxu0
    %v3731 = vadd.f32 0.0, %v3730
    %v3732 = vpop.f32.mrb[0].mxu0
    %v3733 = vadd.f32 0.0, %v3732
    %3734 = vmatprep.mubr.bf16.mxu0 %v2815
    %3735 = vmatmul.mubr.bf16.gmra.mrb[0].mxu0 %v2814
    %v3736 = vpop.f32.mrb[0].mxu0
    %v3737 = vadd.f32 0.0, %v3736
    %v3738 = vpop.f32.mrb[0].mxu0
    %v3739 = vadd.f32 0.0, %v3738
    %v3740 = vpop.f32.mrb[0].mxu0
    %v3741 = vadd.f32 0.0, %v3740
    %v3742 = vpop.f32.mrb[0].mxu0
    %v3743 = vadd.f32 0.0, %v3742
    %3744 = vmatprep.mubr.bf16.mxu0 %v2817
    %3745 = vmatmul.mubr.bf16.gmra.mrb[0].mxu0 %v2816
    %v3746 = vpop.f32.mrb[0].mxu0
    %v3747 = vadd.f32 0.0, %v3746
    %v3748 = vpop.f32.mrb[0].mxu0
    %v3749 = vadd.f32 0.0, %v3748
    %v3750 = vpop.f32.mrb[0].mxu0
    %v3751 = vadd.f32 0.0, %v3750
    %v3752 = vpop.f32.mrb[0].mxu0
    %v3753 = vadd.f32 0.0, %v3752
    %3754 = vmatprep.mubr.bf16.mxu0 %v2819
    %3755 = vmatmul.mubr.bf16.gmra.mrb[0].mxu0 %v2818
    %v3756 = vpop.f32.mrb[0].mxu0
    %v3757 = vadd.f32 0.0, %v3756
    %v3758 = vpop.f32.mrb[0].mxu0
    %v3759 = vadd.f32 0.0, %v3758
    %v3760 = vpop.f32.mrb[0].mxu0
    %v3761 = vadd.f32 0.0, %v3760
    %v3762 = vpop.f32.mrb[0].mxu0
    %v3763 = vadd.f32 0.0, %v3762
    %3764 = vmatprep.mubr.bf16.mxu0 %v2821
    %3765 = vmatmul.mubr.bf16.gmra.mrb[0].mxu0 %v2820
    %v3766 = vpop.f32.mrb[0].mxu0
    %v3767 = vadd.f32 0.0, %v3766
    %v3768 = vpop.f32.mrb[0].mxu0
    %v3769 = vadd.f32 0.0, %v3768
    %v3770 = vpop.f32.mrb[0].mxu0
    %v3771 = vadd.f32 0.0, %v3770
    %v3772 = vpop.f32.mrb[0].mxu0
    %v3773 = vadd.f32 0.0, %v3772
    %3774 = vmatprep.mubr.bf16.mxu0 %v2823
    %3775 = vmatmul.mubr.bf16.gmra.mrb[0].mxu0 %v2822
    %v3776 = vpop.f32.mrb[0].mxu0
    %v3777 = vadd.f32 0.0, %v3776
    %v3778 = vpop.f32.mrb[0].mxu0
    %v3779 = vadd.f32 0.0, %v3778
    %v3780 = vpop.f32.mrb[0].mxu0
    %v3781 = vadd.f32 0.0, %v3780
    %v3782 = vpop.f32.mrb[0].mxu0
    %v3783 = vadd.f32 0.0, %v3782
    %3784 = vdwg.mxu0
    %3785 = vmatprep.subr.bf16.mxu0 %v3339
    %3786 = vmatpush1.bf16.msra.mxu0 %v3338
    %3787 = vmatprep.subr.bf16.mxu0 %v3347
    %3788 = vmatpush1.bf16.msra.mxu0 %v3346
    %3789 = vmatprep.subr.bf16.mxu0 %v3355
    %3790 = vmatpush1.bf16.msra.mxu0 %v3354
    %3791 = vmatprep.subr.bf16.mxu0 %v3363
    %3792 = vmatpush1.bf16.msra.mxu0 %v3362
    %3793 = vmatprep.subr.bf16.mxu0 %v3371
    %3794 = vmatpush1.bf16.msra.mxu0 %v3370
    %3795 = vmatprep.subr.bf16.mxu0 %v3379
    %3796 = vmatpush1.bf16.msra.mxu0 %v3378
    %3797 = vmatprep.subr.bf16.mxu0 %v3387
    %3798 = vmatpush1.bf16.msra.mxu0 %v3386
    %3799 = vmatprep.subr.bf16.mxu0 %v3395
    %3800 = vmatpush1.bf16.msra.mxu0 %v3394
    %3801 = vmatprep.subr.bf16.mxu0 %v3403
    %3802 = vmatpush1.bf16.msra.mxu0 %v3402
    %3803 = vmatprep.subr.bf16.mxu0 %v3411
    %3804 = vmatpush1.bf16.msra.mxu0 %v3410
    %3805 = vmatprep.subr.bf16.mxu0 %v3419
    %3806 = vmatpush1.bf16.msra.mxu0 %v3418
    %3807 = vmatprep.subr.bf16.mxu0 %v3427
    %3808 = vmatpush1.bf16.msra.mxu0 %v3426
    %3809 = vmatprep.subr.bf16.mxu0 %v3435
    %3810 = vmatpush1.bf16.msra.mxu0 %v3434
    %3811 = vmatprep.subr.bf16.mxu0 %v3443
    %3812 = vmatpush1.bf16.msra.mxu0 %v3442
    %3813 = vmatprep.subr.bf16.mxu0 %v3451
    %3814 = vmatpush1.bf16.msra.mxu0 %v3450
    %3815 = vmatprep.subr.bf16.mxu0 %v3459
    %3816 = vmatpush1.bf16.msra.mxu0 %v3458
    %3817 = vmatprep.mubr.bf16.mxu0 %v2793
    %3818 = vmatmul.mubr.bf16.gmra.mrb[0].mxu0 %v2792
    %v3819 = vpop.f32.mrb[0].mxu0
    %v3820 = vadd.f32 0.0, %v3819
    %v3821 = vpop.f32.mrb[0].mxu0
    %v3822 = vadd.f32 0.0, %v3821
    %v3823 = vpop.f32.mrb[0].mxu0
    %v3824 = vadd.f32 0.0, %v3823
    %v3825 = vpop.f32.mrb[0].mxu0
    %v3826 = vadd.f32 0.0, %v3825
    %3827 = vmatprep.mubr.bf16.mxu0 %v2795
    %3828 = vmatmul.mubr.bf16.gmra.mrb[0].mxu0 %v2794
    %v3829 = vpop.f32.mrb[0].mxu0
    %v3830 = vadd.f32 0.0, %v3829
    %v3831 = vpop.f32.mrb[0].mxu0
    %v3832 = vadd.f32 0.0, %v3831
    %v3833 = vpop.f32.mrb[0].mxu0
    %v3834 = vadd.f32 0.0, %v3833
    %v3835 = vpop.f32.mrb[0].mxu0
    %v3836 = vadd.f32 0.0, %v3835
    %3837 = vmatprep.mubr.bf16.mxu0 %v2797
    %3838 = vmatmul.mubr.bf16.gmra.mrb[0].mxu0 %v2796
    %v3839 = vpop.f32.mrb[0].mxu0
    %v3840 = vadd.f32 0.0, %v3839
    %v3841 = vpop.f32.mrb[0].mxu0
    %v3842 = vadd.f32 0.0, %v3841
    %v3843 = vpop.f32.mrb[0].mxu0
    %v3844 = vadd.f32 0.0, %v3843
    %v3845 = vpop.f32.mrb[0].mxu0
    %v3846 = vadd.f32 0.0, %v3845
    %3847 = vmatprep.mubr.bf16.mxu0 %v2799
    %3848 = vmatmul.mubr.bf16.gmra.mrb[0].mxu0 %v2798
    %v3849 = vpop.f32.mrb[0].mxu0
    %v3850 = vadd.f32 0.0, %v3849
    %v3851 = vpop.f32.mrb[0].mxu0
    %v3852 = vadd.f32 0.0, %v3851
    %v3853 = vpop.f32.mrb[0].mxu0
    %v3854 = vadd.f32 0.0, %v3853
    %v3855 = vpop.f32.mrb[0].mxu0
    %v3856 = vadd.f32 0.0, %v3855
    %3857 = vmatprep.mubr.bf16.mxu0 %v2801
    %3858 = vmatmul.mubr.bf16.gmra.mrb[0].mxu0 %v2800
    %v3859 = vpop.f32.mrb[0].mxu0
    %v3860 = vadd.f32 0.0, %v3859
    %v3861 = vpop.f32.mrb[0].mxu0
    %v3862 = vadd.f32 0.0, %v3861
    %v3863 = vpop.f32.mrb[0].mxu0
    %v3864 = vadd.f32 0.0, %v3863
    %v3865 = vpop.f32.mrb[0].mxu0
    %v3866 = vadd.f32 0.0, %v3865
    %3867 = vmatprep.mubr.bf16.mxu0 %v2803
    %3868 = vmatmul.mubr.bf16.gmra.mrb[0].mxu0 %v2802
    %v3869 = vpop.f32.mrb[0].mxu0
    %v3870 = vadd.f32 0.0, %v3869
    %v3871 = vpop.f32.mrb[0].mxu0
    %v3872 = vadd.f32 0.0, %v3871
    %v3873 = vpop.f32.mrb[0].mxu0
    %v3874 = vadd.f32 0.0, %v3873
    %v3875 = vpop.f32.mrb[0].mxu0
    %v3876 = vadd.f32 0.0, %v3875
    %3877 = vmatprep.mubr.bf16.mxu0 %v2805
    %3878 = vmatmul.mubr.bf16.gmra.mrb[0].mxu0 %v2804
    %v3879 = vpop.f32.mrb[0].mxu0
    %v3880 = vadd.f32 0.0, %v3879
    %v3881 = vpop.f32.mrb[0].mxu0
    %v3882 = vadd.f32 0.0, %v3881
    %v3883 = vpop.f32.mrb[0].mxu0
    %v3884 = vadd.f32 0.0, %v3883
    %v3885 = vpop.f32.mrb[0].mxu0
    %v3886 = vadd.f32 0.0, %v3885
    %3887 = vmatprep.mubr.bf16.mxu0 %v2807
    %3888 = vmatmul.mubr.bf16.gmra.mrb[0].mxu0 %v2806
    %v3889 = vpop.f32.mrb[0].mxu0
    %v3890 = vadd.f32 0.0, %v3889
    %v3891 = vpop.f32.mrb[0].mxu0
    %v3892 = vadd.f32 0.0, %v3891
    %v3893 = vpop.f32.mrb[0].mxu0
    %v3894 = vadd.f32 0.0, %v3893
    %v3895 = vpop.f32.mrb[0].mxu0
    %v3896 = vadd.f32 0.0, %v3895
    %3897 = vmatprep.mubr.bf16.mxu0 %v2809
    %3898 = vmatmul.mubr.bf16.gmra.mrb[0].mxu0 %v2808
    %v3899 = vpop.f32.mrb[0].mxu0
    %v3900 = vadd.f32 0.0, %v3899
    %v3901 = vpop.f32.mrb[0].mxu0
    %v3902 = vadd.f32 0.0, %v3901
    %v3903 = vpop.f32.mrb[0].mxu0
    %v3904 = vadd.f32 0.0, %v3903
    %v3905 = vpop.f32.mrb[0].mxu0
    %v3906 = vadd.f32 0.0, %v3905
    %3907 = vmatprep.mubr.bf16.mxu0 %v2811
    %3908 = vmatmul.mubr.bf16.gmra.mrb[0].mxu0 %v2810
    %v3909 = vpop.f32.mrb[0].mxu0
    %v3910 = vadd.f32 0.0, %v3909
    %v3911 = vpop.f32.mrb[0].mxu0
    %v3912 = vadd.f32 0.0, %v3911
    %v3913 = vpop.f32.mrb[0].mxu0
    %v3914 = vadd.f32 0.0, %v3913
    %v3915 = vpop.f32.mrb[0].mxu0
    %v3916 = vadd.f32 0.0, %v3915
    %3917 = vmatprep.mubr.bf16.mxu0 %v2813
    %3918 = vmatmul.mubr.bf16.gmra.mrb[0].mxu0 %v2812
    %v3919 = vpop.f32.mrb[0].mxu0
    %v3920 = vadd.f32 0.0, %v3919
    %v3921 = vpop.f32.mrb[0].mxu0
    %v3922 = vadd.f32 0.0, %v3921
    %v3923 = vpop.f32.mrb[0].mxu0
    %v3924 = vadd.f32 0.0, %v3923
    %v3925 = vpop.f32.mrb[0].mxu0
    %v3926 = vadd.f32 0.0, %v3925
    %3927 = vmatprep.mubr.bf16.mxu0 %v2815
    %3928 = vmatmul.mubr.bf16.gmra.mrb[0].mxu0 %v2814
    %v3929 = vpop.f32.mrb[0].mxu0
    %v3930 = vadd.f32 0.0, %v3929
    %v3931 = vpop.f32.mrb[0].mxu0
    %v3932 = vadd.f32 0.0, %v3931
    %v3933 = vpop.f32.mrb[0].mxu0
    %v3934 = vadd.f32 0.0, %v3933
    %v3935 = vpop.f32.mrb[0].mxu0
    %v3936 = vadd.f32 0.0, %v3935
    %3937 = vmatprep.mubr.bf16.mxu0 %v2817
    %3938 = vmatmul.mubr.bf16.gmra.mrb[0].mxu0 %v2816
    %v3939 = vpop.f32.mrb[0].mxu0
    %v3940 = vadd.f32 0.0, %v3939
    %v3941 = vpop.f32.mrb[0].mxu0
    %v3942 = vadd.f32 0.0, %v3941
    %v3943 = vpop.f32.mrb[0].mxu0
    %v3944 = vadd.f32 0.0, %v3943
    %v3945 = vpop.f32.mrb[0].mxu0
    %v3946 = vadd.f32 0.0, %v3945
    %3947 = vmatprep.mubr.bf16.mxu0 %v2819
    %3948 = vmatmul.mubr.bf16.gmra.mrb[0].mxu0 %v2818
    %v3949 = vpop.f32.mrb[0].mxu0
    %v3950 = vadd.f32 0.0, %v3949
    %v3951 = vpop.f32.mrb[0].mxu0
    %v3952 = vadd.f32 0.0, %v3951
    %v3953 = vpop.f32.mrb[0].mxu0
    %v3954 = vadd.f32 0.0, %v3953
    %v3955 = vpop.f32.mrb[0].mxu0
    %v3956 = vadd.f32 0.0, %v3955
    %3957 = vmatprep.mubr.bf16.mxu0 %v2821
    %3958 = vmatmul.mubr.bf16.gmra.mrb[0].mxu0 %v2820
    %v3959 = vpop.f32.mrb[0].mxu0
    %v3960 = vadd.f32 0.0, %v3959
    %v3961 = vpop.f32.mrb[0].mxu0
    %v3962 = vadd.f32 0.0, %v3961
    %v3963 = vpop.f32.mrb[0].mxu0
    %v3964 = vadd.f32 0.0, %v3963
    %v3965 = vpop.f32.mrb[0].mxu0
    %v3966 = vadd.f32 0.0, %v3965
    %3967 = vmatprep.mubr.bf16.mxu0 %v2823
    %3968 = vmatmul.mubr.bf16.gmra.mrb[0].mxu0 %v2822
    %v3969 = vpop.f32.mrb[0].mxu0
    %v3970 = vadd.f32 0.0, %v3969
    %v3971 = vpop.f32.mrb[0].mxu0
    %v3972 = vadd.f32 0.0, %v3971
    %v3973 = vpop.f32.mrb[0].mxu0
    %v3974 = vadd.f32 0.0, %v3973
    %v3975 = vpop.f32.mrb[0].mxu0
    %v3976 = vadd.f32 0.0, %v3975
    %3977 = vdwg.mxu0
    %3978 = vmatprep.subr.bf16.mxu0 %v3341
    %3979 = vmatpush1.bf16.msra.mxu0 %v3340
    %3980 = vmatprep.subr.bf16.mxu0 %v3349
    %3981 = vmatpush1.bf16.msra.mxu0 %v3348
    %3982 = vmatprep.subr.bf16.mxu0 %v3357
    %3983 = vmatpush1.bf16.msra.mxu0 %v3356
    %3984 = vmatprep.subr.bf16.mxu0 %v3365
    %3985 = vmatpush1.bf16.msra.mxu0 %v3364
    %3986 = vmatprep.subr.bf16.mxu0 %v3373
    %3987 = vmatpush1.bf16.msra.mxu0 %v3372
    %3988 = vmatprep.subr.bf16.mxu0 %v3381
    %3989 = vmatpush1.bf16.msra.mxu0 %v3380
    %3990 = vmatprep.subr.bf16.mxu0 %v3389
    %3991 = vmatpush1.bf16.msra.mxu0 %v3388
    %3992 = vmatprep.subr.bf16.mxu0 %v3397
    %3993 = vmatpush1.bf16.msra.mxu0 %v3396
    %3994 = vmatprep.subr.bf16.mxu0 %v3405
    %3995 = vmatpush1.bf16.msra.mxu0 %v3404
    %3996 = vmatprep.subr.bf16.mxu0 %v3413
    %3997 = vmatpush1.bf16.msra.mxu0 %v3412
    %3998 = vmatprep.subr.bf16.mxu0 %v3421
    %3999 = vmatpush1.bf16.msra.mxu0 %v3420
    %4000 = vmatprep.subr.bf16.mxu0 %v3429
    %4001 = vmatpush1.bf16.msra.mxu0 %v3428
    %4002 = vmatprep.subr.bf16.mxu0 %v3437
    %4003 = vmatpush1.bf16.msra.mxu0 %v3436
    %4004 = vmatprep.subr.bf16.mxu0 %v3445
    %4005 = vmatpush1.bf16.msra.mxu0 %v3444
    %4006 = vmatprep.subr.bf16.mxu0 %v3453
    %4007 = vmatpush1.bf16.msra.mxu0 %v3452
    %4008 = vmatprep.subr.bf16.mxu0 %v3461
    %4009 = vmatpush1.bf16.msra.mxu0 %v3460
    %4010 = vmatprep.mubr.bf16.mxu0 %v2793
    %4011 = vmatmul.mubr.bf16.gmra.mrb[0].mxu0 %v2792
    %v4012 = vpop.f32.mrb[0].mxu0
    %v4013 = vadd.f32 0.0, %v4012
    %v4014 = vpop.f32.mrb[0].mxu0
    %v4015 = vadd.f32 0.0, %v4014
    %v4016 = vpop.f32.mrb[0].mxu0
    %v4017 = vadd.f32 0.0, %v4016
    %v4018 = vpop.f32.mrb[0].mxu0
    %v4019 = vadd.f32 0.0, %v4018
    %4020 = vmatprep.mubr.bf16.mxu0 %v2795
    %4021 = vmatmul.mubr.bf16.gmra.mrb[0].mxu0 %v2794
    %v4022 = vpop.f32.mrb[0].mxu0
    %v4023 = vadd.f32 0.0, %v4022
    %v4024 = vpop.f32.mrb[0].mxu0
    %v4025 = vadd.f32 0.0, %v4024
    %v4026 = vpop.f32.mrb[0].mxu0
    %v4027 = vadd.f32 0.0, %v4026
    %v4028 = vpop.f32.mrb[0].mxu0
    %v4029 = vadd.f32 0.0, %v4028
    %4030 = vmatprep.mubr.bf16.mxu0 %v2797
    %4031 = vmatmul.mubr.bf16.gmra.mrb[0].mxu0 %v2796
    %v4032 = vpop.f32.mrb[0].mxu0
    %v4033 = vadd.f32 0.0, %v4032
    %v4034 = vpop.f32.mrb[0].mxu0
    %v4035 = vadd.f32 0.0, %v4034
    %v4036 = vpop.f32.mrb[0].mxu0
    %v4037 = vadd.f32 0.0, %v4036
    %v4038 = vpop.f32.mrb[0].mxu0
    %v4039 = vadd.f32 0.0, %v4038
    %4040 = vmatprep.mubr.bf16.mxu0 %v2799
    %4041 = vmatmul.mubr.bf16.gmra.mrb[0].mxu0 %v2798
    %v4042 = vpop.f32.mrb[0].mxu0
    %v4043 = vadd.f32 0.0, %v4042
    %v4044 = vpop.f32.mrb[0].mxu0
    %v4045 = vadd.f32 0.0, %v4044
    %v4046 = vpop.f32.mrb[0].mxu0
    %v4047 = vadd.f32 0.0, %v4046
    %v4048 = vpop.f32.mrb[0].mxu0
    %v4049 = vadd.f32 0.0, %v4048
    %4050 = vmatprep.mubr.bf16.mxu0 %v2801
    %4051 = vmatmul.mubr.bf16.gmra.mrb[0].mxu0 %v2800
    %v4052 = vpop.f32.mrb[0].mxu0
    %v4053 = vadd.f32 0.0, %v4052
    %v4054 = vpop.f32.mrb[0].mxu0
    %v4055 = vadd.f32 0.0, %v4054
    %v4056 = vpop.f32.mrb[0].mxu0
    %v4057 = vadd.f32 0.0, %v4056
    %v4058 = vpop.f32.mrb[0].mxu0
    %v4059 = vadd.f32 0.0, %v4058
    %4060 = vmatprep.mubr.bf16.mxu0 %v2803
    %4061 = vmatmul.mubr.bf16.gmra.mrb[0].mxu0 %v2802
    %v4062 = vpop.f32.mrb[0].mxu0
    %v4063 = vadd.f32 0.0, %v4062
    %v4064 = vpop.f32.mrb[0].mxu0
    %v4065 = vadd.f32 0.0, %v4064
    %v4066 = vpop.f32.mrb[0].mxu0
    %v4067 = vadd.f32 0.0, %v4066
    %v4068 = vpop.f32.mrb[0].mxu0
    %v4069 = vadd.f32 0.0, %v4068
    %4070 = vmatprep.mubr.bf16.mxu0 %v2805
    %4071 = vmatmul.mubr.bf16.gmra.mrb[0].mxu0 %v2804
    %v4072 = vpop.f32.mrb[0].mxu0
    %v4073 = vadd.f32 0.0, %v4072
    %v4074 = vpop.f32.mrb[0].mxu0
    %v4075 = vadd.f32 0.0, %v4074
    %v4076 = vpop.f32.mrb[0].mxu0
    %v4077 = vadd.f32 0.0, %v4076
    %v4078 = vpop.f32.mrb[0].mxu0
    %v4079 = vadd.f32 0.0, %v4078
    %4080 = vmatprep.mubr.bf16.mxu0 %v2807
    %4081 = vmatmul.mubr.bf16.gmra.mrb[0].mxu0 %v2806
    %v4082 = vpop.f32.mrb[0].mxu0
    %v4083 = vadd.f32 0.0, %v4082
    %v4084 = vpop.f32.mrb[0].mxu0
    %v4085 = vadd.f32 0.0, %v4084
    %v4086 = vpop.f32.mrb[0].mxu0
    %v4087 = vadd.f32 0.0, %v4086
    %v4088 = vpop.f32.mrb[0].mxu0
    %v4089 = vadd.f32 0.0, %v4088
    %4090 = vmatprep.mubr.bf16.mxu0 %v2809
    %4091 = vmatmul.mubr.bf16.gmra.mrb[0].mxu0 %v2808
    %v4092 = vpop.f32.mrb[0].mxu0
    %v4093 = vadd.f32 0.0, %v4092
    %v4094 = vpop.f32.mrb[0].mxu0
    %v4095 = vadd.f32 0.0, %v4094
    %v4096 = vpop.f32.mrb[0].mxu0
    %v4097 = vadd.f32 0.0, %v4096
    %v4098 = vpop.f32.mrb[0].mxu0
    %v4099 = vadd.f32 0.0, %v4098
    %4100 = vmatprep.mubr.bf16.mxu0 %v2811
    %4101 = vmatmul.mubr.bf16.gmra.mrb[0].mxu0 %v2810
    %v4102 = vpop.f32.mrb[0].mxu0
    %v4103 = vadd.f32 0.0, %v4102
    %v4104 = vpop.f32.mrb[0].mxu0
    %v4105 = vadd.f32 0.0, %v4104
    %v4106 = vpop.f32.mrb[0].mxu0
    %v4107 = vadd.f32 0.0, %v4106
    %v4108 = vpop.f32.mrb[0].mxu0
    %v4109 = vadd.f32 0.0, %v4108
    %4110 = vmatprep.mubr.bf16.mxu0 %v2813
    %4111 = vmatmul.mubr.bf16.gmra.mrb[0].mxu0 %v2812
    %v4112 = vpop.f32.mrb[0].mxu0
    %v4113 = vadd.f32 0.0, %v4112
    %v4114 = vpop.f32.mrb[0].mxu0
    %v4115 = vadd.f32 0.0, %v4114
    %v4116 = vpop.f32.mrb[0].mxu0
    %v4117 = vadd.f32 0.0, %v4116
    %v4118 = vpop.f32.mrb[0].mxu0
    %v4119 = vadd.f32 0.0, %v4118
    %4120 = vmatprep.mubr.bf16.mxu0 %v2815
    %4121 = vmatmul.mubr.bf16.gmra.mrb[0].mxu0 %v2814
    %v4122 = vpop.f32.mrb[0].mxu0
    %v4123 = vadd.f32 0.0, %v4122
    %v4124 = vpop.f32.mrb[0].mxu0
    %v4125 = vadd.f32 0.0, %v4124
    %v4126 = vpop.f32.mrb[0].mxu0
    %v4127 = vadd.f32 0.0, %v4126
    %v4128 = vpop.f32.mrb[0].mxu0
    %v4129 = vadd.f32 0.0, %v4128
    %4130 = vmatprep.mubr.bf16.mxu0 %v2817
    %4131 = vmatmul.mubr.bf16.gmra.mrb[0].mxu0 %v2816
    %v4132 = vpop.f32.mrb[0].mxu0
    %v4133 = vadd.f32 0.0, %v4132
    %v4134 = vpop.f32.mrb[0].mxu0
    %v4135 = vadd.f32 0.0, %v4134
    %v4136 = vpop.f32.mrb[0].mxu0
    %v4137 = vadd.f32 0.0, %v4136
    %v4138 = vpop.f32.mrb[0].mxu0
    %v4139 = vadd.f32 0.0, %v4138
    %4140 = vmatprep.mubr.bf16.mxu0 %v2819
    %4141 = vmatmul.mubr.bf16.gmra.mrb[0].mxu0 %v2818
    %v4142 = vpop.f32.mrb[0].mxu0
    %v4143 = vadd.f32 0.0, %v4142
    %v4144 = vpop.f32.mrb[0].mxu0
    %v4145 = vadd.f32 0.0, %v4144
    %v4146 = vpop.f32.mrb[0].mxu0
    %v4147 = vadd.f32 0.0, %v4146
    %v4148 = vpop.f32.mrb[0].mxu0
    %v4149 = vadd.f32 0.0, %v4148
    %4150 = vmatprep.mubr.bf16.mxu0 %v2821
    %4151 = vmatmul.mubr.bf16.gmra.mrb[0].mxu0 %v2820
    %v4152 = vpop.f32.mrb[0].mxu0
    %v4153 = vadd.f32 0.0, %v4152
    %v4154 = vpop.f32.mrb[0].mxu0
    %v4155 = vadd.f32 0.0, %v4154
    %v4156 = vpop.f32.mrb[0].mxu0
    %v4157 = vadd.f32 0.0, %v4156
    %v4158 = vpop.f32.mrb[0].mxu0
    %v4159 = vadd.f32 0.0, %v4158
    %4160 = vmatprep.mubr.bf16.mxu0 %v2823
    %4161 = vmatmul.mubr.bf16.gmra.mrb[0].mxu0 %v2822
    %v4162 = vpop.f32.mrb[0].mxu0
    %v4163 = vadd.f32 0.0, %v4162
    %v4164 = vpop.f32.mrb[0].mxu0
    %v4165 = vadd.f32 0.0, %v4164
    %v4166 = vpop.f32.mrb[0].mxu0
    %v4167 = vadd.f32 0.0, %v4166
    %v4168 = vpop.f32.mrb[0].mxu0
    %v4169 = vadd.f32 0.0, %v4168
    %4170 = vdwg.mxu0
    %4171 = vmatprep.subr.bf16.mxu0 %v3343
    %4172 = vmatpush1.bf16.msra.mxu0 %v3342
    %4173 = vmatprep.subr.bf16.mxu0 %v3351
    %4174 = vmatpush1.bf16.msra.mxu0 %v3350
    %4175 = vmatprep.subr.bf16.mxu0 %v3359
    %4176 = vmatpush1.bf16.msra.mxu0 %v3358
    %4177 = vmatprep.subr.bf16.mxu0 %v3367
    %4178 = vmatpush1.bf16.msra.mxu0 %v3366
    %4179 = vmatprep.subr.bf16.mxu0 %v3375
    %4180 = vmatpush1.bf16.msra.mxu0 %v3374
    %4181 = vmatprep.subr.bf16.mxu0 %v3383
    %4182 = vmatpush1.bf16.msra.mxu0 %v3382
    %4183 = vmatprep.subr.bf16.mxu0 %v3391
    %4184 = vmatpush1.bf16.msra.mxu0 %v3390
    %4185 = vmatprep.subr.bf16.mxu0 %v3399
    %4186 = vmatpush1.bf16.msra.mxu0 %v3398
    %4187 = vmatprep.subr.bf16.mxu0 %v3407
    %4188 = vmatpush1.bf16.msra.mxu0 %v3406
    %4189 = vmatprep.subr.bf16.mxu0 %v3415
    %4190 = vmatpush1.bf16.msra.mxu0 %v3414
    %4191 = vmatprep.subr.bf16.mxu0 %v3423
    %4192 = vmatpush1.bf16.msra.mxu0 %v3422
    %4193 = vmatprep.subr.bf16.mxu0 %v3431
    %4194 = vmatpush1.bf16.msra.mxu0 %v3430
    %4195 = vmatprep.subr.bf16.mxu0 %v3439
    %4196 = vmatpush1.bf16.msra.mxu0 %v3438
    %4197 = vmatprep.subr.bf16.mxu0 %v3447
    %4198 = vmatpush1.bf16.msra.mxu0 %v3446
    %4199 = vmatprep.subr.bf16.mxu0 %v3455
    %4200 = vmatpush1.bf16.msra.mxu0 %v3454
    %4201 = vmatprep.subr.bf16.mxu0 %v3463
    %4202 = vmatpush1.bf16.msra.mxu0 %v3462
    %4203 = vmatprep.mubr.bf16.mxu0 %v2793
    %4204 = vmatmul.mubr.bf16.gmra.mrb[0].mxu0 %v2792
    %v4205 = vpop.f32.mrb[0].mxu0
    %v4206 = vadd.f32 0.0, %v4205
    %v4207 = vpop.f32.mrb[0].mxu0
    %v4208 = vadd.f32 0.0, %v4207
    %v4209 = vpop.f32.mrb[0].mxu0
    %v4210 = vadd.f32 0.0, %v4209
    %v4211 = vpop.f32.mrb[0].mxu0
    %v4212 = vadd.f32 0.0, %v4211
    %4213 = vmatprep.mubr.bf16.mxu0 %v2795
    %4214 = vmatmul.mubr.bf16.gmra.mrb[0].mxu0 %v2794
    %v4215 = vpop.f32.mrb[0].mxu0
    %v4216 = vadd.f32 0.0, %v4215
    %v4217 = vpop.f32.mrb[0].mxu0
    %v4218 = vadd.f32 0.0, %v4217
    %v4219 = vpop.f32.mrb[0].mxu0
    %v4220 = vadd.f32 0.0, %v4219
    %v4221 = vpop.f32.mrb[0].mxu0
    %v4222 = vadd.f32 0.0, %v4221
    %4223 = vmatprep.mubr.bf16.mxu0 %v2797
    %4224 = vmatmul.mubr.bf16.gmra.mrb[0].mxu0 %v2796
    %v4225 = vpop.f32.mrb[0].mxu0
    %v4226 = vadd.f32 0.0, %v4225
    %v4227 = vpop.f32.mrb[0].mxu0
    %v4228 = vadd.f32 0.0, %v4227
    %v4229 = vpop.f32.mrb[0].mxu0
    %v4230 = vadd.f32 0.0, %v4229
    %v4231 = vpop.f32.mrb[0].mxu0
    %v4232 = vadd.f32 0.0, %v4231
    %4233 = vmatprep.mubr.bf16.mxu0 %v2799
    %4234 = vmatmul.mubr.bf16.gmra.mrb[0].mxu0 %v2798
    %v4235 = vpop.f32.mrb[0].mxu0
    %v4236 = vadd.f32 0.0, %v4235
    %v4237 = vpop.f32.mrb[0].mxu0
    %v4238 = vadd.f32 0.0, %v4237
    %v4239 = vpop.f32.mrb[0].mxu0
    %v4240 = vadd.f32 0.0, %v4239
    %v4241 = vpop.f32.mrb[0].mxu0
    %v4242 = vadd.f32 0.0, %v4241
    %4243 = vmatprep.mubr.bf16.mxu0 %v2801
    %4244 = vmatmul.mubr.bf16.gmra.mrb[0].mxu0 %v2800
    %v4245 = vpop.f32.mrb[0].mxu0
    %v4246 = vadd.f32 0.0, %v4245
    %v4247 = vpop.f32.mrb[0].mxu0
    %v4248 = vadd.f32 0.0, %v4247
    %v4249 = vpop.f32.mrb[0].mxu0
    %v4250 = vadd.f32 0.0, %v4249
    %v4251 = vpop.f32.mrb[0].mxu0
    %v4252 = vadd.f32 0.0, %v4251
    %4253 = vmatprep.mubr.bf16.mxu0 %v2803
    %4254 = vmatmul.mubr.bf16.gmra.mrb[0].mxu0 %v2802
    %v4255 = vpop.f32.mrb[0].mxu0
    %v4256 = vadd.f32 0.0, %v4255
    %v4257 = vpop.f32.mrb[0].mxu0
    %v4258 = vadd.f32 0.0, %v4257
    %v4259 = vpop.f32.mrb[0].mxu0
    %v4260 = vadd.f32 0.0, %v4259
    %v4261 = vpop.f32.mrb[0].mxu0
    %v4262 = vadd.f32 0.0, %v4261
    %4263 = vmatprep.mubr.bf16.mxu0 %v2805
    %4264 = vmatmul.mubr.bf16.gmra.mrb[0].mxu0 %v2804
    %v4265 = vpop.f32.mrb[0].mxu0
    %v4266 = vadd.f32 0.0, %v4265
    %v4267 = vpop.f32.mrb[0].mxu0
    %v4268 = vadd.f32 0.0, %v4267
    %v4269 = vpop.f32.mrb[0].mxu0
    %v4270 = vadd.f32 0.0, %v4269
    %v4271 = vpop.f32.mrb[0].mxu0
    %v4272 = vadd.f32 0.0, %v4271
    %4273 = vmatprep.mubr.bf16.mxu0 %v2807
    %4274 = vmatmul.mubr.bf16.gmra.mrb[0].mxu0 %v2806
    %v4275 = vpop.f32.mrb[0].mxu0
    %v4276 = vadd.f32 0.0, %v4275
    %v4277 = vpop.f32.mrb[0].mxu0
    %v4278 = vadd.f32 0.0, %v4277
    %v4279 = vpop.f32.mrb[0].mxu0
    %v4280 = vadd.f32 0.0, %v4279
    %v4281 = vpop.f32.mrb[0].mxu0
    %v4282 = vadd.f32 0.0, %v4281
    %4283 = vmatprep.mubr.bf16.mxu0 %v2809
    %4284 = vmatmul.mubr.bf16.gmra.mrb[0].mxu0 %v2808
    %v4285 = vpop.f32.mrb[0].mxu0
    %v4286 = vadd.f32 0.0, %v4285
    %v4287 = vpop.f32.mrb[0].mxu0
    %v4288 = vadd.f32 0.0, %v4287
    %v4289 = vpop.f32.mrb[0].mxu0
    %v4290 = vadd.f32 0.0, %v4289
    %v4291 = vpop.f32.mrb[0].mxu0
    %v4292 = vadd.f32 0.0, %v4291
    %4293 = vmatprep.mubr.bf16.mxu0 %v2811
    %4294 = vmatmul.mubr.bf16.gmra.mrb[0].mxu0 %v2810
    %v4295 = vpop.f32.mrb[0].mxu0
    %v4296 = vadd.f32 0.0, %v4295
    %v4297 = vpop.f32.mrb[0].mxu0
    %v4298 = vadd.f32 0.0, %v4297
    %v4299 = vpop.f32.mrb[0].mxu0
    %v4300 = vadd.f32 0.0, %v4299
    %v4301 = vpop.f32.mrb[0].mxu0
    %v4302 = vadd.f32 0.0, %v4301
    %4303 = vmatprep.mubr.bf16.mxu0 %v2813
    %4304 = vmatmul.mubr.bf16.gmra.mrb[0].mxu0 %v2812
    %v4305 = vpop.f32.mrb[0].mxu0
    %v4306 = vadd.f32 0.0, %v4305
    %v4307 = vpop.f32.mrb[0].mxu0
    %v4308 = vadd.f32 0.0, %v4307
    %v4309 = vpop.f32.mrb[0].mxu0
    %v4310 = vadd.f32 0.0, %v4309
    %v4311 = vpop.f32.mrb[0].mxu0
    %v4312 = vadd.f32 0.0, %v4311
    %4313 = vmatprep.mubr.bf16.mxu0 %v2815
    %4314 = vmatmul.mubr.bf16.gmra.mrb[0].mxu0 %v2814
    %v4315 = vpop.f32.mrb[0].mxu0
    %v4316 = vadd.f32 0.0, %v4315
    %v4317 = vpop.f32.mrb[0].mxu0
    %v4318 = vadd.f32 0.0, %v4317
    %v4319 = vpop.f32.mrb[0].mxu0
    %v4320 = vadd.f32 0.0, %v4319
    %v4321 = vpop.f32.mrb[0].mxu0
    %v4322 = vadd.f32 0.0, %v4321
    %4323 = vmatprep.mubr.bf16.mxu0 %v2817
    %4324 = vmatmul.mubr.bf16.gmra.mrb[0].mxu0 %v2816
    %v4325 = vpop.f32.mrb[0].mxu0
    %v4326 = vadd.f32 0.0, %v4325
    %v4327 = vpop.f32.mrb[0].mxu0
    %v4328 = vadd.f32 0.0, %v4327
    %v4329 = vpop.f32.mrb[0].mxu0
    %v4330 = vadd.f32 0.0, %v4329
    %v4331 = vpop.f32.mrb[0].mxu0
    %v4332 = vadd.f32 0.0, %v4331
    %4333 = vmatprep.mubr.bf16.mxu0 %v2819
    %4334 = vmatmul.mubr.bf16.gmra.mrb[0].mxu0 %v2818
    %v4335 = vpop.f32.mrb[0].mxu0
    %v4336 = vadd.f32 0.0, %v4335
    %v4337 = vpop.f32.mrb[0].mxu0
    %v4338 = vadd.f32 0.0, %v4337
    %v4339 = vpop.f32.mrb[0].mxu0
    %v4340 = vadd.f32 0.0, %v4339
    %v4341 = vpop.f32.mrb[0].mxu0
    %v4342 = vadd.f32 0.0, %v4341
    %4343 = vmatprep.mubr.bf16.mxu0 %v2821
    %4344 = vmatmul.mubr.bf16.gmra.mrb[0].mxu0 %v2820
    %v4345 = vpop.f32.mrb[0].mxu0
    %v4346 = vadd.f32 0.0, %v4345
    %v4347 = vpop.f32.mrb[0].mxu0
    %v4348 = vadd.f32 0.0, %v4347
    %v4349 = vpop.f32.mrb[0].mxu0
    %v4350 = vadd.f32 0.0, %v4349
    %v4351 = vpop.f32.mrb[0].mxu0
    %v4352 = vadd.f32 0.0, %v4351
    %4353 = vmatprep.mubr.bf16.mxu0 %v2823
    %4354 = vmatmul.mubr.bf16.gmra.mrb[0].mxu0 %v2822
    %v4355 = vpop.f32.mrb[0].mxu0
    %v4356 = vadd.f32 0.0, %v4355
    %v4357 = vpop.f32.mrb[0].mxu0
    %v4358 = vadd.f32 0.0, %v4357
    %v4359 = vpop.f32.mrb[0].mxu0
    %v4360 = vadd.f32 0.0, %v4359
    %v4361 = vpop.f32.mrb[0].mxu0
    %v4362 = vadd.f32 0.0, %v4361
    %4363 = vdwg.mxu0
    %v4364 = vld [vmem:[%s9] sm:$0xff]
    %v4365 = vpack.c.bf16 %v3631, %v3627
    %v4366 = vpack.c.bf16 %v3633, %v3629
    %v4367 = vpack.c.bf16 %v3824, %v3820
    %v4368 = vpack.c.bf16 %v3826, %v3822
    %v4369 = vpack.c.bf16 %v4017, %v4013
    %v4370 = vpack.c.bf16 %v4019, %v4015
    %v4371 = vpack.c.bf16 %v4210, %v4206
    %v4372 = vpack.c.bf16 %v4212, %v4208
    %v4373 = vpack.c.bf16 %v3641, %v3637
    %v4374 = vpack.c.bf16 %v3643, %v3639
    %v4375 = vpack.c.bf16 %v3834, %v3830
    %v4376 = vpack.c.bf16 %v3836, %v3832
    %v4377 = vpack.c.bf16 %v4027, %v4023
    %v4378 = vpack.c.bf16 %v4029, %v4025
    %v4379 = vpack.c.bf16 %v4220, %v4216
    %v4380 = vpack.c.bf16 %v4222, %v4218
    %v4381 = vpack.c.bf16 %v3651, %v3647
    %v4382 = vpack.c.bf16 %v3653, %v3649
    %v4383 = vpack.c.bf16 %v3844, %v3840
    %v4384 = vpack.c.bf16 %v3846, %v3842
    %v4385 = vpack.c.bf16 %v4037, %v4033
    %v4386 = vpack.c.bf16 %v4039, %v4035
    %v4387 = vpack.c.bf16 %v4230, %v4226
    %v4388 = vpack.c.bf16 %v4232, %v4228
    %v4389 = vpack.c.bf16 %v3661, %v3657
    %v4390 = vpack.c.bf16 %v3663, %v3659
    %v4391 = vpack.c.bf16 %v3854, %v3850
    %v4392 = vpack.c.bf16 %v3856, %v3852
    %v4393 = vpack.c.bf16 %v4047, %v4043
    %v4394 = vpack.c.bf16 %v4049, %v4045
    %v4395 = vpack.c.bf16 %v4240, %v4236
    %v4396 = vpack.c.bf16 %v4242, %v4238
    %v4397 = vpack.c.bf16 %v3671, %v3667
    %v4398 = vpack.c.bf16 %v3673, %v3669
    %v4399 = vpack.c.bf16 %v3864, %v3860
    %v4400 = vpack.c.bf16 %v3866, %v3862
    %v4401 = vpack.c.bf16 %v4057, %v4053
    %v4402 = vpack.c.bf16 %v4059, %v4055
    %v4403 = vpack.c.bf16 %v4250, %v4246
    %v4404 = vpack.c.bf16 %v4252, %v4248
    %v4405 = vpack.c.bf16 %v3681, %v3677
    %v4406 = vpack.c.bf16 %v3683, %v3679
    %v4407 = vpack.c.bf16 %v3874, %v3870
    %v4408 = vpack.c.bf16 %v3876, %v3872
    %v4409 = vpack.c.bf16 %v4067, %v4063
    %v4410 = vpack.c.bf16 %v4069, %v4065
    %v4411 = vpack.c.bf16 %v4260, %v4256
    %v4412 = vpack.c.bf16 %v4262, %v4258
    %v4413 = vpack.c.bf16 %v3691, %v3687
    %v4414 = vpack.c.bf16 %v3693, %v3689
    %v4415 = vpack.c.bf16 %v3884, %v3880
    %v4416 = vpack.c.bf16 %v3886, %v3882
    %v4417 = vpack.c.bf16 %v4077, %v4073
    %v4418 = vpack.c.bf16 %v4079, %v4075
    %v4419 = vpack.c.bf16 %v4270, %v4266
    %v4420 = vpack.c.bf16 %v4272, %v4268
    %v4421 = vpack.c.bf16 %v3701, %v3697
    %v4422 = vpack.c.bf16 %v3703, %v3699
    %v4423 = vpack.c.bf16 %v3894, %v3890
    %v4424 = vpack.c.bf16 %v3896, %v3892
    %v4425 = vpack.c.bf16 %v4087, %v4083
    %v4426 = vpack.c.bf16 %v4089, %v4085
    %v4427 = vpack.c.bf16 %v4280, %v4276
    %v4428 = vpack.c.bf16 %v4282, %v4278
    %v4429 = vpack.c.bf16 %v3711, %v3707
    %v4430 = vpack.c.bf16 %v3713, %v3709
    %v4431 = vpack.c.bf16 %v3904, %v3900
    %v4432 = vpack.c.bf16 %v3906, %v3902
    %v4433 = vpack.c.bf16 %v4097, %v4093
    %v4434 = vpack.c.bf16 %v4099, %v4095
    %v4435 = vpack.c.bf16 %v4290, %v4286
    %v4436 = vpack.c.bf16 %v4292, %v4288
    %v4437 = vpack.c.bf16 %v3721, %v3717
    %v4438 = vpack.c.bf16 %v3723, %v3719
    %v4439 = vpack.c.bf16 %v3914, %v3910
    %v4440 = vpack.c.bf16 %v3916, %v3912
    %v4441 = vpack.c.bf16 %v4107, %v4103
    %v4442 = vpack.c.bf16 %v4109, %v4105
    %v4443 = vpack.c.bf16 %v4300, %v4296
    %v4444 = vpack.c.bf16 %v4302, %v4298
    %v4445 = vpack.c.bf16 %v3731, %v3727
    %v4446 = vpack.c.bf16 %v3733, %v3729
    %v4447 = vpack.c.bf16 %v3924, %v3920
    %v4448 = vpack.c.bf16 %v3926, %v3922
    %v4449 = vpack.c.bf16 %v4117, %v4113
    %v4450 = vpack.c.bf16 %v4119, %v4115
    %v4451 = vpack.c.bf16 %v4310, %v4306
    %v4452 = vpack.c.bf16 %v4312, %v4308
    %v4453 = vpack.c.bf16 %v3741, %v3737
    %v4454 = vpack.c.bf16 %v3743, %v3739
    %v4455 = vpack.c.bf16 %v3934, %v3930
    %v4456 = vpack.c.bf16 %v3936, %v3932
    %v4457 = vpack.c.bf16 %v4127, %v4123
    %v4458 = vpack.c.bf16 %v4129, %v4125
    %v4459 = vpack.c.bf16 %v4320, %v4316
    %v4460 = vpack.c.bf16 %v4322, %v4318
    %v4461 = vpack.c.bf16 %v3751, %v3747
    %v4462 = vpack.c.bf16 %v3753, %v3749
    %v4463 = vpack.c.bf16 %v3944, %v3940
    %v4464 = vpack.c.bf16 %v3946, %v3942
    %v4465 = vpack.c.bf16 %v4137, %v4133
    %v4466 = vpack.c.bf16 %v4139, %v4135
    %v4467 = vpack.c.bf16 %v4330, %v4326
    %v4468 = vpack.c.bf16 %v4332, %v4328
    %v4469 = vpack.c.bf16 %v3761, %v3757
    %v4470 = vpack.c.bf16 %v3763, %v3759
    %v4471 = vpack.c.bf16 %v3954, %v3950
    %v4472 = vpack.c.bf16 %v3956, %v3952
    %v4473 = vpack.c.bf16 %v4147, %v4143
    %v4474 = vpack.c.bf16 %v4149, %v4145
    %v4475 = vpack.c.bf16 %v4340, %v4336
    %v4476 = vpack.c.bf16 %v4342, %v4338
    %v4477 = vpack.c.bf16 %v3771, %v3767
    %v4478 = vpack.c.bf16 %v3773, %v3769
    %v4479 = vpack.c.bf16 %v3964, %v3960
    %v4480 = vpack.c.bf16 %v3966, %v3962
    %v4481 = vpack.c.bf16 %v4157, %v4153
    %v4482 = vpack.c.bf16 %v4159, %v4155
    %v4483 = vpack.c.bf16 %v4350, %v4346
    %v4484 = vpack.c.bf16 %v4352, %v4348
    %v4485 = vpack.c.bf16 %v3781, %v3777
    %v4486 = vpack.c.bf16 %v3783, %v3779
    %v4487 = vpack.c.bf16 %v3974, %v3970
    %v4488 = vpack.c.bf16 %v3976, %v3972
    %v4489 = vpack.c.bf16 %v4167, %v4163
    %v4490 = vpack.c.bf16 %v4169, %v4165
    %v4491 = vpack.c.bf16 %v4360, %v4356
    %v4492 = vpack.c.bf16 %v4362, %v4358
    %v4494 = vcombine.high %v4364, %v4364
    %v4496 = vunpack.c.l.s4 1966171168
    %v4497 = vunpack.c.0.s8 %v4496
    %v4498 = vlaneseq
    %v4499 = vshrl.u32 %v4498, 7
    %v4500 = vsub.s32 %v4497, %v4499
    %v4501 = vrot.slane %v4364, %v4500
    %v4503 = vunpack.c.l.s4 1966171168
    %v4504 = vunpack.c.0.s8 %v4503
    %v4505 = vlaneseq
    %v4506 = vshrl.u32 %v4505, 7
    %v4507 = vsub.s32 %v4504, %v4506
    %v4508 = vrot.slane %v4494, %v4507
    %v4509 = vcombine.high %v4501, %v4501
    %v4510 = vcombine.high %v4508, %v4508
    %v4512 = vunpack.c.l.s4 1966171168
    %v4513 = vunpack.c.0.s8 %v4512
    %v4514 = vlaneseq
    %v4515 = vshrl.u32 %v4514, 7
    %v4516 = vsub.s32 %v4513, %v4515
    %v4517 = vrot.slane %v4501, %v4516
    %v4519 = vunpack.c.l.s4 1966171168
    %v4520 = vunpack.c.0.s8 %v4519
    %v4521 = vlaneseq
    %v4522 = vshrl.u32 %v4521, 7
    %v4523 = vsub.s32 %v4520, %v4522
    %v4524 = vrot.slane %v4508, %v4523
    %v4526 = vunpack.c.l.s4 1966171168
    %v4527 = vunpack.c.0.s8 %v4526
    %v4528 = vlaneseq
    %v4529 = vshrl.u32 %v4528, 7
    %v4530 = vsub.s32 %v4527, %v4529
    %v4531 = vrot.slane %v4509, %v4530
    %v4533 = vunpack.c.l.s4 1966171168
    %v4534 = vunpack.c.0.s8 %v4533
    %v4535 = vlaneseq
    %v4536 = vshrl.u32 %v4535, 7
    %v4537 = vsub.s32 %v4534, %v4536
    %v4538 = vrot.slane %v4510, %v4537
    %v4539 = vcombine.high %v4517, %v4517
    %v4540 = vcombine.high %v4524, %v4524
    %v4541 = vcombine.high %v4531, %v4531
    %v4542 = vcombine.high %v4538, %v4538
    %v4544 = vpack.i.b16 %v4517, %v4517
    %v4546 = vlaneseq
    %v4547 = vshrl.u32 %v4546, 7
    %v4548 = vsub.s32 0, %v4547
    %v4549 = vrot.slane %v4544, %v4548
    %v4551 = vpack.i.b16 %v4531, %v4531
    %v4553 = vlaneseq
    %v4554 = vshrl.u32 %v4553, 7
    %v4555 = vsub.s32 0, %v4554
    %v4556 = vrot.slane %v4551, %v4555
    %v4558 = vpack.i.b16 %v4539, %v4539
    %v4560 = vlaneseq
    %v4561 = vshrl.u32 %v4560, 7
    %v4562 = vsub.s32 0, %v4561
    %v4563 = vrot.slane %v4558, %v4562
    %v4565 = vpack.i.b16 %v4541, %v4541
    %v4567 = vlaneseq
    %v4568 = vshrl.u32 %v4567, 7
    %v4569 = vsub.s32 0, %v4568
    %v4570 = vrot.slane %v4565, %v4569
    %v4572 = vpack.i.b16 %v4524, %v4524
    %v4574 = vlaneseq
    %v4575 = vshrl.u32 %v4574, 7
    %v4576 = vsub.s32 0, %v4575
    %v4577 = vrot.slane %v4572, %v4576
    %v4579 = vpack.i.b16 %v4538, %v4538
    %v4581 = vlaneseq
    %v4582 = vshrl.u32 %v4581, 7
    %v4583 = vsub.s32 0, %v4582
    %v4584 = vrot.slane %v4579, %v4583
    %v4586 = vpack.i.b16 %v4540, %v4540
    %v4588 = vlaneseq
    %v4589 = vshrl.u32 %v4588, 7
    %v4590 = vsub.s32 0, %v4589
    %v4591 = vrot.slane %v4586, %v4590
    %v4593 = vpack.i.b16 %v4542, %v4542
    %v4595 = vlaneseq
    %v4596 = vshrl.u32 %v4595, 7
    %v4597 = vsub.s32 0, %v4596
    %v4598 = vrot.slane %v4593, %v4597
    %v4599 = vadd.bf16 %v4365, %v4549
    %v4600 = vadd.bf16 %v4366, %v4556
    %v4601 = vadd.bf16 %v4367, %v4563
    %v4602 = vadd.bf16 %v4368, %v4570
    %v4603 = vadd.bf16 %v4369, %v4577
    %v4604 = vadd.bf16 %v4370, %v4584
    %v4605 = vadd.bf16 %v4371, %v4591
    %v4606 = vadd.bf16 %v4372, %v4598
    %v4607 = vadd.bf16 %v4373, %v4549
    %v4608 = vadd.bf16 %v4374, %v4556
    %v4609 = vadd.bf16 %v4375, %v4563
    %v4610 = vadd.bf16 %v4376, %v4570
    %v4611 = vadd.bf16 %v4377, %v4577
    %v4612 = vadd.bf16 %v4378, %v4584
    %v4613 = vadd.bf16 %v4379, %v4591
    %v4614 = vadd.bf16 %v4380, %v4598
    %v4615 = vadd.bf16 %v4381, %v4549
    %v4616 = vadd.bf16 %v4382, %v4556
    %v4617 = vadd.bf16 %v4383, %v4563
    %v4618 = vadd.bf16 %v4384, %v4570
    %v4619 = vadd.bf16 %v4385, %v4577
    %v4620 = vadd.bf16 %v4386, %v4584
    %v4621 = vadd.bf16 %v4387, %v4591
    %v4622 = vadd.bf16 %v4388, %v4598
    %v4623 = vadd.bf16 %v4389, %v4549
    %v4624 = vadd.bf16 %v4390, %v4556
    %v4625 = vadd.bf16 %v4391, %v4563
    %v4626 = vadd.bf16 %v4392, %v4570
    %v4627 = vadd.bf16 %v4393, %v4577
    %v4628 = vadd.bf16 %v4394, %v4584
    %v4629 = vadd.bf16 %v4395, %v4591
    %v4630 = vadd.bf16 %v4396, %v4598
    %v4631 = vadd.bf16 %v4397, %v4549
    %v4632 = vadd.bf16 %v4398, %v4556
    %v4633 = vadd.bf16 %v4399, %v4563
    %v4634 = vadd.bf16 %v4400, %v4570
    %v4635 = vadd.bf16 %v4401, %v4577
    %v4636 = vadd.bf16 %v4402, %v4584
    %v4637 = vadd.bf16 %v4403, %v4591
    %v4638 = vadd.bf16 %v4404, %v4598
    %v4639 = vadd.bf16 %v4405, %v4549
    %v4640 = vadd.bf16 %v4406, %v4556
    %v4641 = vadd.bf16 %v4407, %v4563
    %v4642 = vadd.bf16 %v4408, %v4570
    %v4643 = vadd.bf16 %v4409, %v4577
    %v4644 = vadd.bf16 %v4410, %v4584
    %v4645 = vadd.bf16 %v4411, %v4591
    %v4646 = vadd.bf16 %v4412, %v4598
    %v4647 = vadd.bf16 %v4413, %v4549
    %v4648 = vadd.bf16 %v4414, %v4556
    %v4649 = vadd.bf16 %v4415, %v4563
    %v4650 = vadd.bf16 %v4416, %v4570
    %v4651 = vadd.bf16 %v4417, %v4577
    %v4652 = vadd.bf16 %v4418, %v4584
    %v4653 = vadd.bf16 %v4419, %v4591
    %v4654 = vadd.bf16 %v4420, %v4598
    %v4655 = vadd.bf16 %v4421, %v4549
    %v4656 = vadd.bf16 %v4422, %v4556
    %v4657 = vadd.bf16 %v4423, %v4563
    %v4658 = vadd.bf16 %v4424, %v4570
    %v4659 = vadd.bf16 %v4425, %v4577
    %v4660 = vadd.bf16 %v4426, %v4584
    %v4661 = vadd.bf16 %v4427, %v4591
    %v4662 = vadd.bf16 %v4428, %v4598
    %v4663 = vadd.bf16 %v4429, %v4549
    %v4664 = vadd.bf16 %v4430, %v4556
    %v4665 = vadd.bf16 %v4431, %v4563
    %v4666 = vadd.bf16 %v4432, %v4570
    %v4667 = vadd.bf16 %v4433, %v4577
    %v4668 = vadd.bf16 %v4434, %v4584
    %v4669 = vadd.bf16 %v4435, %v4591
    %v4670 = vadd.bf16 %v4436, %v4598
    %v4671 = vadd.bf16 %v4437, %v4549
    %v4672 = vadd.bf16 %v4438, %v4556
    %v4673 = vadd.bf16 %v4439, %v4563
    %v4674 = vadd.bf16 %v4440, %v4570
    %v4675 = vadd.bf16 %v4441, %v4577
    %v4676 = vadd.bf16 %v4442, %v4584
    %v4677 = vadd.bf16 %v4443, %v4591
    %v4678 = vadd.bf16 %v4444, %v4598
    %v4679 = vadd.bf16 %v4445, %v4549
    %v4680 = vadd.bf16 %v4446, %v4556
    %v4681 = vadd.bf16 %v4447, %v4563
    %v4682 = vadd.bf16 %v4448, %v4570
    %v4683 = vadd.bf16 %v4449, %v4577
    %v4684 = vadd.bf16 %v4450, %v4584
    %v4685 = vadd.bf16 %v4451, %v4591
    %v4686 = vadd.bf16 %v4452, %v4598
    %v4687 = vadd.bf16 %v4453, %v4549
    %v4688 = vadd.bf16 %v4454, %v4556
    %v4689 = vadd.bf16 %v4455, %v4563
    %v4690 = vadd.bf16 %v4456, %v4570
    %v4691 = vadd.bf16 %v4457, %v4577
    %v4692 = vadd.bf16 %v4458, %v4584
    %v4693 = vadd.bf16 %v4459, %v4591
    %v4694 = vadd.bf16 %v4460, %v4598
    %v4695 = vadd.bf16 %v4461, %v4549
    %v4696 = vadd.bf16 %v4462, %v4556
    %v4697 = vadd.bf16 %v4463, %v4563
    %v4698 = vadd.bf16 %v4464, %v4570
    %v4699 = vadd.bf16 %v4465, %v4577
    %v4700 = vadd.bf16 %v4466, %v4584
    %v4701 = vadd.bf16 %v4467, %v4591
    %v4702 = vadd.bf16 %v4468, %v4598
    %v4703 = vadd.bf16 %v4469, %v4549
    %v4704 = vadd.bf16 %v4470, %v4556
    %v4705 = vadd.bf16 %v4471, %v4563
    %v4706 = vadd.bf16 %v4472, %v4570
    %v4707 = vadd.bf16 %v4473, %v4577
    %v4708 = vadd.bf16 %v4474, %v4584
    %v4709 = vadd.bf16 %v4475, %v4591
    %v4710 = vadd.bf16 %v4476, %v4598
    %v4711 = vadd.bf16 %v4477, %v4549
    %v4712 = vadd.bf16 %v4478, %v4556
    %v4713 = vadd.bf16 %v4479, %v4563
    %v4714 = vadd.bf16 %v4480, %v4570
    %v4715 = vadd.bf16 %v4481, %v4577
    %v4716 = vadd.bf16 %v4482, %v4584
    %v4717 = vadd.bf16 %v4483, %v4591
    %v4718 = vadd.bf16 %v4484, %v4598
    %v4719 = vadd.bf16 %v4485, %v4549
    %v4720 = vadd.bf16 %v4486, %v4556
    %v4721 = vadd.bf16 %v4487, %v4563
    %v4722 = vadd.bf16 %v4488, %v4570
    %v4723 = vadd.bf16 %v4489, %v4577
    %v4724 = vadd.bf16 %v4490, %v4584
    %v4725 = vadd.bf16 %v4491, %v4591
    %v4726 = vadd.bf16 %v4492, %v4598
    %v4727 = vmul.bf16 %v4599, 1009007652
    %v4728 = vmul.bf16 %v4600, 1009007652
    %v4729 = vmul.bf16 %v4601, 1009007652
    %v4730 = vmul.bf16 %v4602, 1009007652
    %v4731 = vmul.bf16 %v4603, 1009007652
    %v4732 = vmul.bf16 %v4604, 1009007652
    %v4733 = vmul.bf16 %v4605, 1009007652
    %v4734 = vmul.bf16 %v4606, 1009007652
    %v4735 = vmul.bf16 %v4607, 1009007652
    %v4736 = vmul.bf16 %v4608, 1009007652
    %v4737 = vmul.bf16 %v4609, 1009007652
    %v4738 = vmul.bf16 %v4610, 1009007652
    %v4739 = vmul.bf16 %v4611, 1009007652
    %v4740 = vmul.bf16 %v4612, 1009007652
    %v4741 = vmul.bf16 %v4613, 1009007652
    %v4742 = vmul.bf16 %v4614, 1009007652
    %v4743 = vmul.bf16 %v4615, 1009007652
    %v4744 = vmul.bf16 %v4616, 1009007652
    %v4745 = vmul.bf16 %v4617, 1009007652
    %v4746 = vmul.bf16 %v4618, 1009007652
    %v4747 = vmul.bf16 %v4619, 1009007652
    %v4748 = vmul.bf16 %v4620, 1009007652
    %v4749 = vmul.bf16 %v4621, 1009007652
    %v4750 = vmul.bf16 %v4622, 1009007652
    %v4751 = vmul.bf16 %v4623, 1009007652
    %v4752 = vmul.bf16 %v4624, 1009007652
    %v4753 = vmul.bf16 %v4625, 1009007652
    %v4754 = vmul.bf16 %v4626, 1009007652
    %v4755 = vmul.bf16 %v4627, 1009007652
    %v4756 = vmul.bf16 %v4628, 1009007652
    %v4757 = vmul.bf16 %v4629, 1009007652
    %v4758 = vmul.bf16 %v4630, 1009007652
    %v4759 = vmul.bf16 %v4631, 1009007652
    %v4760 = vmul.bf16 %v4632, 1009007652
    %v4761 = vmul.bf16 %v4633, 1009007652
    %v4762 = vmul.bf16 %v4634, 1009007652
    %v4763 = vmul.bf16 %v4635, 1009007652
    %v4764 = vmul.bf16 %v4636, 1009007652
    %v4765 = vmul.bf16 %v4637, 1009007652
    %v4766 = vmul.bf16 %v4638, 1009007652
    %v4767 = vmul.bf16 %v4639, 1009007652
    %v4768 = vmul.bf16 %v4640, 1009007652
    %v4769 = vmul.bf16 %v4641, 1009007652
    %v4770 = vmul.bf16 %v4642, 1009007652
    %v4771 = vmul.bf16 %v4643, 1009007652
    %v4772 = vmul.bf16 %v4644, 1009007652
    %v4773 = vmul.bf16 %v4645, 1009007652
    %v4774 = vmul.bf16 %v4646, 1009007652
    %v4775 = vmul.bf16 %v4647, 1009007652
    %v4776 = vmul.bf16 %v4648, 1009007652
    %v4777 = vmul.bf16 %v4649, 1009007652
    %v4778 = vmul.bf16 %v4650, 1009007652
    %v4779 = vmul.bf16 %v4651, 1009007652
    %v4780 = vmul.bf16 %v4652, 1009007652
    %v4781 = vmul.bf16 %v4653, 1009007652
    %v4782 = vmul.bf16 %v4654, 1009007652
    %v4783 = vmul.bf16 %v4655, 1009007652
    %v4784 = vmul.bf16 %v4656, 1009007652
    %v4785 = vmul.bf16 %v4657, 1009007652
    %v4786 = vmul.bf16 %v4658, 1009007652
    %v4787 = vmul.bf16 %v4659, 1009007652
    %v4788 = vmul.bf16 %v4660, 1009007652
    %v4789 = vmul.bf16 %v4661, 1009007652
    %v4790 = vmul.bf16 %v4662, 1009007652
    %v4791 = vmul.bf16 %v4663, 1009007652
    %v4792 = vmul.bf16 %v4664, 1009007652
    %v4793 = vmul.bf16 %v4665, 1009007652
    %v4794 = vmul.bf16 %v4666, 1009007652
    %v4795 = vmul.bf16 %v4667, 1009007652
    %v4796 = vmul.bf16 %v4668, 1009007652
    %v4797 = vmul.bf16 %v4669, 1009007652
    %v4798 = vmul.bf16 %v4670, 1009007652
    %v4799 = vmul.bf16 %v4671, 1009007652
    %v4800 = vmul.bf16 %v4672, 1009007652
    %v4801 = vmul.bf16 %v4673, 1009007652
    %v4802 = vmul.bf16 %v4674, 1009007652
    %v4803 = vmul.bf16 %v4675, 1009007652
    %v4804 = vmul.bf16 %v4676, 1009007652
    %v4805 = vmul.bf16 %v4677, 1009007652
    %v4806 = vmul.bf16 %v4678, 1009007652
    %v4807 = vmul.bf16 %v4679, 1009007652
    %v4808 = vmul.bf16 %v4680, 1009007652
    %v4809 = vmul.bf16 %v4681, 1009007652
    %v4810 = vmul.bf16 %v4682, 1009007652
    %v4811 = vmul.bf16 %v4683, 1009007652
    %v4812 = vmul.bf16 %v4684, 1009007652
    %v4813 = vmul.bf16 %v4685, 1009007652
    %v4814 = vmul.bf16 %v4686, 1009007652
    %v4815 = vmul.bf16 %v4687, 1009007652
    %v4816 = vmul.bf16 %v4688, 1009007652
    %v4817 = vmul.bf16 %v4689, 1009007652
    %v4818 = vmul.bf16 %v4690, 1009007652
    %v4819 = vmul.bf16 %v4691, 1009007652
    %v4820 = vmul.bf16 %v4692, 1009007652
    %v4821 = vmul.bf16 %v4693, 1009007652
    %v4822 = vmul.bf16 %v4694, 1009007652
    %v4823 = vmul.bf16 %v4695, 1009007652
    %v4824 = vmul.bf16 %v4696, 1009007652
    %v4825 = vmul.bf16 %v4697, 1009007652
    %v4826 = vmul.bf16 %v4698, 1009007652
    %v4827 = vmul.bf16 %v4699, 1009007652
    %v4828 = vmul.bf16 %v4700, 1009007652
    %v4829 = vmul.bf16 %v4701, 1009007652
    %v4830 = vmul.bf16 %v4702, 1009007652
    %v4831 = vmul.bf16 %v4703, 1009007652
    %v4832 = vmul.bf16 %v4704, 1009007652
    %v4833 = vmul.bf16 %v4705, 1009007652
    %v4834 = vmul.bf16 %v4706, 1009007652
    %v4835 = vmul.bf16 %v4707, 1009007652
    %v4836 = vmul.bf16 %v4708, 1009007652
    %v4837 = vmul.bf16 %v4709, 1009007652
    %v4838 = vmul.bf16 %v4710, 1009007652
    %v4839 = vmul.bf16 %v4711, 1009007652
    %v4840 = vmul.bf16 %v4712, 1009007652
    %v4841 = vmul.bf16 %v4713, 1009007652
    %v4842 = vmul.bf16 %v4714, 1009007652
    %v4843 = vmul.bf16 %v4715, 1009007652
    %v4844 = vmul.bf16 %v4716, 1009007652
    %v4845 = vmul.bf16 %v4717, 1009007652
    %v4846 = vmul.bf16 %v4718, 1009007652
    %v4847 = vmul.bf16 %v4719, 1009007652
    %v4848 = vmul.bf16 %v4720, 1009007652
    %v4849 = vmul.bf16 %v4721, 1009007652
    %v4850 = vmul.bf16 %v4722, 1009007652
    %v4851 = vmul.bf16 %v4723, 1009007652
    %v4852 = vmul.bf16 %v4724, 1009007652
    %v4853 = vmul.bf16 %v4725, 1009007652
    %v4854 = vmul.bf16 %v4726, 1009007652
    %v4855 = vmax.bf16 %v4599, %v4727
    %v4856 = vmax.bf16 %v4600, %v4728
    %v4857 = vmax.bf16 %v4601, %v4729
    %v4858 = vmax.bf16 %v4602, %v4730
    %v4859 = vmax.bf16 %v4603, %v4731
    %v4860 = vmax.bf16 %v4604, %v4732
    %v4861 = vmax.bf16 %v4605, %v4733
    %v4862 = vmax.bf16 %v4606, %v4734
    %v4863 = vmax.bf16 %v4607, %v4735
    %v4864 = vmax.bf16 %v4608, %v4736
    %v4865 = vmax.bf16 %v4609, %v4737
    %v4866 = vmax.bf16 %v4610, %v4738
    %v4867 = vmax.bf16 %v4611, %v4739
    %v4868 = vmax.bf16 %v4612, %v4740
    %v4869 = vmax.bf16 %v4613, %v4741
    %v4870 = vmax.bf16 %v4614, %v4742
    %v4871 = vmax.bf16 %v4615, %v4743
    %v4872 = vmax.bf16 %v4616, %v4744
    %v4873 = vmax.bf16 %v4617, %v4745
    %v4874 = vmax.bf16 %v4618, %v4746
    %v4875 = vmax.bf16 %v4619, %v4747
    %v4876 = vmax.bf16 %v4620, %v4748
    %v4877 = vmax.bf16 %v4621, %v4749
    %v4878 = vmax.bf16 %v4622, %v4750
    %v4879 = vmax.bf16 %v4623, %v4751
    %v4880 = vmax.bf16 %v4624, %v4752
    %v4881 = vmax.bf16 %v4625, %v4753
    %v4882 = vmax.bf16 %v4626, %v4754
    %v4883 = vmax.bf16 %v4627, %v4755
    %v4884 = vmax.bf16 %v4628, %v4756
    %v4885 = vmax.bf16 %v4629, %v4757
    %v4886 = vmax.bf16 %v4630, %v4758
    %v4887 = vmax.bf16 %v4631, %v4759
    %v4888 = vmax.bf16 %v4632, %v4760
    %v4889 = vmax.bf16 %v4633, %v4761
    %v4890 = vmax.bf16 %v4634, %v4762
    %v4891 = vmax.bf16 %v4635, %v4763
    %v4892 = vmax.bf16 %v4636, %v4764
    %v4893 = vmax.bf16 %v4637, %v4765
    %v4894 = vmax.bf16 %v4638, %v4766
    %v4895 = vmax.bf16 %v4639, %v4767
    %v4896 = vmax.bf16 %v4640, %v4768
    %v4897 = vmax.bf16 %v4641, %v4769
    %v4898 = vmax.bf16 %v4642, %v4770
    %v4899 = vmax.bf16 %v4643, %v4771
    %v4900 = vmax.bf16 %v4644, %v4772
    %v4901 = vmax.bf16 %v4645, %v4773
    %v4902 = vmax.bf16 %v4646, %v4774
    %v4903 = vmax.bf16 %v4647, %v4775
    %v4904 = vmax.bf16 %v4648, %v4776
    %v4905 = vmax.bf16 %v4649, %v4777
    %v4906 = vmax.bf16 %v4650, %v4778
    %v4907 = vmax.bf16 %v4651, %v4779
    %v4908 = vmax.bf16 %v4652, %v4780
    %v4909 = vmax.bf16 %v4653, %v4781
    %v4910 = vmax.bf16 %v4654, %v4782
    %v4911 = vmax.bf16 %v4655, %v4783
    %v4912 = vmax.bf16 %v4656, %v4784
    %v4913 = vmax.bf16 %v4657, %v4785
    %v4914 = vmax.bf16 %v4658, %v4786
    %v4915 = vmax.bf16 %v4659, %v4787
    %v4916 = vmax.bf16 %v4660, %v4788
    %v4917 = vmax.bf16 %v4661, %v4789
    %v4918 = vmax.bf16 %v4662, %v4790
    %v4919 = vmax.bf16 %v4663, %v4791
    %v4920 = vmax.bf16 %v4664, %v4792
    %v4921 = vmax.bf16 %v4665, %v4793
    %v4922 = vmax.bf16 %v4666, %v4794
    %v4923 = vmax.bf16 %v4667, %v4795
    %v4924 = vmax.bf16 %v4668, %v4796
    %v4925 = vmax.bf16 %v4669, %v4797
    %v4926 = vmax.bf16 %v4670, %v4798
    %v4927 = vmax.bf16 %v4671, %v4799
    %v4928 = vmax.bf16 %v4672, %v4800
    %v4929 = vmax.bf16 %v4673, %v4801
    %v4930 = vmax.bf16 %v4674, %v4802
    %v4931 = vmax.bf16 %v4675, %v4803
    %v4932 = vmax.bf16 %v4676, %v4804
    %v4933 = vmax.bf16 %v4677, %v4805
    %v4934 = vmax.bf16 %v4678, %v4806
    %v4935 = vmax.bf16 %v4679, %v4807
    %v4936 = vmax.bf16 %v4680, %v4808
    %v4937 = vmax.bf16 %v4681, %v4809
    %v4938 = vmax.bf16 %v4682, %v4810
    %v4939 = vmax.bf16 %v4683, %v4811
    %v4940 = vmax.bf16 %v4684, %v4812
    %v4941 = vmax.bf16 %v4685, %v4813
    %v4942 = vmax.bf16 %v4686, %v4814
    %v4943 = vmax.bf16 %v4687, %v4815
    %v4944 = vmax.bf16 %v4688, %v4816
    %v4945 = vmax.bf16 %v4689, %v4817
    %v4946 = vmax.bf16 %v4690, %v4818
    %v4947 = vmax.bf16 %v4691, %v4819
    %v4948 = vmax.bf16 %v4692, %v4820
    %v4949 = vmax.bf16 %v4693, %v4821
    %v4950 = vmax.bf16 %v4694, %v4822
    %v4951 = vmax.bf16 %v4695, %v4823
    %v4952 = vmax.bf16 %v4696, %v4824
    %v4953 = vmax.bf16 %v4697, %v4825
    %v4954 = vmax.bf16 %v4698, %v4826
    %v4955 = vmax.bf16 %v4699, %v4827
    %v4956 = vmax.bf16 %v4700, %v4828
    %v4957 = vmax.bf16 %v4701, %v4829
    %v4958 = vmax.bf16 %v4702, %v4830
    %v4959 = vmax.bf16 %v4703, %v4831
    %v4960 = vmax.bf16 %v4704, %v4832
    %v4961 = vmax.bf16 %v4705, %v4833
    %v4962 = vmax.bf16 %v4706, %v4834
    %v4963 = vmax.bf16 %v4707, %v4835
    %v4964 = vmax.bf16 %v4708, %v4836
    %v4965 = vmax.bf16 %v4709, %v4837
    %v4966 = vmax.bf16 %v4710, %v4838
    %v4967 = vmax.bf16 %v4711, %v4839
    %v4968 = vmax.bf16 %v4712, %v4840
    %v4969 = vmax.bf16 %v4713, %v4841
    %v4970 = vmax.bf16 %v4714, %v4842
    %v4971 = vmax.bf16 %v4715, %v4843
    %v4972 = vmax.bf16 %v4716, %v4844
    %v4973 = vmax.bf16 %v4717, %v4845
    %v4974 = vmax.bf16 %v4718, %v4846
    %v4975 = vmax.bf16 %v4719, %v4847
    %v4976 = vmax.bf16 %v4720, %v4848
    %v4977 = vmax.bf16 %v4721, %v4849
    %v4978 = vmax.bf16 %v4722, %v4850
    %v4979 = vmax.bf16 %v4723, %v4851
    %v4980 = vmax.bf16 %v4724, %v4852
    %v4981 = vmax.bf16 %v4725, %v4853
    %v4982 = vmax.bf16 %v4726, %v4854
    %v4983 = vunpack.c.l.bf16 %v4855
    %v4984 = vunpack.c.l.bf16 %v4856
    %v4985 = vunpack.c.l.bf16 %v4857
    %v4986 = vunpack.c.l.bf16 %v4858
    %v4987 = vunpack.c.l.bf16 %v4859
    %v4988 = vunpack.c.l.bf16 %v4860
    %v4989 = vunpack.c.l.bf16 %v4861
    %v4990 = vunpack.c.l.bf16 %v4862
    %v4991 = vunpack.c.h.bf16 %v4855
    %v4992 = vunpack.c.h.bf16 %v4856
    %v4993 = vunpack.c.h.bf16 %v4857
    %v4994 = vunpack.c.h.bf16 %v4858
    %v4995 = vunpack.c.h.bf16 %v4859
    %v4996 = vunpack.c.h.bf16 %v4860
    %v4997 = vunpack.c.h.bf16 %v4861
    %v4998 = vunpack.c.h.bf16 %v4862
    %v4999 = vunpack.c.l.bf16 %v4863
    %v5000 = vunpack.c.l.bf16 %v4864
    %v5001 = vunpack.c.l.bf16 %v4865
    %v5002 = vunpack.c.l.bf16 %v4866
    %v5003 = vunpack.c.l.bf16 %v4867
    %v5004 = vunpack.c.l.bf16 %v4868
    %v5005 = vunpack.c.l.bf16 %v4869
    %v5006 = vunpack.c.l.bf16 %v4870
    %v5007 = vunpack.c.h.bf16 %v4863
    %v5008 = vunpack.c.h.bf16 %v4864
    %v5009 = vunpack.c.h.bf16 %v4865
    %v5010 = vunpack.c.h.bf16 %v4866
    %v5011 = vunpack.c.h.bf16 %v4867
    %v5012 = vunpack.c.h.bf16 %v4868
    %v5013 = vunpack.c.h.bf16 %v4869
    %v5014 = vunpack.c.h.bf16 %v4870
    %v5015 = vunpack.c.l.bf16 %v4871
    %v5016 = vunpack.c.l.bf16 %v4872
    %v5017 = vunpack.c.l.bf16 %v4873
    %v5018 = vunpack.c.l.bf16 %v4874
    %v5019 = vunpack.c.l.bf16 %v4875
    %v5020 = vunpack.c.l.bf16 %v4876
    %v5021 = vunpack.c.l.bf16 %v4877
    %v5022 = vunpack.c.l.bf16 %v4878
    %v5023 = vunpack.c.h.bf16 %v4871
    %v5024 = vunpack.c.h.bf16 %v4872
    %v5025 = vunpack.c.h.bf16 %v4873
    %v5026 = vunpack.c.h.bf16 %v4874
    %v5027 = vunpack.c.h.bf16 %v4875
    %v5028 = vunpack.c.h.bf16 %v4876
    %v5029 = vunpack.c.h.bf16 %v4877
    %v5030 = vunpack.c.h.bf16 %v4878
    %v5031 = vunpack.c.l.bf16 %v4879
    %v5032 = vunpack.c.l.bf16 %v4880
    %v5033 = vunpack.c.l.bf16 %v4881
    %v5034 = vunpack.c.l.bf16 %v4882
    %v5035 = vunpack.c.l.bf16 %v4883
    %v5036 = vunpack.c.l.bf16 %v4884
    %v5037 = vunpack.c.l.bf16 %v4885
    %v5038 = vunpack.c.l.bf16 %v4886
    %v5039 = vunpack.c.h.bf16 %v4879
    %v5040 = vunpack.c.h.bf16 %v4880
    %v5041 = vunpack.c.h.bf16 %v4881
    %v5042 = vunpack.c.h.bf16 %v4882
    %v5043 = vunpack.c.h.bf16 %v4883
    %v5044 = vunpack.c.h.bf16 %v4884
    %v5045 = vunpack.c.h.bf16 %v4885
    %v5046 = vunpack.c.h.bf16 %v4886
    %v5047 = vunpack.c.l.bf16 %v4887
    %v5048 = vunpack.c.l.bf16 %v4888
    %v5049 = vunpack.c.l.bf16 %v4889
    %v5050 = vunpack.c.l.bf16 %v4890
    %v5051 = vunpack.c.l.bf16 %v4891
    %v5052 = vunpack.c.l.bf16 %v4892
    %v5053 = vunpack.c.l.bf16 %v4893
    %v5054 = vunpack.c.l.bf16 %v4894
    %v5055 = vunpack.c.h.bf16 %v4887
    %v5056 = vunpack.c.h.bf16 %v4888
    %v5057 = vunpack.c.h.bf16 %v4889
    %v5058 = vunpack.c.h.bf16 %v4890
    %v5059 = vunpack.c.h.bf16 %v4891
    %v5060 = vunpack.c.h.bf16 %v4892
    %v5061 = vunpack.c.h.bf16 %v4893
    %v5062 = vunpack.c.h.bf16 %v4894
    %v5063 = vunpack.c.l.bf16 %v4895
    %v5064 = vunpack.c.l.bf16 %v4896
    %v5065 = vunpack.c.l.bf16 %v4897
    %v5066 = vunpack.c.l.bf16 %v4898
    %v5067 = vunpack.c.l.bf16 %v4899
    %v5068 = vunpack.c.l.bf16 %v4900
    %v5069 = vunpack.c.l.bf16 %v4901
    %v5070 = vunpack.c.l.bf16 %v4902
    %v5071 = vunpack.c.h.bf16 %v4895
    %v5072 = vunpack.c.h.bf16 %v4896
    %v5073 = vunpack.c.h.bf16 %v4897
    %v5074 = vunpack.c.h.bf16 %v4898
    %v5075 = vunpack.c.h.bf16 %v4899
    %v5076 = vunpack.c.h.bf16 %v4900
    %v5077 = vunpack.c.h.bf16 %v4901
    %v5078 = vunpack.c.h.bf16 %v4902
    %v5079 = vunpack.c.l.bf16 %v4903
    %v5080 = vunpack.c.l.bf16 %v4904
    %v5081 = vunpack.c.l.bf16 %v4905
    %v5082 = vunpack.c.l.bf16 %v4906
    %v5083 = vunpack.c.l.bf16 %v4907
    %v5084 = vunpack.c.l.bf16 %v4908
    %v5085 = vunpack.c.l.bf16 %v4909
    %v5086 = vunpack.c.l.bf16 %v4910
    %v5087 = vunpack.c.h.bf16 %v4903
    %v5088 = vunpack.c.h.bf16 %v4904
    %v5089 = vunpack.c.h.bf16 %v4905
    %v5090 = vunpack.c.h.bf16 %v4906
    %v5091 = vunpack.c.h.bf16 %v4907
    %v5092 = vunpack.c.h.bf16 %v4908
    %v5093 = vunpack.c.h.bf16 %v4909
    %v5094 = vunpack.c.h.bf16 %v4910
    %v5095 = vunpack.c.l.bf16 %v4911
    %v5096 = vunpack.c.l.bf16 %v4912
    %v5097 = vunpack.c.l.bf16 %v4913
    %v5098 = vunpack.c.l.bf16 %v4914
    %v5099 = vunpack.c.l.bf16 %v4915
    %v5100 = vunpack.c.l.bf16 %v4916
    %v5101 = vunpack.c.l.bf16 %v4917
    %v5102 = vunpack.c.l.bf16 %v4918
    %v5103 = vunpack.c.h.bf16 %v4911
    %v5104 = vunpack.c.h.bf16 %v4912
    %v5105 = vunpack.c.h.bf16 %v4913
    %v5106 = vunpack.c.h.bf16 %v4914
    %v5107 = vunpack.c.h.bf16 %v4915
    %v5108 = vunpack.c.h.bf16 %v4916
    %v5109 = vunpack.c.h.bf16 %v4917
    %v5110 = vunpack.c.h.bf16 %v4918
    %v5111 = vunpack.c.l.bf16 %v4919
    %v5112 = vunpack.c.l.bf16 %v4920
    %v5113 = vunpack.c.l.bf16 %v4921
    %v5114 = vunpack.c.l.bf16 %v4922
    %v5115 = vunpack.c.l.bf16 %v4923
    %v5116 = vunpack.c.l.bf16 %v4924
    %v5117 = vunpack.c.l.bf16 %v4925
    %v5118 = vunpack.c.l.bf16 %v4926
    %v5119 = vunpack.c.h.bf16 %v4919
    %v5120 = vunpack.c.h.bf16 %v4920
    %v5121 = vunpack.c.h.bf16 %v4921
    %v5122 = vunpack.c.h.bf16 %v4922
    %v5123 = vunpack.c.h.bf16 %v4923
    %v5124 = vunpack.c.h.bf16 %v4924
    %v5125 = vunpack.c.h.bf16 %v4925
    %v5126 = vunpack.c.h.bf16 %v4926
    %v5127 = vunpack.c.l.bf16 %v4927
    %v5128 = vunpack.c.l.bf16 %v4928
    %v5129 = vunpack.c.l.bf16 %v4929
    %v5130 = vunpack.c.l.bf16 %v4930
    %v5131 = vunpack.c.l.bf16 %v4931
    %v5132 = vunpack.c.l.bf16 %v4932
    %v5133 = vunpack.c.l.bf16 %v4933
    %v5134 = vunpack.c.l.bf16 %v4934
    %v5135 = vunpack.c.h.bf16 %v4927
    %v5136 = vunpack.c.h.bf16 %v4928
    %v5137 = vunpack.c.h.bf16 %v4929
    %v5138 = vunpack.c.h.bf16 %v4930
    %v5139 = vunpack.c.h.bf16 %v4931
    %v5140 = vunpack.c.h.bf16 %v4932
    %v5141 = vunpack.c.h.bf16 %v4933
    %v5142 = vunpack.c.h.bf16 %v4934
    %v5143 = vunpack.c.l.bf16 %v4935
    %v5144 = vunpack.c.l.bf16 %v4936
    %v5145 = vunpack.c.l.bf16 %v4937
    %v5146 = vunpack.c.l.bf16 %v4938
    %v5147 = vunpack.c.l.bf16 %v4939
    %v5148 = vunpack.c.l.bf16 %v4940
    %v5149 = vunpack.c.l.bf16 %v4941
    %v5150 = vunpack.c.l.bf16 %v4942
    %v5151 = vunpack.c.h.bf16 %v4935
    %v5152 = vunpack.c.h.bf16 %v4936
    %v5153 = vunpack.c.h.bf16 %v4937
    %v5154 = vunpack.c.h.bf16 %v4938
    %v5155 = vunpack.c.h.bf16 %v4939
    %v5156 = vunpack.c.h.bf16 %v4940
    %v5157 = vunpack.c.h.bf16 %v4941
    %v5158 = vunpack.c.h.bf16 %v4942
    %v5159 = vunpack.c.l.bf16 %v4943
    %v5160 = vunpack.c.l.bf16 %v4944
    %v5161 = vunpack.c.l.bf16 %v4945
    %v5162 = vunpack.c.l.bf16 %v4946
    %v5163 = vunpack.c.l.bf16 %v4947
    %v5164 = vunpack.c.l.bf16 %v4948
    %v5165 = vunpack.c.l.bf16 %v4949
    %v5166 = vunpack.c.l.bf16 %v4950
    %v5167 = vunpack.c.h.bf16 %v4943
    %v5168 = vunpack.c.h.bf16 %v4944
    %v5169 = vunpack.c.h.bf16 %v4945
    %v5170 = vunpack.c.h.bf16 %v4946
    %v5171 = vunpack.c.h.bf16 %v4947
    %v5172 = vunpack.c.h.bf16 %v4948
    %v5173 = vunpack.c.h.bf16 %v4949
    %v5174 = vunpack.c.h.bf16 %v4950
    %v5175 = vunpack.c.l.bf16 %v4951
    %v5176 = vunpack.c.l.bf16 %v4952
    %v5177 = vunpack.c.l.bf16 %v4953
    %v5178 = vunpack.c.l.bf16 %v4954
    %v5179 = vunpack.c.l.bf16 %v4955
    %v5180 = vunpack.c.l.bf16 %v4956
    %v5181 = vunpack.c.l.bf16 %v4957
    %v5182 = vunpack.c.l.bf16 %v4958
    %v5183 = vunpack.c.h.bf16 %v4951
    %v5184 = vunpack.c.h.bf16 %v4952
    %v5185 = vunpack.c.h.bf16 %v4953
    %v5186 = vunpack.c.h.bf16 %v4954
    %v5187 = vunpack.c.h.bf16 %v4955
    %v5188 = vunpack.c.h.bf16 %v4956
    %v5189 = vunpack.c.h.bf16 %v4957
    %v5190 = vunpack.c.h.bf16 %v4958
    %v5191 = vunpack.c.l.bf16 %v4959
    %v5192 = vunpack.c.l.bf16 %v4960
    %v5193 = vunpack.c.l.bf16 %v4961
    %v5194 = vunpack.c.l.bf16 %v4962
    %v5195 = vunpack.c.l.bf16 %v4963
    %v5196 = vunpack.c.l.bf16 %v4964
    %v5197 = vunpack.c.l.bf16 %v4965
    %v5198 = vunpack.c.l.bf16 %v4966
    %v5199 = vunpack.c.h.bf16 %v4959
    %v5200 = vunpack.c.h.bf16 %v4960
    %v5201 = vunpack.c.h.bf16 %v4961
    %v5202 = vunpack.c.h.bf16 %v4962
    %v5203 = vunpack.c.h.bf16 %v4963
    %v5204 = vunpack.c.h.bf16 %v4964
    %v5205 = vunpack.c.h.bf16 %v4965
    %v5206 = vunpack.c.h.bf16 %v4966
    %v5207 = vunpack.c.l.bf16 %v4967
    %v5208 = vunpack.c.l.bf16 %v4968
    %v5209 = vunpack.c.l.bf16 %v4969
    %v5210 = vunpack.c.l.bf16 %v4970
    %v5211 = vunpack.c.l.bf16 %v4971
    %v5212 = vunpack.c.l.bf16 %v4972
    %v5213 = vunpack.c.l.bf16 %v4973
    %v5214 = vunpack.c.l.bf16 %v4974
    %v5215 = vunpack.c.h.bf16 %v4967
    %v5216 = vunpack.c.h.bf16 %v4968
    %v5217 = vunpack.c.h.bf16 %v4969
    %v5218 = vunpack.c.h.bf16 %v4970
    %v5219 = vunpack.c.h.bf16 %v4971
    %v5220 = vunpack.c.h.bf16 %v4972
    %v5221 = vunpack.c.h.bf16 %v4973
    %v5222 = vunpack.c.h.bf16 %v4974
    %v5223 = vunpack.c.l.bf16 %v4975
    %v5224 = vunpack.c.l.bf16 %v4976
    %v5225 = vunpack.c.l.bf16 %v4977
    %v5226 = vunpack.c.l.bf16 %v4978
    %v5227 = vunpack.c.l.bf16 %v4979
    %v5228 = vunpack.c.l.bf16 %v4980
    %v5229 = vunpack.c.l.bf16 %v4981
    %v5230 = vunpack.c.l.bf16 %v4982
    %v5231 = vunpack.c.h.bf16 %v4975
    %v5232 = vunpack.c.h.bf16 %v4976
    %v5233 = vunpack.c.h.bf16 %v4977
    %v5234 = vunpack.c.h.bf16 %v4978
    %v5235 = vunpack.c.h.bf16 %v4979
    %v5236 = vunpack.c.h.bf16 %v4980
    %v5237 = vunpack.c.h.bf16 %v4981
    %v5238 = vunpack.c.h.bf16 %v4982
    %v5239 = vld [vmem:[%s10] sm:$0xff]
    %v5241 = vlaneseq
    %v5242 = vshrl.u32 %v5241, 7
    %v5243 = vsub.s32 0, %v5242
    %v5244 = vrot.slane %v5239, %v5243
    %v5245 = vlaneseq
    %v5246 = vshrl.u32 %v5245, 7
    %v5247 = vsub.s32 1, %v5246
    %v5248 = vrot.slane %v5239, %v5247
    %v5249 = vlaneseq
    %v5250 = vshrl.u32 %v5249, 7
    %v5251 = vsub.s32 2, %v5250
    %v5252 = vrot.slane %v5239, %v5251
    %v5253 = vlaneseq
    %v5254 = vshrl.u32 %v5253, 7
    %v5255 = vsub.s32 3, %v5254
    %v5256 = vrot.slane %v5239, %v5255
    %v5257 = vlaneseq
    %v5258 = vshrl.u32 %v5257, 7
    %v5259 = vsub.s32 4, %v5258
    %v5260 = vrot.slane %v5239, %v5259
    %v5261 = vlaneseq
    %v5262 = vshrl.u32 %v5261, 7
    %v5263 = vsub.s32 5, %v5262
    %v5264 = vrot.slane %v5239, %v5263
    %v5265 = vlaneseq
    %v5266 = vshrl.u32 %v5265, 7
    %v5267 = vsub.s32 6, %v5266
    %v5268 = vrot.slane %v5239, %v5267
    %v5269 = vlaneseq
    %v5270 = vshrl.u32 %v5269, 7
    %v5271 = vsub.s32 7, %v5270
    %v5272 = vrot.slane %v5239, %v5271
    %v5281 = vmul.f32 %v4983, %v5244
    %v5282 = vmul.f32 %v4984, %v5248
    %v5283 = vmul.f32 %v4985, %v5252
    %v5284 = vmul.f32 %v4986, %v5256
    %v5285 = vmul.f32 %v4987, %v5260
    %v5286 = vmul.f32 %v4988, %v5264
    %v5287 = vmul.f32 %v4989, %v5268
    %v5288 = vmul.f32 %v4990, %v5272
    %v5289 = vmul.f32 %v4991, %v5244
    %v5290 = vmul.f32 %v4992, %v5248
    %v5291 = vmul.f32 %v4993, %v5252
    %v5292 = vmul.f32 %v4994, %v5256
    %v5293 = vmul.f32 %v4995, %v5260
    %v5294 = vmul.f32 %v4996, %v5264
    %v5295 = vmul.f32 %v4997, %v5268
    %v5296 = vmul.f32 %v4998, %v5272
    %v5297 = vmul.f32 %v4999, %v5244
    %v5298 = vmul.f32 %v5000, %v5248
    %v5299 = vmul.f32 %v5001, %v5252
    %v5300 = vmul.f32 %v5002, %v5256
    %v5301 = vmul.f32 %v5003, %v5260
    %v5302 = vmul.f32 %v5004, %v5264
    %v5303 = vmul.f32 %v5005, %v5268
    %v5304 = vmul.f32 %v5006, %v5272
    %v5305 = vmul.f32 %v5007, %v5244
    %v5306 = vmul.f32 %v5008, %v5248
    %v5307 = vmul.f32 %v5009, %v5252
    %v5308 = vmul.f32 %v5010, %v5256
    %v5309 = vmul.f32 %v5011, %v5260
    %v5310 = vmul.f32 %v5012, %v5264
    %v5311 = vmul.f32 %v5013, %v5268
    %v5312 = vmul.f32 %v5014, %v5272
    %v5313 = vmul.f32 %v5015, %v5244
    %v5314 = vmul.f32 %v5016, %v5248
    %v5315 = vmul.f32 %v5017, %v5252
    %v5316 = vmul.f32 %v5018, %v5256
    %v5317 = vmul.f32 %v5019, %v5260
    %v5318 = vmul.f32 %v5020, %v5264
    %v5319 = vmul.f32 %v5021, %v5268
    %v5320 = vmul.f32 %v5022, %v5272
    %v5321 = vmul.f32 %v5023, %v5244
    %v5322 = vmul.f32 %v5024, %v5248
    %v5323 = vmul.f32 %v5025, %v5252
    %v5324 = vmul.f32 %v5026, %v5256
    %v5325 = vmul.f32 %v5027, %v5260
    %v5326 = vmul.f32 %v5028, %v5264
    %v5327 = vmul.f32 %v5029, %v5268
    %v5328 = vmul.f32 %v5030, %v5272
    %v5329 = vmul.f32 %v5031, %v5244
    %v5330 = vmul.f32 %v5032, %v5248
    %v5331 = vmul.f32 %v5033, %v5252
    %v5332 = vmul.f32 %v5034, %v5256
    %v5333 = vmul.f32 %v5035, %v5260
    %v5334 = vmul.f32 %v5036, %v5264
    %v5335 = vmul.f32 %v5037, %v5268
    %v5336 = vmul.f32 %v5038, %v5272
    %v5337 = vmul.f32 %v5039, %v5244
    %v5338 = vmul.f32 %v5040, %v5248
    %v5339 = vmul.f32 %v5041, %v5252
    %v5340 = vmul.f32 %v5042, %v5256
    %v5341 = vmul.f32 %v5043, %v5260
    %v5342 = vmul.f32 %v5044, %v5264
    %v5343 = vmul.f32 %v5045, %v5268
    %v5344 = vmul.f32 %v5046, %v5272
    %v5345 = vmul.f32 %v5047, %v5244
    %v5346 = vmul.f32 %v5048, %v5248
    %v5347 = vmul.f32 %v5049, %v5252
    %v5348 = vmul.f32 %v5050, %v5256
    %v5349 = vmul.f32 %v5051, %v5260
    %v5350 = vmul.f32 %v5052, %v5264
    %v5351 = vmul.f32 %v5053, %v5268
    %v5352 = vmul.f32 %v5054, %v5272
    %v5353 = vmul.f32 %v5055, %v5244
    %v5354 = vmul.f32 %v5056, %v5248
    %v5355 = vmul.f32 %v5057, %v5252
    %v5356 = vmul.f32 %v5058, %v5256
    %v5357 = vmul.f32 %v5059, %v5260
    %v5358 = vmul.f32 %v5060, %v5264
    %v5359 = vmul.f32 %v5061, %v5268
    %v5360 = vmul.f32 %v5062, %v5272
    %v5361 = vmul.f32 %v5063, %v5244
    %v5362 = vmul.f32 %v5064, %v5248
    %v5363 = vmul.f32 %v5065, %v5252
    %v5364 = vmul.f32 %v5066, %v5256
    %v5365 = vmul.f32 %v5067, %v5260
    %v5366 = vmul.f32 %v5068, %v5264
    %v5367 = vmul.f32 %v5069, %v5268
    %v5368 = vmul.f32 %v5070, %v5272
    %v5369 = vmul.f32 %v5071, %v5244
    %v5370 = vmul.f32 %v5072, %v5248
    %v5371 = vmul.f32 %v5073, %v5252
    %v5372 = vmul.f32 %v5074, %v5256
    %v5373 = vmul.f32 %v5075, %v5260
    %v5374 = vmul.f32 %v5076, %v5264
    %v5375 = vmul.f32 %v5077, %v5268
    %v5376 = vmul.f32 %v5078, %v5272
    %v5377 = vmul.f32 %v5079, %v5244
    %v5378 = vmul.f32 %v5080, %v5248
    %v5379 = vmul.f32 %v5081, %v5252
    %v5380 = vmul.f32 %v5082, %v5256
    %v5381 = vmul.f32 %v5083, %v5260
    %v5382 = vmul.f32 %v5084, %v5264
    %v5383 = vmul.f32 %v5085, %v5268
    %v5384 = vmul.f32 %v5086, %v5272
    %v5385 = vmul.f32 %v5087, %v5244
    %v5386 = vmul.f32 %v5088, %v5248
    %v5387 = vmul.f32 %v5089, %v5252
    %v5388 = vmul.f32 %v5090, %v5256
    %v5389 = vmul.f32 %v5091, %v5260
    %v5390 = vmul.f32 %v5092, %v5264
    %v5391 = vmul.f32 %v5093, %v5268
    %v5392 = vmul.f32 %v5094, %v5272
    %v5393 = vmul.f32 %v5095, %v5244
    %v5394 = vmul.f32 %v5096, %v5248
    %v5395 = vmul.f32 %v5097, %v5252
    %v5396 = vmul.f32 %v5098, %v5256
    %v5397 = vmul.f32 %v5099, %v5260
    %v5398 = vmul.f32 %v5100, %v5264
    %v5399 = vmul.f32 %v5101, %v5268
    %v5400 = vmul.f32 %v5102, %v5272
    %v5401 = vmul.f32 %v5103, %v5244
    %v5402 = vmul.f32 %v5104, %v5248
    %v5403 = vmul.f32 %v5105, %v5252
    %v5404 = vmul.f32 %v5106, %v5256
    %v5405 = vmul.f32 %v5107, %v5260
    %v5406 = vmul.f32 %v5108, %v5264
    %v5407 = vmul.f32 %v5109, %v5268
    %v5408 = vmul.f32 %v5110, %v5272
    %v5409 = vmul.f32 %v5111, %v5244
    %v5410 = vmul.f32 %v5112, %v5248
    %v5411 = vmul.f32 %v5113, %v5252
    %v5412 = vmul.f32 %v5114, %v5256
    %v5413 = vmul.f32 %v5115, %v5260
    %v5414 = vmul.f32 %v5116, %v5264
    %v5415 = vmul.f32 %v5117, %v5268
    %v5416 = vmul.f32 %v5118, %v5272
    %v5417 = vmul.f32 %v5119, %v5244
    %v5418 = vmul.f32 %v5120, %v5248
    %v5419 = vmul.f32 %v5121, %v5252
    %v5420 = vmul.f32 %v5122, %v5256
    %v5421 = vmul.f32 %v5123, %v5260
    %v5422 = vmul.f32 %v5124, %v5264
    %v5423 = vmul.f32 %v5125, %v5268
    %v5424 = vmul.f32 %v5126, %v5272
    %v5425 = vmul.f32 %v5127, %v5244
    %v5426 = vmul.f32 %v5128, %v5248
    %v5427 = vmul.f32 %v5129, %v5252
    %v5428 = vmul.f32 %v5130, %v5256
    %v5429 = vmul.f32 %v5131, %v5260
    %v5430 = vmul.f32 %v5132, %v5264
    %v5431 = vmul.f32 %v5133, %v5268
    %v5432 = vmul.f32 %v5134, %v5272
    %v5433 = vmul.f32 %v5135, %v5244
    %v5434 = vmul.f32 %v5136, %v5248
    %v5435 = vmul.f32 %v5137, %v5252
    %v5436 = vmul.f32 %v5138, %v5256
    %v5437 = vmul.f32 %v5139, %v5260
    %v5438 = vmul.f32 %v5140, %v5264
    %v5439 = vmul.f32 %v5141, %v5268
    %v5440 = vmul.f32 %v5142, %v5272
    %v5441 = vmul.f32 %v5143, %v5244
    %v5442 = vmul.f32 %v5144, %v5248
    %v5443 = vmul.f32 %v5145, %v5252
    %v5444 = vmul.f32 %v5146, %v5256
    %v5445 = vmul.f32 %v5147, %v5260
    %v5446 = vmul.f32 %v5148, %v5264
    %v5447 = vmul.f32 %v5149, %v5268
    %v5448 = vmul.f32 %v5150, %v5272
    %v5449 = vmul.f32 %v5151, %v5244
    %v5450 = vmul.f32 %v5152, %v5248
    %v5451 = vmul.f32 %v5153, %v5252
    %v5452 = vmul.f32 %v5154, %v5256
    %v5453 = vmul.f32 %v5155, %v5260
    %v5454 = vmul.f32 %v5156, %v5264
    %v5455 = vmul.f32 %v5157, %v5268
    %v5456 = vmul.f32 %v5158, %v5272
    %v5457 = vmul.f32 %v5159, %v5244
    %v5458 = vmul.f32 %v5160, %v5248
    %v5459 = vmul.f32 %v5161, %v5252
    %v5460 = vmul.f32 %v5162, %v5256
    %v5461 = vmul.f32 %v5163, %v5260
    %v5462 = vmul.f32 %v5164, %v5264
    %v5463 = vmul.f32 %v5165, %v5268
    %v5464 = vmul.f32 %v5166, %v5272
    %v5465 = vmul.f32 %v5167, %v5244
    %v5466 = vmul.f32 %v5168, %v5248
    %v5467 = vmul.f32 %v5169, %v5252
    %v5468 = vmul.f32 %v5170, %v5256
    %v5469 = vmul.f32 %v5171, %v5260
    %v5470 = vmul.f32 %v5172, %v5264
    %v5471 = vmul.f32 %v5173, %v5268
    %v5472 = vmul.f32 %v5174, %v5272
    %v5473 = vmul.f32 %v5175, %v5244
    %v5474 = vmul.f32 %v5176, %v5248
    %v5475 = vmul.f32 %v5177, %v5252
    %v5476 = vmul.f32 %v5178, %v5256
    %v5477 = vmul.f32 %v5179, %v5260
    %v5478 = vmul.f32 %v5180, %v5264
    %v5479 = vmul.f32 %v5181, %v5268
    %v5480 = vmul.f32 %v5182, %v5272
    %v5481 = vmul.f32 %v5183, %v5244
    %v5482 = vmul.f32 %v5184, %v5248
    %v5483 = vmul.f32 %v5185, %v5252
    %v5484 = vmul.f32 %v5186, %v5256
    %v5485 = vmul.f32 %v5187, %v5260
    %v5486 = vmul.f32 %v5188, %v5264
    %v5487 = vmul.f32 %v5189, %v5268
    %v5488 = vmul.f32 %v5190, %v5272
    %v5489 = vmul.f32 %v5191, %v5244
    %v5490 = vmul.f32 %v5192, %v5248
    %v5491 = vmul.f32 %v5193, %v5252
    %v5492 = vmul.f32 %v5194, %v5256
    %v5493 = vmul.f32 %v5195, %v5260
    %v5494 = vmul.f32 %v5196, %v5264
    %v5495 = vmul.f32 %v5197, %v5268
    %v5496 = vmul.f32 %v5198, %v5272
    %v5497 = vmul.f32 %v5199, %v5244
    %v5498 = vmul.f32 %v5200, %v5248
    %v5499 = vmul.f32 %v5201, %v5252
    %v5500 = vmul.f32 %v5202, %v5256
    %v5501 = vmul.f32 %v5203, %v5260
    %v5502 = vmul.f32 %v5204, %v5264
    %v5503 = vmul.f32 %v5205, %v5268
    %v5504 = vmul.f32 %v5206, %v5272
    %v5505 = vmul.f32 %v5207, %v5244
    %v5506 = vmul.f32 %v5208, %v5248
    %v5507 = vmul.f32 %v5209, %v5252
    %v5508 = vmul.f32 %v5210, %v5256
    %v5509 = vmul.f32 %v5211, %v5260
    %v5510 = vmul.f32 %v5212, %v5264
    %v5511 = vmul.f32 %v5213, %v5268
    %v5512 = vmul.f32 %v5214, %v5272
    %v5513 = vmul.f32 %v5215, %v5244
    %v5514 = vmul.f32 %v5216, %v5248
    %v5515 = vmul.f32 %v5217, %v5252
    %v5516 = vmul.f32 %v5218, %v5256
    %v5517 = vmul.f32 %v5219, %v5260
    %v5518 = vmul.f32 %v5220, %v5264
    %v5519 = vmul.f32 %v5221, %v5268
    %v5520 = vmul.f32 %v5222, %v5272
    %v5521 = vmul.f32 %v5223, %v5244
    %v5522 = vmul.f32 %v5224, %v5248
    %v5523 = vmul.f32 %v5225, %v5252
    %v5524 = vmul.f32 %v5226, %v5256
    %v5525 = vmul.f32 %v5227, %v5260
    %v5526 = vmul.f32 %v5228, %v5264
    %v5527 = vmul.f32 %v5229, %v5268
    %v5528 = vmul.f32 %v5230, %v5272
    %v5529 = vmul.f32 %v5231, %v5244
    %v5530 = vmul.f32 %v5232, %v5248
    %v5531 = vmul.f32 %v5233, %v5252
    %v5532 = vmul.f32 %v5234, %v5256
    %v5533 = vmul.f32 %v5235, %v5260
    %v5534 = vmul.f32 %v5236, %v5264
    %v5535 = vmul.f32 %v5237, %v5268
    %v5536 = vmul.f32 %v5238, %v5272
    %v5537 = vadd.f32 %v5281, %v5282
    %v5538 = vadd.f32 %v5537, %v5283
    %v5539 = vadd.f32 %v5538, %v5284
    %v5540 = vadd.f32 %v5539, %v5285
    %v5541 = vadd.f32 %v5540, %v5286
    %v5542 = vadd.f32 %v5541, %v5287
    %v5543 = vadd.f32 %v5542, %v5288
    %5544 = vadd.xlane.f32.xlu0 %v5543
    %v5545 = vpop.xlane.xlu0 %5544
    %v5546 = vadd.f32 %v5289, %v5290
    %v5547 = vadd.f32 %v5546, %v5291
    %v5548 = vadd.f32 %v5547, %v5292
    %v5549 = vadd.f32 %v5548, %v5293
    %v5550 = vadd.f32 %v5549, %v5294
    %v5551 = vadd.f32 %v5550, %v5295
    %v5552 = vadd.f32 %v5551, %v5296
    %5553 = vadd.xlane.f32.xlu0 %v5552
    %v5554 = vpop.xlane.xlu0 %5553
    %v5555 = vadd.f32 %v5297, %v5298
    %v5556 = vadd.f32 %v5555, %v5299
    %v5557 = vadd.f32 %v5556, %v5300
    %v5558 = vadd.f32 %v5557, %v5301
    %v5559 = vadd.f32 %v5558, %v5302
    %v5560 = vadd.f32 %v5559, %v5303
    %v5561 = vadd.f32 %v5560, %v5304
    %5562 = vadd.xlane.f32.xlu0 %v5561
    %v5563 = vpop.xlane.xlu0 %5562
    %v5564 = vadd.f32 %v5305, %v5306
    %v5565 = vadd.f32 %v5564, %v5307
    %v5566 = vadd.f32 %v5565, %v5308
    %v5567 = vadd.f32 %v5566, %v5309
    %v5568 = vadd.f32 %v5567, %v5310
    %v5569 = vadd.f32 %v5568, %v5311
    %v5570 = vadd.f32 %v5569, %v5312
    %5571 = vadd.xlane.f32.xlu0 %v5570
    %v5572 = vpop.xlane.xlu0 %5571
    %v5573 = vadd.f32 %v5313, %v5314
    %v5574 = vadd.f32 %v5573, %v5315
    %v5575 = vadd.f32 %v5574, %v5316
    %v5576 = vadd.f32 %v5575, %v5317
    %v5577 = vadd.f32 %v5576, %v5318
    %v5578 = vadd.f32 %v5577, %v5319
    %v5579 = vadd.f32 %v5578, %v5320
    %5580 = vadd.xlane.f32.xlu0 %v5579
    %v5581 = vpop.xlane.xlu0 %5580
    %v5582 = vadd.f32 %v5321, %v5322
    %v5583 = vadd.f32 %v5582, %v5323
    %v5584 = vadd.f32 %v5583, %v5324
    %v5585 = vadd.f32 %v5584, %v5325
    %v5586 = vadd.f32 %v5585, %v5326
    %v5587 = vadd.f32 %v5586, %v5327
    %v5588 = vadd.f32 %v5587, %v5328
    %5589 = vadd.xlane.f32.xlu0 %v5588
    %v5590 = vpop.xlane.xlu0 %5589
    %v5591 = vadd.f32 %v5329, %v5330
    %v5592 = vadd.f32 %v5591, %v5331
    %v5593 = vadd.f32 %v5592, %v5332
    %v5594 = vadd.f32 %v5593, %v5333
    %v5595 = vadd.f32 %v5594, %v5334
    %v5596 = vadd.f32 %v5595, %v5335
    %v5597 = vadd.f32 %v5596, %v5336
    %5598 = vadd.xlane.f32.xlu0 %v5597
    %v5599 = vpop.xlane.xlu0 %5598
    %v5600 = vadd.f32 %v5337, %v5338
    %v5601 = vadd.f32 %v5600, %v5339
    %v5602 = vadd.f32 %v5601, %v5340
    %v5603 = vadd.f32 %v5602, %v5341
    %v5604 = vadd.f32 %v5603, %v5342
    %v5605 = vadd.f32 %v5604, %v5343
    %v5606 = vadd.f32 %v5605, %v5344
    %5607 = vadd.xlane.f32.xlu0 %v5606
    %v5608 = vpop.xlane.xlu0 %5607
    %v5609 = vadd.f32 %v5345, %v5346
    %v5610 = vadd.f32 %v5609, %v5347
    %v5611 = vadd.f32 %v5610, %v5348
    %v5612 = vadd.f32 %v5611, %v5349
    %v5613 = vadd.f32 %v5612, %v5350
    %v5614 = vadd.f32 %v5613, %v5351
    %v5615 = vadd.f32 %v5614, %v5352
    %5616 = vadd.xlane.f32.xlu0 %v5615
    %v5617 = vpop.xlane.xlu0 %5616
    %v5618 = vadd.f32 %v5353, %v5354
    %v5619 = vadd.f32 %v5618, %v5355
    %v5620 = vadd.f32 %v5619, %v5356
    %v5621 = vadd.f32 %v5620, %v5357
    %v5622 = vadd.f32 %v5621, %v5358
    %v5623 = vadd.f32 %v5622, %v5359
    %v5624 = vadd.f32 %v5623, %v5360
    %5625 = vadd.xlane.f32.xlu0 %v5624
    %v5626 = vpop.xlane.xlu0 %5625
    %v5627 = vadd.f32 %v5361, %v5362
    %v5628 = vadd.f32 %v5627, %v5363
    %v5629 = vadd.f32 %v5628, %v5364
    %v5630 = vadd.f32 %v5629, %v5365
    %v5631 = vadd.f32 %v5630, %v5366
    %v5632 = vadd.f32 %v5631, %v5367
    %v5633 = vadd.f32 %v5632, %v5368
    %5634 = vadd.xlane.f32.xlu0 %v5633
    %v5635 = vpop.xlane.xlu0 %5634
    %v5636 = vadd.f32 %v5369, %v5370
    %v5637 = vadd.f32 %v5636, %v5371
    %v5638 = vadd.f32 %v5637, %v5372
    %v5639 = vadd.f32 %v5638, %v5373
    %v5640 = vadd.f32 %v5639, %v5374
    %v5641 = vadd.f32 %v5640, %v5375
    %v5642 = vadd.f32 %v5641, %v5376
    %5643 = vadd.xlane.f32.xlu0 %v5642
    %v5644 = vpop.xlane.xlu0 %5643
    %v5645 = vadd.f32 %v5377, %v5378
    %v5646 = vadd.f32 %v5645, %v5379
    %v5647 = vadd.f32 %v5646, %v5380
    %v5648 = vadd.f32 %v5647, %v5381
    %v5649 = vadd.f32 %v5648, %v5382
    %v5650 = vadd.f32 %v5649, %v5383
    %v5651 = vadd.f32 %v5650, %v5384
    %5652 = vadd.xlane.f32.xlu0 %v5651
    %v5653 = vpop.xlane.xlu0 %5652
    %v5654 = vadd.f32 %v5385, %v5386
    %v5655 = vadd.f32 %v5654, %v5387
    %v5656 = vadd.f32 %v5655, %v5388
    %v5657 = vadd.f32 %v5656, %v5389
    %v5658 = vadd.f32 %v5657, %v5390
    %v5659 = vadd.f32 %v5658, %v5391
    %v5660 = vadd.f32 %v5659, %v5392
    %5661 = vadd.xlane.f32.xlu0 %v5660
    %v5662 = vpop.xlane.xlu0 %5661
    %v5663 = vadd.f32 %v5393, %v5394
    %v5664 = vadd.f32 %v5663, %v5395
    %v5665 = vadd.f32 %v5664, %v5396
    %v5666 = vadd.f32 %v5665, %v5397
    %v5667 = vadd.f32 %v5666, %v5398
    %v5668 = vadd.f32 %v5667, %v5399
    %v5669 = vadd.f32 %v5668, %v5400
    %5670 = vadd.xlane.f32.xlu0 %v5669
    %v5671 = vpop.xlane.xlu0 %5670
    %v5672 = vadd.f32 %v5401, %v5402
    %v5673 = vadd.f32 %v5672, %v5403
    %v5674 = vadd.f32 %v5673, %v5404
    %v5675 = vadd.f32 %v5674, %v5405
    %v5676 = vadd.f32 %v5675, %v5406
    %v5677 = vadd.f32 %v5676, %v5407
    %v5678 = vadd.f32 %v5677, %v5408
    %5679 = vadd.xlane.f32.xlu0 %v5678
    %v5680 = vpop.xlane.xlu0 %5679
    %v5681 = vadd.f32 %v5409, %v5410
    %v5682 = vadd.f32 %v5681, %v5411
    %v5683 = vadd.f32 %v5682, %v5412
    %v5684 = vadd.f32 %v5683, %v5413
    %v5685 = vadd.f32 %v5684, %v5414
    %v5686 = vadd.f32 %v5685, %v5415
    %v5687 = vadd.f32 %v5686, %v5416
    %5688 = vadd.xlane.f32.xlu0 %v5687
    %v5689 = vpop.xlane.xlu0 %5688
    %v5690 = vadd.f32 %v5417, %v5418
    %v5691 = vadd.f32 %v5690, %v5419
    %v5692 = vadd.f32 %v5691, %v5420
    %v5693 = vadd.f32 %v5692, %v5421
    %v5694 = vadd.f32 %v5693, %v5422
    %v5695 = vadd.f32 %v5694, %v5423
    %v5696 = vadd.f32 %v5695, %v5424
    %5697 = vadd.xlane.f32.xlu0 %v5696
    %v5698 = vpop.xlane.xlu0 %5697
    %v5699 = vadd.f32 %v5425, %v5426
    %v5700 = vadd.f32 %v5699, %v5427
    %v5701 = vadd.f32 %v5700, %v5428
    %v5702 = vadd.f32 %v5701, %v5429
    %v5703 = vadd.f32 %v5702, %v5430
    %v5704 = vadd.f32 %v5703, %v5431
    %v5705 = vadd.f32 %v5704, %v5432
    %5706 = vadd.xlane.f32.xlu0 %v5705
    %v5707 = vpop.xlane.xlu0 %5706
    %v5708 = vadd.f32 %v5433, %v5434
    %v5709 = vadd.f32 %v5708, %v5435
    %v5710 = vadd.f32 %v5709, %v5436
    %v5711 = vadd.f32 %v5710, %v5437
    %v5712 = vadd.f32 %v5711, %v5438
    %v5713 = vadd.f32 %v5712, %v5439
    %v5714 = vadd.f32 %v5713, %v5440
    %5715 = vadd.xlane.f32.xlu0 %v5714
    %v5716 = vpop.xlane.xlu0 %5715
    %v5717 = vadd.f32 %v5441, %v5442
    %v5718 = vadd.f32 %v5717, %v5443
    %v5719 = vadd.f32 %v5718, %v5444
    %v5720 = vadd.f32 %v5719, %v5445
    %v5721 = vadd.f32 %v5720, %v5446
    %v5722 = vadd.f32 %v5721, %v5447
    %v5723 = vadd.f32 %v5722, %v5448
    %5724 = vadd.xlane.f32.xlu0 %v5723
    %v5725 = vpop.xlane.xlu0 %5724
    %v5726 = vadd.f32 %v5449, %v5450
    %v5727 = vadd.f32 %v5726, %v5451
    %v5728 = vadd.f32 %v5727, %v5452
    %v5729 = vadd.f32 %v5728, %v5453
    %v5730 = vadd.f32 %v5729, %v5454
    %v5731 = vadd.f32 %v5730, %v5455
    %v5732 = vadd.f32 %v5731, %v5456
    %5733 = vadd.xlane.f32.xlu0 %v5732
    %v5734 = vpop.xlane.xlu0 %5733
    %v5735 = vadd.f32 %v5457, %v5458
    %v5736 = vadd.f32 %v5735, %v5459
    %v5737 = vadd.f32 %v5736, %v5460
    %v5738 = vadd.f32 %v5737, %v5461
    %v5739 = vadd.f32 %v5738, %v5462
    %v5740 = vadd.f32 %v5739, %v5463
    %v5741 = vadd.f32 %v5740, %v5464
    %5742 = vadd.xlane.f32.xlu0 %v5741
    %v5743 = vpop.xlane.xlu0 %5742
    %v5744 = vadd.f32 %v5465, %v5466
    %v5745 = vadd.f32 %v5744, %v5467
    %v5746 = vadd.f32 %v5745, %v5468
    %v5747 = vadd.f32 %v5746, %v5469
    %v5748 = vadd.f32 %v5747, %v5470
    %v5749 = vadd.f32 %v5748, %v5471
    %v5750 = vadd.f32 %v5749, %v5472
    %5751 = vadd.xlane.f32.xlu0 %v5750
    %v5752 = vpop.xlane.xlu0 %5751
    %v5753 = vadd.f32 %v5473, %v5474
    %v5754 = vadd.f32 %v5753, %v5475
    %v5755 = vadd.f32 %v5754, %v5476
    %v5756 = vadd.f32 %v5755, %v5477
    %v5757 = vadd.f32 %v5756, %v5478
    %v5758 = vadd.f32 %v5757, %v5479
    %v5759 = vadd.f32 %v5758, %v5480
    %5760 = vadd.xlane.f32.xlu0 %v5759
    %v5761 = vpop.xlane.xlu0 %5760
    %v5762 = vadd.f32 %v5481, %v5482
    %v5763 = vadd.f32 %v5762, %v5483
    %v5764 = vadd.f32 %v5763, %v5484
    %v5765 = vadd.f32 %v5764, %v5485
    %v5766 = vadd.f32 %v5765, %v5486
    %v5767 = vadd.f32 %v5766, %v5487
    %v5768 = vadd.f32 %v5767, %v5488
    %5769 = vadd.xlane.f32.xlu0 %v5768
    %v5770 = vpop.xlane.xlu0 %5769
    %v5771 = vadd.f32 %v5489, %v5490
    %v5772 = vadd.f32 %v5771, %v5491
    %v5773 = vadd.f32 %v5772, %v5492
    %v5774 = vadd.f32 %v5773, %v5493
    %v5775 = vadd.f32 %v5774, %v5494
    %v5776 = vadd.f32 %v5775, %v5495
    %v5777 = vadd.f32 %v5776, %v5496
    %5778 = vadd.xlane.f32.xlu0 %v5777
    %v5779 = vpop.xlane.xlu0 %5778
    %v5780 = vadd.f32 %v5497, %v5498
    %v5781 = vadd.f32 %v5780, %v5499
    %v5782 = vadd.f32 %v5781, %v5500
    %v5783 = vadd.f32 %v5782, %v5501
    %v5784 = vadd.f32 %v5783, %v5502
    %v5785 = vadd.f32 %v5784, %v5503
    %v5786 = vadd.f32 %v5785, %v5504
    %5787 = vadd.xlane.f32.xlu0 %v5786
    %v5788 = vpop.xlane.xlu0 %5787
    %v5789 = vadd.f32 %v5505, %v5506
    %v5790 = vadd.f32 %v5789, %v5507
    %v5791 = vadd.f32 %v5790, %v5508
    %v5792 = vadd.f32 %v5791, %v5509
    %v5793 = vadd.f32 %v5792, %v5510
    %v5794 = vadd.f32 %v5793, %v5511
    %v5795 = vadd.f32 %v5794, %v5512
    %5796 = vadd.xlane.f32.xlu0 %v5795
    %v5797 = vpop.xlane.xlu0 %5796
    %v5798 = vadd.f32 %v5513, %v5514
    %v5799 = vadd.f32 %v5798, %v5515
    %v5800 = vadd.f32 %v5799, %v5516
    %v5801 = vadd.f32 %v5800, %v5517
    %v5802 = vadd.f32 %v5801, %v5518
    %v5803 = vadd.f32 %v5802, %v5519
    %v5804 = vadd.f32 %v5803, %v5520
    %5805 = vadd.xlane.f32.xlu0 %v5804
    %v5806 = vpop.xlane.xlu0 %5805
    %v5807 = vadd.f32 %v5521, %v5522
    %v5808 = vadd.f32 %v5807, %v5523
    %v5809 = vadd.f32 %v5808, %v5524
    %v5810 = vadd.f32 %v5809, %v5525
    %v5811 = vadd.f32 %v5810, %v5526
    %v5812 = vadd.f32 %v5811, %v5527
    %v5813 = vadd.f32 %v5812, %v5528
    %5814 = vadd.xlane.f32.xlu0 %v5813
    %v5815 = vpop.xlane.xlu0 %5814
    %v5816 = vadd.f32 %v5529, %v5530
    %v5817 = vadd.f32 %v5816, %v5531
    %v5818 = vadd.f32 %v5817, %v5532
    %v5819 = vadd.f32 %v5818, %v5533
    %v5820 = vadd.f32 %v5819, %v5534
    %v5821 = vadd.f32 %v5820, %v5535
    %v5822 = vadd.f32 %v5821, %v5536
    %5823 = vadd.xlane.f32.xlu0 %v5822
    %v5824 = vpop.xlane.xlu0 %5823
    %v5825 = vld [vmem:[#allocation2] sm:$0x1]
    %v5827 = vlaneseq
    %v5828 = vshrl.u32 %v5827, 7
    %v5829 = vsub.s32 0, %v5828
    %v5830 = vrot.slane %v5825, %v5829
    %v5832 = vadd.f32 %v5545, %v5830
    %v5833 = vadd.f32 %v5554, %v5830
    %v5834 = vadd.f32 %v5563, %v5830
    %v5835 = vadd.f32 %v5572, %v5830
    %v5836 = vadd.f32 %v5581, %v5830
    %v5837 = vadd.f32 %v5590, %v5830
    %v5838 = vadd.f32 %v5599, %v5830
    %v5839 = vadd.f32 %v5608, %v5830
    %v5840 = vadd.f32 %v5617, %v5830
    %v5841 = vadd.f32 %v5626, %v5830
    %v5842 = vadd.f32 %v5635, %v5830
    %v5843 = vadd.f32 %v5644, %v5830
    %v5844 = vadd.f32 %v5653, %v5830
    %v5845 = vadd.f32 %v5662, %v5830
    %v5846 = vadd.f32 %v5671, %v5830
    %v5847 = vadd.f32 %v5680, %v5830
    %v5848 = vadd.f32 %v5689, %v5830
    %v5849 = vadd.f32 %v5698, %v5830
    %v5850 = vadd.f32 %v5707, %v5830
    %v5851 = vadd.f32 %v5716, %v5830
    %v5852 = vadd.f32 %v5725, %v5830
    %v5853 = vadd.f32 %v5734, %v5830
    %v5854 = vadd.f32 %v5743, %v5830
    %v5855 = vadd.f32 %v5752, %v5830
    %v5856 = vadd.f32 %v5761, %v5830
    %v5857 = vadd.f32 %v5770, %v5830
    %v5858 = vadd.f32 %v5779, %v5830
    %v5859 = vadd.f32 %v5788, %v5830
    %v5860 = vadd.f32 %v5797, %v5830
    %v5861 = vadd.f32 %v5806, %v5830
    %v5862 = vadd.f32 %v5815, %v5830
    %v5863 = vadd.f32 %v5824, %v5830
    %vm5864 = vcmask 7168
    %5865 = vst.msk [vmem:[%s12] sm:$0xff] %vm5864, %v5832
    %5866 = vst.msk [vmem:[%s12 + $0x8] sm:$0xff] %vm5864, %v5833
    %5867 = vst.msk [vmem:[%s12 + $0x10] sm:$0xff] %vm5864, %v5834
    %5868 = vst.msk [vmem:[%s12 + $0x18] sm:$0xff] %vm5864, %v5835
    %5869 = vst.msk [vmem:[%s12 + $0x20] sm:$0xff] %vm5864, %v5836
    %5870 = vst.msk [vmem:[%s12 + $0x28] sm:$0xff] %vm5864, %v5837
    %5871 = vst.msk [vmem:[%s12 + $0x30] sm:$0xff] %vm5864, %v5838
    %5872 = vst.msk [vmem:[%s12 + $0x38] sm:$0xff] %vm5864, %v5839
    %5873 = vst.msk [vmem:[%s12 + $0x40] sm:$0xff] %vm5864, %v5840
    %5874 = vst.msk [vmem:[%s12 + $0x48] sm:$0xff] %vm5864, %v5841
    %5875 = vst.msk [vmem:[%s12 + $0x50] sm:$0xff] %vm5864, %v5842
    %5876 = vst.msk [vmem:[%s12 + $0x58] sm:$0xff] %vm5864, %v5843
    %5877 = vst.msk [vmem:[%s12 + $0x60] sm:$0xff] %vm5864, %v5844
    %5878 = vst.msk [vmem:[%s12 + $0x68] sm:$0xff] %vm5864, %v5845
    %5879 = vst.msk [vmem:[%s12 + $0x70] sm:$0xff] %vm5864, %v5846
    %5880 = vst.msk [vmem:[%s12 + $0x78] sm:$0xff] %vm5864, %v5847
    %5881 = vst.msk [vmem:[%s12 + $0x80] sm:$0xff] %vm5864, %v5848
    %5882 = vst.msk [vmem:[%s12 + $0x88] sm:$0xff] %vm5864, %v5849
    %5883 = vst.msk [vmem:[%s12 + $0x90] sm:$0xff] %vm5864, %v5850
    %5884 = vst.msk [vmem:[%s12 + $0x98] sm:$0xff] %vm5864, %v5851
    %5885 = vst.msk [vmem:[%s12 + $0xa0] sm:$0xff] %vm5864, %v5852
    %5886 = vst.msk [vmem:[%s12 + $0xa8] sm:$0xff] %vm5864, %v5853
    %5887 = vst.msk [vmem:[%s12 + $0xb0] sm:$0xff] %vm5864, %v5854
    %5888 = vst.msk [vmem:[%s12 + $0xb8] sm:$0xff] %vm5864, %v5855
    %5889 = vst.msk [vmem:[%s12 + $0xc0] sm:$0xff] %vm5864, %v5856
    %5890 = vst.msk [vmem:[%s12 + $0xc8] sm:$0xff] %vm5864, %v5857
    %5891 = vst.msk [vmem:[%s12 + $0xd0] sm:$0xff] %vm5864, %v5858
    %5892 = vst.msk [vmem:[%s12 + $0xd8] sm:$0xff] %vm5864, %v5859
    %5893 = vst.msk [vmem:[%s12 + $0xe0] sm:$0xff] %vm5864, %v5860
    %5894 = vst.msk [vmem:[%s12 + $0xe8] sm:$0xff] %vm5864, %v5861
    %5895 = vst.msk [vmem:[%s12 + $0xf0] sm:$0xff] %vm5864, %v5862
    %5896 = vst.msk [vmem:[%s12 + $0xf8] sm:$0xff] %vm5864, %v5863
    // Predicated region
    $region58: #{metacritic_forward.1} parent=1 // pred_check
      _
    $region59: #{metacritic_forward.1} parent=1 // pred_check_branch
      %5898 = sbr.rel (0) target = $region61
    $region60: #{metacritic_forward.1} parent=1 // pred_region
      _
    $region61: #{metacritic_forward.1} parent=1 // pred_fallthru
      _
    // Predicated region
    $region62: #{metacritic_forward.1} parent=1 // pred_check
      _
    $region63: #{metacritic_forward.1} parent=1 // pred_check_branch
      %5900 = sbr.rel (0) target = $region65
    $region64: #{metacritic_forward.1} parent=1 // pred_region
      _
    $region65: #{metacritic_forward.1} parent=1 // pred_fallthru
      _
    %5901 = vsyncpa [#allocation4], 1
    %5902 = vsyncpa [#allocation6], 1

</llo_original>
